<compile_context>
chip_gen: v7x
topology: tpu7x:2x2x1
jax: 0.10.0
libtpu: 0.0.40
codegen_flags: <defaults>
</compile_context>

<pallas_src>
import jax
import jax.numpy as jnp
from jax.experimental import pallas as pl
from jax.experimental.pallas import tpu as pltpu


def _rbf_kernel(xk_ref, xt_ref, ck_ref, ct_ref, v_ref, o_ref):
    j = pl.program_id(1)

    # Output block index is (i, 0): constant across the M axis -> o_ref is the
    # VMEM-resident accumulator for this N-tile. Zero it on the first M-tile.
    @pl.when(j == 0)
    def _():
        o_ref[...] = jnp.zeros_like(o_ref)

    xk = xk_ref[...]          # (TN, 1)  eps-scaled point coords
    xt = xt_ref[...]          # (TN, 1)
    ck = ck_ref[...]          # (1, TM)  eps-scaled center coords
    ct = ct_ref[...]          # (1, TM)

    dk = xk - ck                              # (TN, TM)
    dt = xt - ct                              # (TN, TM)
    rbf = jnp.exp(-(dk * dk + dt * dt))       # eps already folded into coords

    # Weighted reduction over M on the MXU: (TN, TM) @ (TM, 1) -> (TN, 1).
    o_ref[...] += jnp.dot(
        rbf,
        v_ref[...],
        precision=jax.lax.Precision.HIGHEST,
        preferred_element_type=jnp.float32,
    )


def _round_up(x, mult):
    return (x + mult - 1) // mult * mult


def rbf_layer(x, centers, values, eps=1.0, *, tn=256, tm=1024):
    """Pallas equivalent of RBFLayer.forward.

    x: (N, 2) f32, centers: (M, 2) f32, values: (M,) f32 -> (N,) f32
    """
    x = jnp.asarray(x, jnp.float32)
    centers = jnp.asarray(centers, jnp.float32)
    values = jnp.asarray(values, jnp.float32)

    n = x.shape[0]
    m = centers.shape[0]

    # Adapt tile sizes to the problem size.
    tn = _round_up(min(tn, _round_up(n, 128)), 128)
    # Keep at least 2 N-tiles when possible so the "parallel" axis can be
    # sharded across both TensorCores on v7x.
    while tn > 128 and pl.cdiv(n, tn) < 2:
        tn //= 2
    tm = _round_up(min(tm, _round_up(m, 128)), 128)

    n_pad = _round_up(n, tn)
    m_pad = _round_up(m, tm)

    # Fold eps into the coordinates: eps^2 * d^2 == |eps*x - eps*c|^2.
    eps_f = jnp.float32(eps)
    xs = x * eps_f
    cs = centers * eps_f

    # Points: N on sublanes (DMA'd once per N-tile, amortized over all M-tiles).
    xk = jnp.pad(xs[:, 0], (0, n_pad - n)).reshape(n_pad, 1)
    xt = jnp.pad(xs[:, 1], (0, n_pad - n)).reshape(n_pad, 1)
    # Centers: M on lanes (lane-dense per-step DMA).
    ck = jnp.pad(cs[:, 0], (0, m_pad - m)).reshape(1, m_pad)
    ct = jnp.pad(cs[:, 1], (0, m_pad - m)).reshape(1, m_pad)
    # Values as a column so the weighted reduction is an MXU matvec.
    # Padded values are 0, so padded centers contribute nothing.
    v = jnp.pad(values, (0, m_pad - m)).reshape(m_pad, 1)

    grid = (n_pad // tn, m_pad // tm)

    out = pl.pallas_call(
        _rbf_kernel,
        out_shape=jax.ShapeDtypeStruct((n_pad, 1), jnp.float32),
        grid_spec=pltpu.PrefetchScalarGridSpec(
            num_scalar_prefetch=0,
            grid=grid,
            in_specs=[
                pl.BlockSpec((tn, 1), lambda i, j: (i, 0)),   # xk (eps-scaled)
                pl.BlockSpec((tn, 1), lambda i, j: (i, 0)),   # xt (eps-scaled)
                pl.BlockSpec((1, tm), lambda i, j: (0, j)),   # ck (eps-scaled)
                pl.BlockSpec((1, tm), lambda i, j: (0, j)),   # ct (eps-scaled)
                pl.BlockSpec((tm, 1), lambda i, j: (j, 0)),   # values column
            ],
            out_specs=pl.BlockSpec((tn, 1), lambda i, j: (i, 0)),
        ),
        compiler_params=pltpu.CompilerParams(
            dimension_semantics=("parallel", "arbitrary"),
        ),
    )(xk, xt, ck, ct, v)

    return out[:n, 0]


def rbf_layer_ref(x, centers, values, eps=1.0):
    """Pure-JAX reference (mirrors the PyTorch code)."""
    diff_k = x[:, 0][:, None] - centers[:, 0][None, :]
    diff_t = x[:, 1][:, None] - centers[:, 1][None, :]
    dist_sq = diff_k ** 2 + diff_t ** 2
    rbf = jnp.exp(-(eps ** 2) * dist_sq)
    return rbf @ values


if __name__ == "__main__":
    key = jax.random.PRNGKey(0)
    k_x, k_c, k_v = jax.random.split(key, 3)

    # Small, deterministic synthetic problem (N points, M centers).
    n_points, n_centers = 300, 200

    x = jax.random.uniform(k_x, (n_points, 2), jnp.float32)
    centers = jax.random.uniform(k_c, (n_centers, 2), jnp.float32)
    values = jax.random.normal(k_v, (n_centers,), jnp.float32)

    ok = True
    for eps in (1.0, 2.5):
        out = rbf_layer(x, centers, values, eps=eps)
        out = jax.block_until_ready(out)
        ref = rbf_layer_ref(x, centers, values, eps=eps)
        assert out.shape == (n_points,)
        max_err = float(jnp.max(jnp.abs(out - ref)))
        assert jnp.allclose(out, ref, atol=5e-4, rtol=5e-4), (eps, max_err)

    if ok:
        print("KERNEL_OK")
</pallas_src>

<mosaic_0001>
module attributes {stable_mosaic.version = 11 : i64} {
  func.func @_rbf_kernel(%arg0: i32, %arg1: i32, %arg2: memref<256x1xf32, #tpu.memory_space<vmem>>, %arg3: memref<256x1xf32, #tpu.memory_space<vmem>>, %arg4: memref<1x256xf32, #tpu.memory_space<vmem>>, %arg5: memref<1x256xf32, #tpu.memory_space<vmem>>, %arg6: memref<256x1xf32, #tpu.memory_space<vmem>>, %arg7: memref<256x1xf32, #tpu.memory_space<vmem>>) attributes {dimension_semantics = [#tpu.dimension_semantics<parallel>, #tpu.dimension_semantics<arbitrary>], iteration_bounds = array<i64: 2, 1>, scalar_prefetch = 0 : i64, scratch_operands = 0 : i64, tpu.core_type = #tpu.core_type<tc>, window_params = [{transform_indices = @transform_0, window_bounds = array<i64: 256, 1>}, {transform_indices = @transform_1, window_bounds = array<i64: 256, 1>}, {transform_indices = @transform_2, window_bounds = array<i64: 1, 256>}, {transform_indices = @transform_3, window_bounds = array<i64: 1, 256>}, {transform_indices = @transform_4, window_bounds = array<i64: 256, 1>}, {transform_indices = @transform_5, window_bounds = array<i64: 256, 1>}]} {
    %c0_i32 = arith.constant 0 : i32
    %0 = arith.cmpi eq, %arg1, %c0_i32 : i32
    %1 = arith.extui %0 : i1 to i32
    %c0_i32_0 = arith.constant 0 : i32
    %2 = arith.cmpi ne, %1, %c0_i32_0 : i32
    scf.if %2 {
      %cst_15 = arith.constant 0.000000e+00 : f32
      %24 = vector.broadcast %cst_15 : f32 to vector<256x1xf32>
      %c0_16 = arith.constant 0 : index
      %c0_17 = arith.constant 0 : index
      %25 = vector.load %arg7[%c0_16, %c0_17] : memref<256x1xf32, #tpu.memory_space<vmem>>, vector<256x1xf32>
      tpu.vector_store %arg7[%c0_16, %c0_17], %24 {strides = array<i32>} : memref<256x1xf32, #tpu.memory_space<vmem>>, vector<256x1xf32>,
    } else {
    }
    %c0 = arith.constant 0 : index
    %c0_1 = arith.constant 0 : index
    %3 = vector.load %arg2[%c0, %c0_1] : memref<256x1xf32, #tpu.memory_space<vmem>>, vector<256x1xf32>
    %c0_2 = arith.constant 0 : index
    %c0_3 = arith.constant 0 : index
    %4 = vector.load %arg3[%c0_2, %c0_3] : memref<256x1xf32, #tpu.memory_space<vmem>>, vector<256x1xf32>
    %c0_4 = arith.constant 0 : index
    %c0_5 = arith.constant 0 : index
    %5 = vector.load %arg4[%c0_4, %c0_5] : memref<1x256xf32, #tpu.memory_space<vmem>>, vector<1x256xf32>
    %c0_6 = arith.constant 0 : index
    %c0_7 = arith.constant 0 : index
    %6 = vector.load %arg5[%c0_6, %c0_7] : memref<1x256xf32, #tpu.memory_space<vmem>>, vector<1x256xf32>
    %7 = vector.broadcast %3 : vector<256x1xf32> to vector<256x256xf32>
    %8 = vector.broadcast %5 : vector<1x256xf32> to vector<256x256xf32>
    %9 = arith.subf %7, %8 : vector<256x256xf32>
    %10 = vector.broadcast %4 : vector<256x1xf32> to vector<256x256xf32>
    %11 = vector.broadcast %6 : vector<1x256xf32> to vector<256x256xf32>
    %12 = arith.subf %10, %11 : vector<256x256xf32>
    %13 = arith.mulf %9, %9 : vector<256x256xf32>
    %14 = arith.mulf %12, %12 : vector<256x256xf32>
    %15 = arith.addf %13, %14 : vector<256x256xf32>
    %cst = arith.constant 0.000000e+00 : f32
    %16 = vector.broadcast %cst : f32 to vector<256x256xf32>
    %17 = arith.subf %16, %15 : vector<256x256xf32>
    %18 = math.exp %17 : vector<256x256xf32>
    %c0_8 = arith.constant 0 : index
    %c0_9 = arith.constant 0 : index
    %19 = vector.load %arg7[%c0_8, %c0_9] : memref<256x1xf32, #tpu.memory_space<vmem>>, vector<256x1xf32>
    %c0_10 = arith.constant 0 : index
    %c0_11 = arith.constant 0 : index
    %20 = vector.load %arg6[%c0_10, %c0_11] : memref<256x1xf32, #tpu.memory_space<vmem>>, vector<256x1xf32>
    %cst_12 = arith.constant dense<0.000000e+00> : vector<256x1xf32>
    %21 = tpu.matmul %18, %20, %cst_12 {dimension_numbers = #tpu.dot_dimension_numbers<[1], [0], [0], [1], [0, 0, 1, 1], [], []>, precision = #tpu.contract_precision<fp32>} : vector<256x256xf32>, vector<256x1xf32>, vector<256x1xf32> -> vector<256x1xf32>
    %22 = arith.addf %19, %21 : vector<256x1xf32>
    %c0_13 = arith.constant 0 : index
    %c0_14 = arith.constant 0 : index
    %23 = vector.load %arg7[%c0_13, %c0_14] : memref<256x1xf32, #tpu.memory_space<vmem>>, vector<256x1xf32>
    tpu.vector_store %arg7[%c0_13, %c0_14], %22 {strides = array<i32>} : memref<256x1xf32, #tpu.memory_space<vmem>>, vector<256x1xf32>,
    return
  }
  func.func @transform_0(%arg0: i32, %arg1: i32) -> (i32, i32) {
    %c0_i32 = arith.constant 0 : i32
    %c0_i32_0 = arith.constant 0 : i32
    return %arg0, %c0_i32 : i32, i32
  }
  func.func @transform_1(%arg0: i32, %arg1: i32) -> (i32, i32) {
    %c0_i32 = arith.constant 0 : i32
    %c0_i32_0 = arith.constant 0 : i32
    return %arg0, %c0_i32 : i32, i32
  }
  func.func @transform_2(%arg0: i32, %arg1: i32) -> (i32, i32) {
    %c0_i32 = arith.constant 0 : i32
    %c0_i32_0 = arith.constant 0 : i32
    return %c0_i32, %arg1 : i32, i32
  }
  func.func @transform_3(%arg0: i32, %arg1: i32) -> (i32, i32) {
    %c0_i32 = arith.constant 0 : i32
    %c0_i32_0 = arith.constant 0 : i32
    return %c0_i32, %arg1 : i32, i32
  }
  func.func @transform_4(%arg0: i32, %arg1: i32) -> (i32, i32) {
    %c0_i32 = arith.constant 0 : i32
    %c0_i32_0 = arith.constant 0 : i32
    return %arg1, %c0_i32 : i32, i32
  }
  func.func @transform_5(%arg0: i32, %arg1: i32) -> (i32, i32) {
    %c0_i32 = arith.constant 0 : i32
    %c0_i32_0 = arith.constant 0 : i32
    return %arg0, %c0_i32 : i32, i32
  }
}

</mosaic_0001>

<llo_original>
// kernel: tpu_custom_call.1
$region0: #{tpu_custom_call.1}
  #allocation0 [shape = 'u32[]', space=smem, size = 0x4, offset = 0x4, fixed_abs, tag = 'smem constant byte address 0x4 - core index']
  #allocation1 [shape = 'u32[144,128]{1,0:T(1,128)}', space=vmem, size = 0x12000, scoped, tag = 'internal scratch']
  %s0 = inlined_call_operand.vmem [shape: f32[512,1], index: 0, kind: input, shape index: {}]
  %s1 = inlined_call_operand.vmem [shape: f32[512,1], index: 1, kind: input, shape index: {}]
  %s2 = inlined_call_operand.vmem [shape: f32[1,256], index: 2, kind: input, shape index: {}]
  %s3 = inlined_call_operand.vmem [shape: f32[1,256], index: 3, kind: input, shape index: {}]
  %s4 = inlined_call_operand.vmem [shape: f32[256,1], index: 4, kind: input, shape index: {}]
  %s5 = inlined_call_operand.vmem [shape: f32[512,1], index: 5, kind: output, shape index: {}]
  %s6 = sld [smem:[#allocation0]]
  $region57: #{tpu_custom_call.1} parent=0
    _
  %s8 = ssub.s32 1, %s6
  %s9 = scalar_select 0, %s8, %s6
  loop: start=0, step=1, limit=4
  $region2: #{tpu_custom_call.1} parent=0 // loop_pre_header
    _
  $region3: #{tpu_custom_call.1} parent=0 // loop_header
    %s11 = sphi 0, %s15
    %p12 = scmp.ge.s32.totalorder %s11, 4
    %s18 = sphi 0, %s30
    %s19 = sphi 0, %s26
    %s20 = sphi 0, %s18
    %s21 = sphi 0, %s19
    %s22 = sphi 0, %s20
    %s23 = sphi 0, %s21
    %s33 = sphi 0, %s35
    %s36 = sphi 0, %s33
    %s37 = sphi 0, %s36
    %s53 = sphi 0, %s37
    %s59 = sphi 0, %s61
    %s62 = sphi 0, %s59
    %s63 = sphi 0, %s62
    %s79 = sphi 0, %s63
    %s85 = sphi 0, %s87
    %s88 = sphi 0, %s85
    %s89 = sphi 0, %s88
    %s105 = sphi 0, %s89
    %s111 = sphi 0, %s113
    %s114 = sphi 0, %s111
    %s115 = sphi 0, %s114
    %s131 = sphi 0, %s115
    %s137 = sphi 0, %s139
    %s140 = sphi 0, %s137
    %s141 = sphi 0, %s140
    %s157 = sphi 0, %s141
    %s163 = sphi 0, %s165
    %s166 = sphi 0, %s163
    %s167 = sphi 0, %s166
    %s183 = sphi 0, %s167
  $region4: #{tpu_custom_call.1} parent=0 // loop_header_branch
    %14 = sbr.rel (%p12) target = $region8
  $region5: #{tpu_custom_call.1} parent=0 // loop_body
    %s16 = ssub.s32 %s11, 1
    %s17 = ssub.s32 %s11, 2
    %s24 = sadd.s32 1, %s19
    %p25 = scmp.ge.s32.totalorder %s24, 1
    %s26 = scalar_select %p25, 0, %s24
    %s27 = sadd.s32 1, %s18
    %s28 = scalar_select %p25, %s27, %s18
    %p29 = scmp.ge.s32.totalorder %s28, 2
    %s30 = scalar_select %p29, 0, %s28
    %s31 = ssub.s32 %s18, %s30
    %p32 = scmp.eq.s32.totalorder %s31, 0
    %s34 = sadd.s32 %s33, 1
    %s35 = scalar_select %p32, %s33, %s34
    %p38 = pneg %p32
    %p39 = scmp.eq.s32.totalorder %s11, 1
    %p40 = por %p38, %p39
    %p41 = scmp.ne.s32.totalorder %s33, %s36
    %p42 = scmp.eq.s32.totalorder %s11, 0
    %p43 = por %p41, %p42
    %p44 = scmp.ne.s32.totalorder %s33, %s36
    %p45 = scmp.eq.s32.totalorder %s16, 1
    %p46 = por %p44, %p45
    %p47 = scmp.ne.s32.totalorder %s36, %s37
    %p48 = scmp.eq.s32.totalorder %s16, 0
    %p49 = por %p47, %p48
    %p50 = scmp.ne.s32.totalorder %s36, %s37
    %p51 = scmp.eq.s32.totalorder %s17, 1
    %p52 = por %p50, %p51
    %p54 = scmp.ne.s32.totalorder %s37, %s53
    %p55 = scmp.eq.s32.totalorder %s17, 0
    %p56 = por %p54, %p55
    %s57 = ssub.s32 %s18, %s30
    %p58 = scmp.eq.s32.totalorder %s57, 0
    %s60 = sadd.s32 %s59, 1
    %s61 = scalar_select %p58, %s59, %s60
    %p64 = pneg %p58
    %p65 = scmp.eq.s32.totalorder %s11, 1
    %p66 = por %p64, %p65
    %p67 = scmp.ne.s32.totalorder %s59, %s62
    %p68 = scmp.eq.s32.totalorder %s11, 0
    %p69 = por %p67, %p68
    %p70 = scmp.ne.s32.totalorder %s59, %s62
    %p71 = scmp.eq.s32.totalorder %s16, 1
    %p72 = por %p70, %p71
    %p73 = scmp.ne.s32.totalorder %s62, %s63
    %p74 = scmp.eq.s32.totalorder %s16, 0
    %p75 = por %p73, %p74
    %p76 = scmp.ne.s32.totalorder %s62, %s63
    %p77 = scmp.eq.s32.totalorder %s17, 1
    %p78 = por %p76, %p77
    %p80 = scmp.ne.s32.totalorder %s63, %s79
    %p81 = scmp.eq.s32.totalorder %s17, 0
    %p82 = por %p80, %p81
    %s83 = ssub.s32 %s19, %s26
    %p84 = scmp.eq.s32.totalorder %s83, 0
    %s86 = sadd.s32 %s85, 1
    %s87 = scalar_select %p84, %s85, %s86
    %p90 = pneg %p84
    %p91 = scmp.eq.s32.totalorder %s11, 1
    %p92 = por %p90, %p91
    %p93 = scmp.ne.s32.totalorder %s85, %s88
    %p94 = scmp.eq.s32.totalorder %s11, 0
    %p95 = por %p93, %p94
    %p96 = scmp.ne.s32.totalorder %s85, %s88
    %p97 = scmp.eq.s32.totalorder %s16, 1
    %p98 = por %p96, %p97
    %p99 = scmp.ne.s32.totalorder %s88, %s89
    %p100 = scmp.eq.s32.totalorder %s16, 0
    %p101 = por %p99, %p100
    %p102 = scmp.ne.s32.totalorder %s88, %s89
    %p103 = scmp.eq.s32.totalorder %s17, 1
    %p104 = por %p102, %p103
    %p106 = scmp.ne.s32.totalorder %s89, %s105
    %p107 = scmp.eq.s32.totalorder %s17, 0
    %p108 = por %p106, %p107
    %s109 = ssub.s32 %s19, %s26
    %p110 = scmp.eq.s32.totalorder %s109, 0
    %s112 = sadd.s32 %s111, 1
    %s113 = scalar_select %p110, %s111, %s112
    %p116 = pneg %p110
    %p117 = scmp.eq.s32.totalorder %s11, 1
    %p118 = por %p116, %p117
    %p119 = scmp.ne.s32.totalorder %s111, %s114
    %p120 = scmp.eq.s32.totalorder %s11, 0
    %p121 = por %p119, %p120
    %p122 = scmp.ne.s32.totalorder %s111, %s114
    %p123 = scmp.eq.s32.totalorder %s16, 1
    %p124 = por %p122, %p123
    %p125 = scmp.ne.s32.totalorder %s114, %s115
    %p126 = scmp.eq.s32.totalorder %s16, 0
    %p127 = por %p125, %p126
    %p128 = scmp.ne.s32.totalorder %s114, %s115
    %p129 = scmp.eq.s32.totalorder %s17, 1
    %p130 = por %p128, %p129
    %p132 = scmp.ne.s32.totalorder %s115, %s131
    %p133 = scmp.eq.s32.totalorder %s17, 0
    %p134 = por %p132, %p133
    %s135 = ssub.s32 %s19, %s26
    %p136 = scmp.eq.s32.totalorder %s135, 0
    %s138 = sadd.s32 %s137, 1
    %s139 = scalar_select %p136, %s137, %s138
    %p142 = pneg %p136
    %p143 = scmp.eq.s32.totalorder %s11, 1
    %p144 = por %p142, %p143
    %p145 = scmp.ne.s32.totalorder %s137, %s140
    %p146 = scmp.eq.s32.totalorder %s11, 0
    %p147 = por %p145, %p146
    %p148 = scmp.ne.s32.totalorder %s137, %s140
    %p149 = scmp.eq.s32.totalorder %s16, 1
    %p150 = por %p148, %p149
    %p151 = scmp.ne.s32.totalorder %s140, %s141
    %p152 = scmp.eq.s32.totalorder %s16, 0
    %p153 = por %p151, %p152
    %p154 = scmp.ne.s32.totalorder %s140, %s141
    %p155 = scmp.eq.s32.totalorder %s17, 1
    %p156 = por %p154, %p155
    %p158 = scmp.ne.s32.totalorder %s141, %s157
    %p159 = scmp.eq.s32.totalorder %s17, 0
    %p160 = por %p158, %p159
    %s161 = ssub.s32 %s18, %s30
    %p162 = scmp.eq.s32.totalorder %s161, 0
    %s164 = sadd.s32 %s163, 1
    %s165 = scalar_select %p162, %s163, %s164
    %p168 = pneg %p162
    %p169 = scmp.eq.s32.totalorder %s11, 1
    %p170 = por %p168, %p169
    %p171 = scmp.ne.s32.totalorder %s163, %s166
    %p172 = scmp.eq.s32.totalorder %s11, 0
    %p173 = por %p171, %p172
    %p174 = scmp.ne.s32.totalorder %s163, %s166
    %p175 = scmp.eq.s32.totalorder %s16, 1
    %p176 = por %p174, %p175
    %p177 = scmp.ne.s32.totalorder %s166, %s167
    %p178 = scmp.eq.s32.totalorder %s16, 0
    %p179 = por %p177, %p178
    %p180 = scmp.ne.s32.totalorder %s166, %s167
    %p181 = scmp.eq.s32.totalorder %s17, 1
    %p182 = por %p180, %p181
    %p184 = scmp.ne.s32.totalorder %s167, %s183
    %p185 = scmp.eq.s32.totalorder %s17, 0
    %p186 = por %p184, %p185
    %p187 = scmp.le.s32.totalorder 1, %s11
    %p188 = scmp.lt.s32.totalorder %s11, 3
    %p189 = pnand %p187, %p188
    %p190 = pneg %p189
    // Predicated region
    $region9: #{tpu_custom_call.1} parent=5 // pred_check
      _
    $region10: #{tpu_custom_call.1} parent=5 // pred_check_branch
      %192 = sbr.rel (%p189) target = $region12
    $region11: #{tpu_custom_call.1} parent=5 // pred_region
      %s193 = ssub.s32 %s11, 1
      // Predicated region
      $region13: #{tpu_custom_call.1} parent=11 // pred_check
        %p194 = pneg %p101
      $region14: #{tpu_custom_call.1} parent=11 // pred_check_branch
        %196 = sbr.rel (%p194) target = $region16
      $region15: #{tpu_custom_call.1} parent=11 // pred_region
        %s197 = smul.u32 2, %s21
        %p198 = scmp.lt.s32.totalorder %s197, 1
        %s199 = scalar_select %p198, %s197, 1
        %s200 = scalar_lea.vmem %s2, %s199
        %s201 = smul.u32 2, %s21
      $region16: #{tpu_custom_call.1} parent=11 // pred_fallthru
        _
      // Predicated region
      $region17: #{tpu_custom_call.1} parent=11 // pred_check
        %p202 = pneg %p127
      $region18: #{tpu_custom_call.1} parent=11 // pred_check_branch
        %204 = sbr.rel (%p202) target = $region20
      $region19: #{tpu_custom_call.1} parent=11 // pred_region
        %s205 = smul.u32 2, %s21
        %p206 = scmp.lt.s32.totalorder %s205, 1
        %s207 = scalar_select %p206, %s205, 1
        %s208 = scalar_lea.vmem %s3, %s207
        %s209 = smul.u32 2, %s21
      $region20: #{tpu_custom_call.1} parent=11 // pred_fallthru
        _
      // Predicated region
      $region21: #{tpu_custom_call.1} parent=11 // pred_check
        %p210 = pneg %p153
      $region22: #{tpu_custom_call.1} parent=11 // pred_check_branch
        %212 = sbr.rel (%p210) target = $region24
      $region23: #{tpu_custom_call.1} parent=11 // pred_region
        %s213 = smul.u32 32, %s21
        %p214 = scmp.lt.s32.totalorder %s213, 31
        %s215 = scalar_select %p214, %s213, 31
        %s216 = smul.addr %s215, 8
        %s217 = scalar_lea.vmem %s4, %s216
        %s218 = smul.u32 32, %s21
      $region24: #{tpu_custom_call.1} parent=11 // pred_fallthru
        _
    $region12: #{tpu_custom_call.1} parent=5 // pred_fallthru
      _
    %p219 = scmp.lt.s32.totalorder %s11, 2
    // Predicated region
    $region25: #{tpu_custom_call.1} parent=5 // pred_check
      %p220 = pneg %p219
    $region26: #{tpu_custom_call.1} parent=5 // pred_check_branch
      %222 = sbr.rel (%p220) target = $region28
    $region27: #{tpu_custom_call.1} parent=5 // pred_region
      // Predicated region
      $region29: #{tpu_custom_call.1} parent=27 // pred_check
        %p223 = pneg %p43
      $region30: #{tpu_custom_call.1} parent=27 // pred_check_branch
        %225 = sbr.rel (%p223) target = $region32
      $region31: #{tpu_custom_call.1} parent=27 // pred_region
        %s226 = smul.u32 32, %s18
        %p227 = scmp.lt.s32.totalorder %s226, 63
        %s228 = scalar_select %p227, %s226, 63
        %s229 = smul.addr %s228, 8
        %s230 = scalar_lea.vmem %s0, %s229
        %s231 = smul.u32 32, %s18
      $region32: #{tpu_custom_call.1} parent=27 // pred_fallthru
        _
      // Predicated region
      $region33: #{tpu_custom_call.1} parent=27 // pred_check
        %p232 = pneg %p69
      $region34: #{tpu_custom_call.1} parent=27 // pred_check_branch
        %234 = sbr.rel (%p232) target = $region36
      $region35: #{tpu_custom_call.1} parent=27 // pred_region
        %s235 = smul.u32 32, %s18
        %p236 = scmp.lt.s32.totalorder %s235, 63
        %s237 = scalar_select %p236, %s235, 63
        %s238 = smul.addr %s237, 8
        %s239 = scalar_lea.vmem %s1, %s238
        %s240 = smul.u32 32, %s18
      $region36: #{tpu_custom_call.1} parent=27 // pred_fallthru
        _
    $region28: #{tpu_custom_call.1} parent=5 // pred_fallthru
      _
    %p241 = scmp.le.s32.totalorder 1, %s11
    %p242 = scmp.lt.s32.totalorder %s11, 3
    %p243 = pnand %p241, %p242
    %p244 = pneg %p243
    // Predicated region
    $region37: #{tpu_custom_call.1} parent=5 // pred_check
      _
    $region38: #{tpu_custom_call.1} parent=5 // pred_check_branch
      %246 = sbr.rel (%p243) target = $region40
    $region39: #{tpu_custom_call.1} parent=5 // pred_region
      %s247 = ssub.s32 %s11, 1
      %s248 = smul.u32 32, %s20
      %p249 = scmp.lt.s32.totalorder %s248, 63
      %s250 = scalar_select %p249, %s248, 63
      %s251 = smul.addr %s250, 8
      %s252 = scalar_lea.vmem %s0, %s251
      %p253 = pneg %p49
      %p254 = pneg %p46
      %s255 = smul.u32 32, %s20
      %p256 = scmp.lt.s32.totalorder %s255, 63
      %s257 = scalar_select %p256, %s255, 63
      %s258 = smul.addr %s257, 8
      %s259 = scalar_lea.vmem %s1, %s258
      %p260 = pneg %p75
      %p261 = pneg %p72
      %s262 = smul.u32 2, %s21
      %p263 = scmp.lt.s32.totalorder %s262, 1
      %s264 = scalar_select %p263, %s262, 1
      %s265 = scalar_lea.vmem %s2, %s264
      %p266 = pneg %p101
      %p267 = pneg %p98
      %s268 = smul.u32 2, %s21
      %p269 = scmp.lt.s32.totalorder %s268, 1
      %s270 = scalar_select %p269, %s268, 1
      %s271 = scalar_lea.vmem %s3, %s270
      %p272 = pneg %p127
      %p273 = pneg %p124
      %s274 = smul.u32 32, %s21
      %p275 = scmp.lt.s32.totalorder %s274, 31
      %s276 = scalar_select %p275, %s274, 31
      %s277 = smul.addr %s276, 8
      %s278 = scalar_lea.vmem %s4, %s277
      %p279 = pneg %p153
      %p280 = pneg %p150
      %p281 = pneg %p179
      %p282 = pneg %p176
      %s283 = smul.u32 32, %s20
      %p284 = scmp.lt.s32.totalorder %s283, 63
      %s285 = scalar_select %p284, %s283, 63
      %s286 = smul.addr %s285, 8
      %s287 = scalar_lea.vmem %s5, %s286
      %s288 = smul.u32 32, %s20
      %p289 = scmp.lt.s32.totalorder %s288, 63
      %s290 = scalar_select %p289, %s288, 63
      %s291 = smul.addr %s290, 8
      %s292 = scalar_lea.vmem %s0, %s291
      %s293 = smul.u32 32, %s20
      %s294 = smul.u32 32, %s20
      %p295 = scmp.lt.s32.totalorder %s294, 63
      %s296 = scalar_select %p295, %s294, 63
      %s297 = smul.addr %s296, 8
      %s298 = scalar_lea.vmem %s1, %s297
      %s299 = smul.u32 32, %s20
      %s300 = smul.u32 2, %s21
      %p301 = scmp.lt.s32.totalorder %s300, 1
      %s302 = scalar_select %p301, %s300, 1
      %s303 = scalar_lea.vmem %s2, %s302
      %s304 = smul.u32 2, %s21
      %s305 = smul.u32 2, %s21
      %p306 = scmp.lt.s32.totalorder %s305, 1
      %s307 = scalar_select %p306, %s305, 1
      %s308 = scalar_lea.vmem %s3, %s307
      %s309 = smul.u32 2, %s21
      %s310 = smul.u32 32, %s21
      %p311 = scmp.lt.s32.totalorder %s310, 31
      %s312 = scalar_select %p311, %s310, 31
      %s313 = smul.addr %s312, 8
      %s314 = scalar_lea.vmem %s4, %s313
      %s315 = smul.u32 32, %s21
      %s316 = smul.u32 32, %s20
      %p317 = scmp.lt.s32.totalorder %s316, 63
      %s318 = scalar_select %p317, %s316, 63
      %s319 = smul.addr %s318, 8
      %s320 = scalar_lea.vmem %s5, %s319
      %s321 = smul.u32 32, %s20
      %p322 = scmp.eq.s32.totalorder %s21, 0
      // Predicated region
      $region41: #{tpu_custom_call.1} parent=39 // pred_check
        %p323 = pneg %p322
      $region42: #{tpu_custom_call.1} parent=39 // pred_check_branch
        %325 = sbr.rel (%p323) target = $region44
      $region43: #{tpu_custom_call.1} parent=39 // pred_region
        %vm326 = vcmask 7168
        %327 = vst.msk [vmem:[%s320] sm:$0xff] %vm326, 0.0
        %328 = vst.msk [vmem:[%s320 + $0x8] sm:$0xff] %vm326, 0.0
        %329 = vst.msk [vmem:[%s320 + $0x10] sm:$0xff] %vm326, 0.0
        %330 = vst.msk [vmem:[%s320 + $0x18] sm:$0xff] %vm326, 0.0
        %331 = vst.msk [vmem:[%s320 + $0x20] sm:$0xff] %vm326, 0.0
        %332 = vst.msk [vmem:[%s320 + $0x28] sm:$0xff] %vm326, 0.0
        %333 = vst.msk [vmem:[%s320 + $0x30] sm:$0xff] %vm326, 0.0
        %334 = vst.msk [vmem:[%s320 + $0x38] sm:$0xff] %vm326, 0.0
        %335 = vst.msk [vmem:[%s320 + $0x40] sm:$0xff] %vm326, 0.0
        %336 = vst.msk [vmem:[%s320 + $0x48] sm:$0xff] %vm326, 0.0
        %337 = vst.msk [vmem:[%s320 + $0x50] sm:$0xff] %vm326, 0.0
        %338 = vst.msk [vmem:[%s320 + $0x58] sm:$0xff] %vm326, 0.0
        %339 = vst.msk [vmem:[%s320 + $0x60] sm:$0xff] %vm326, 0.0
        %340 = vst.msk [vmem:[%s320 + $0x68] sm:$0xff] %vm326, 0.0
        %341 = vst.msk [vmem:[%s320 + $0x70] sm:$0xff] %vm326, 0.0
        %342 = vst.msk [vmem:[%s320 + $0x78] sm:$0xff] %vm326, 0.0
        %343 = vst.msk [vmem:[%s320 + $0x80] sm:$0xff] %vm326, 0.0
        %344 = vst.msk [vmem:[%s320 + $0x88] sm:$0xff] %vm326, 0.0
        %345 = vst.msk [vmem:[%s320 + $0x90] sm:$0xff] %vm326, 0.0
        %346 = vst.msk [vmem:[%s320 + $0x98] sm:$0xff] %vm326, 0.0
        %347 = vst.msk [vmem:[%s320 + $0xa0] sm:$0xff] %vm326, 0.0
        %348 = vst.msk [vmem:[%s320 + $0xa8] sm:$0xff] %vm326, 0.0
        %349 = vst.msk [vmem:[%s320 + $0xb0] sm:$0xff] %vm326, 0.0
        %350 = vst.msk [vmem:[%s320 + $0xb8] sm:$0xff] %vm326, 0.0
        %351 = vst.msk [vmem:[%s320 + $0xc0] sm:$0xff] %vm326, 0.0
        %352 = vst.msk [vmem:[%s320 + $0xc8] sm:$0xff] %vm326, 0.0
        %353 = vst.msk [vmem:[%s320 + $0xd0] sm:$0xff] %vm326, 0.0
        %354 = vst.msk [vmem:[%s320 + $0xd8] sm:$0xff] %vm326, 0.0
        %355 = vst.msk [vmem:[%s320 + $0xe0] sm:$0xff] %vm326, 0.0
        %356 = vst.msk [vmem:[%s320 + $0xe8] sm:$0xff] %vm326, 0.0
        %357 = vst.msk [vmem:[%s320 + $0xf0] sm:$0xff] %vm326, 0.0
        %358 = vst.msk [vmem:[%s320 + $0xf8] sm:$0xff] %vm326, 0.0
      $region44: #{tpu_custom_call.1} parent=39 // pred_fallthru
        _
      %v359 = vld [vmem:[%s292] sm:$0xff]
      %v360 = vld [vmem:[%s292 + $0x8] sm:$0xff]
      %v361 = vld [vmem:[%s292 + $0x10] sm:$0xff]
      %v362 = vld [vmem:[%s292 + $0x18] sm:$0xff]
      %v363 = vld [vmem:[%s292 + $0x20] sm:$0xff]
      %v364 = vld [vmem:[%s292 + $0x28] sm:$0xff]
      %v365 = vld [vmem:[%s292 + $0x30] sm:$0xff]
      %v366 = vld [vmem:[%s292 + $0x38] sm:$0xff]
      %v367 = vld [vmem:[%s292 + $0x40] sm:$0xff]
      %v368 = vld [vmem:[%s292 + $0x48] sm:$0xff]
      %v369 = vld [vmem:[%s292 + $0x50] sm:$0xff]
      %v370 = vld [vmem:[%s292 + $0x58] sm:$0xff]
      %v371 = vld [vmem:[%s292 + $0x60] sm:$0xff]
      %v372 = vld [vmem:[%s292 + $0x68] sm:$0xff]
      %v373 = vld [vmem:[%s292 + $0x70] sm:$0xff]
      %v374 = vld [vmem:[%s292 + $0x78] sm:$0xff]
      %v375 = vld [vmem:[%s292 + $0x80] sm:$0xff]
      %v376 = vld [vmem:[%s292 + $0x88] sm:$0xff]
      %v377 = vld [vmem:[%s292 + $0x90] sm:$0xff]
      %v378 = vld [vmem:[%s292 + $0x98] sm:$0xff]
      %v379 = vld [vmem:[%s292 + $0xa0] sm:$0xff]
      %v380 = vld [vmem:[%s292 + $0xa8] sm:$0xff]
      %v381 = vld [vmem:[%s292 + $0xb0] sm:$0xff]
      %v382 = vld [vmem:[%s292 + $0xb8] sm:$0xff]
      %v383 = vld [vmem:[%s292 + $0xc0] sm:$0xff]
      %v384 = vld [vmem:[%s292 + $0xc8] sm:$0xff]
      %v385 = vld [vmem:[%s292 + $0xd0] sm:$0xff]
      %v386 = vld [vmem:[%s292 + $0xd8] sm:$0xff]
      %v387 = vld [vmem:[%s292 + $0xe0] sm:$0xff]
      %v388 = vld [vmem:[%s292 + $0xe8] sm:$0xff]
      %v389 = vld [vmem:[%s292 + $0xf0] sm:$0xff]
      %v390 = vld [vmem:[%s292 + $0xf8] sm:$0xff]
      %v391 = vld [vmem:[%s298] sm:$0xff]
      %v392 = vld [vmem:[%s298 + $0x8] sm:$0xff]
      %v393 = vld [vmem:[%s298 + $0x10] sm:$0xff]
      %v394 = vld [vmem:[%s298 + $0x18] sm:$0xff]
      %v395 = vld [vmem:[%s298 + $0x20] sm:$0xff]
      %v396 = vld [vmem:[%s298 + $0x28] sm:$0xff]
      %v397 = vld [vmem:[%s298 + $0x30] sm:$0xff]
      %v398 = vld [vmem:[%s298 + $0x38] sm:$0xff]
      %v399 = vld [vmem:[%s298 + $0x40] sm:$0xff]
      %v400 = vld [vmem:[%s298 + $0x48] sm:$0xff]
      %v401 = vld [vmem:[%s298 + $0x50] sm:$0xff]
      %v402 = vld [vmem:[%s298 + $0x58] sm:$0xff]
      %v403 = vld [vmem:[%s298 + $0x60] sm:$0xff]
      %v404 = vld [vmem:[%s298 + $0x68] sm:$0xff]
      %v405 = vld [vmem:[%s298 + $0x70] sm:$0xff]
      %v406 = vld [vmem:[%s298 + $0x78] sm:$0xff]
      %v407 = vld [vmem:[%s298 + $0x80] sm:$0xff]
      %v408 = vld [vmem:[%s298 + $0x88] sm:$0xff]
      %v409 = vld [vmem:[%s298 + $0x90] sm:$0xff]
      %v410 = vld [vmem:[%s298 + $0x98] sm:$0xff]
      %v411 = vld [vmem:[%s298 + $0xa0] sm:$0xff]
      %v412 = vld [vmem:[%s298 + $0xa8] sm:$0xff]
      %v413 = vld [vmem:[%s298 + $0xb0] sm:$0xff]
      %v414 = vld [vmem:[%s298 + $0xb8] sm:$0xff]
      %v415 = vld [vmem:[%s298 + $0xc0] sm:$0xff]
      %v416 = vld [vmem:[%s298 + $0xc8] sm:$0xff]
      %v417 = vld [vmem:[%s298 + $0xd0] sm:$0xff]
      %v418 = vld [vmem:[%s298 + $0xd8] sm:$0xff]
      %v419 = vld [vmem:[%s298 + $0xe0] sm:$0xff]
      %v420 = vld [vmem:[%s298 + $0xe8] sm:$0xff]
      %v421 = vld [vmem:[%s298 + $0xf0] sm:$0xff]
      %v422 = vld [vmem:[%s298 + $0xf8] sm:$0xff]
      %v423 = vld [vmem:[%s303] sm:$0x3]
      %v424 = vld [vmem:[%s308] sm:$0x3]
      %426 = vset.pattern.permute.xlu0 0
      %427 = vperm.xlu0 %426, %v359
      %v428 = vpop.permute.xlu0 %427
      %431 = vset.pattern.permute.xlu0 0
      %432 = vperm.xlu0 %431, %v360
      %v433 = vpop.permute.xlu0 %432
      %436 = vset.pattern.permute.xlu0 0
      %437 = vperm.xlu0 %436, %v361
      %v438 = vpop.permute.xlu0 %437
      %441 = vset.pattern.permute.xlu0 0
      %442 = vperm.xlu0 %441, %v362
      %v443 = vpop.permute.xlu0 %442
      %446 = vset.pattern.permute.xlu0 0
      %447 = vperm.xlu0 %446, %v363
      %v448 = vpop.permute.xlu0 %447
      %451 = vset.pattern.permute.xlu0 0
      %452 = vperm.xlu0 %451, %v364
      %v453 = vpop.permute.xlu0 %452
      %456 = vset.pattern.permute.xlu0 0
      %457 = vperm.xlu0 %456, %v365
      %v458 = vpop.permute.xlu0 %457
      %461 = vset.pattern.permute.xlu0 0
      %462 = vperm.xlu0 %461, %v366
      %v463 = vpop.permute.xlu0 %462
      %466 = vset.pattern.permute.xlu0 0
      %467 = vperm.xlu0 %466, %v367
      %v468 = vpop.permute.xlu0 %467
      %471 = vset.pattern.permute.xlu0 0
      %472 = vperm.xlu0 %471, %v368
      %v473 = vpop.permute.xlu0 %472
      %476 = vset.pattern.permute.xlu0 0
      %477 = vperm.xlu0 %476, %v369
      %v478 = vpop.permute.xlu0 %477
      %481 = vset.pattern.permute.xlu0 0
      %482 = vperm.xlu0 %481, %v370
      %v483 = vpop.permute.xlu0 %482
      %486 = vset.pattern.permute.xlu0 0
      %487 = vperm.xlu0 %486, %v371
      %v488 = vpop.permute.xlu0 %487
      %491 = vset.pattern.permute.xlu0 0
      %492 = vperm.xlu0 %491, %v372
      %v493 = vpop.permute.xlu0 %492
      %496 = vset.pattern.permute.xlu0 0
      %497 = vperm.xlu0 %496, %v373
      %v498 = vpop.permute.xlu0 %497
      %501 = vset.pattern.permute.xlu0 0
      %502 = vperm.xlu0 %501, %v374
      %v503 = vpop.permute.xlu0 %502
      %506 = vset.pattern.permute.xlu0 0
      %507 = vperm.xlu0 %506, %v375
      %v508 = vpop.permute.xlu0 %507
      %511 = vset.pattern.permute.xlu0 0
      %512 = vperm.xlu0 %511, %v376
      %v513 = vpop.permute.xlu0 %512
      %516 = vset.pattern.permute.xlu0 0
      %517 = vperm.xlu0 %516, %v377
      %v518 = vpop.permute.xlu0 %517
      %521 = vset.pattern.permute.xlu0 0
      %522 = vperm.xlu0 %521, %v378
      %v523 = vpop.permute.xlu0 %522
      %526 = vset.pattern.permute.xlu0 0
      %527 = vperm.xlu0 %526, %v379
      %v528 = vpop.permute.xlu0 %527
      %531 = vset.pattern.permute.xlu0 0
      %532 = vperm.xlu0 %531, %v380
      %v533 = vpop.permute.xlu0 %532
      %536 = vset.pattern.permute.xlu0 0
      %537 = vperm.xlu0 %536, %v381
      %v538 = vpop.permute.xlu0 %537
      %541 = vset.pattern.permute.xlu0 0
      %542 = vperm.xlu0 %541, %v382
      %v543 = vpop.permute.xlu0 %542
      %546 = vset.pattern.permute.xlu0 0
      %547 = vperm.xlu0 %546, %v383
      %v548 = vpop.permute.xlu0 %547
      %551 = vset.pattern.permute.xlu0 0
      %552 = vperm.xlu0 %551, %v384
      %v553 = vpop.permute.xlu0 %552
      %556 = vset.pattern.permute.xlu0 0
      %557 = vperm.xlu0 %556, %v385
      %v558 = vpop.permute.xlu0 %557
      %561 = vset.pattern.permute.xlu0 0
      %562 = vperm.xlu0 %561, %v386
      %v563 = vpop.permute.xlu0 %562
      %566 = vset.pattern.permute.xlu0 0
      %567 = vperm.xlu0 %566, %v387
      %v568 = vpop.permute.xlu0 %567
      %571 = vset.pattern.permute.xlu0 0
      %572 = vperm.xlu0 %571, %v388
      %v573 = vpop.permute.xlu0 %572
      %576 = vset.pattern.permute.xlu0 0
      %577 = vperm.xlu0 %576, %v389
      %v578 = vpop.permute.xlu0 %577
      %581 = vset.pattern.permute.xlu0 0
      %582 = vperm.xlu0 %581, %v390
      %v583 = vpop.permute.xlu0 %582
      %v586 = vlaneseq
      %v587 = vshrl.u32 %v586, 7
      %v588 = vsub.s32 0, %v587
      %v589 = vrot.slane %v423, %v588
      %v590 = vlaneseq
      %v591 = vshrl.u32 %v590, 7
      %v592 = vsub.s32 1, %v591
      %v593 = vrot.slane %v423, %v592
      %v596 = vsub.f32 %v428, %v589
      %v597 = vsub.f32 %v428, %v593
      %v598 = vsub.f32 %v433, %v589
      %v599 = vsub.f32 %v433, %v593
      %v600 = vsub.f32 %v438, %v589
      %v601 = vsub.f32 %v438, %v593
      %v602 = vsub.f32 %v443, %v589
      %v603 = vsub.f32 %v443, %v593
      %v604 = vsub.f32 %v448, %v589
      %v605 = vsub.f32 %v448, %v593
      %v606 = vsub.f32 %v453, %v589
      %v607 = vsub.f32 %v453, %v593
      %v608 = vsub.f32 %v458, %v589
      %v609 = vsub.f32 %v458, %v593
      %v610 = vsub.f32 %v463, %v589
      %v611 = vsub.f32 %v463, %v593
      %v612 = vsub.f32 %v468, %v589
      %v613 = vsub.f32 %v468, %v593
      %v614 = vsub.f32 %v473, %v589
      %v615 = vsub.f32 %v473, %v593
      %v616 = vsub.f32 %v478, %v589
      %v617 = vsub.f32 %v478, %v593
      %v618 = vsub.f32 %v483, %v589
      %v619 = vsub.f32 %v483, %v593
      %v620 = vsub.f32 %v488, %v589
      %v621 = vsub.f32 %v488, %v593
      %v622 = vsub.f32 %v493, %v589
      %v623 = vsub.f32 %v493, %v593
      %v624 = vsub.f32 %v498, %v589
      %v625 = vsub.f32 %v498, %v593
      %v626 = vsub.f32 %v503, %v589
      %v627 = vsub.f32 %v503, %v593
      %v628 = vsub.f32 %v508, %v589
      %v629 = vsub.f32 %v508, %v593
      %v630 = vsub.f32 %v513, %v589
      %v631 = vsub.f32 %v513, %v593
      %v632 = vsub.f32 %v518, %v589
      %v633 = vsub.f32 %v518, %v593
      %v634 = vsub.f32 %v523, %v589
      %v635 = vsub.f32 %v523, %v593
      %v636 = vsub.f32 %v528, %v589
      %v637 = vsub.f32 %v528, %v593
      %v638 = vsub.f32 %v533, %v589
      %v639 = vsub.f32 %v533, %v593
      %v640 = vsub.f32 %v538, %v589
      %v641 = vsub.f32 %v538, %v593
      %v642 = vsub.f32 %v543, %v589
      %v643 = vsub.f32 %v543, %v593
      %v644 = vsub.f32 %v548, %v589
      %v645 = vsub.f32 %v548, %v593
      %v646 = vsub.f32 %v553, %v589
      %v647 = vsub.f32 %v553, %v593
      %v648 = vsub.f32 %v558, %v589
      %v649 = vsub.f32 %v558, %v593
      %v650 = vsub.f32 %v563, %v589
      %v651 = vsub.f32 %v563, %v593
      %v652 = vsub.f32 %v568, %v589
      %v653 = vsub.f32 %v568, %v593
      %v654 = vsub.f32 %v573, %v589
      %v655 = vsub.f32 %v573, %v593
      %v656 = vsub.f32 %v578, %v589
      %v657 = vsub.f32 %v578, %v593
      %v658 = vsub.f32 %v583, %v589
      %v659 = vsub.f32 %v583, %v593
      %661 = vset.pattern.permute.xlu0 0
      %662 = vperm.xlu0 %661, %v391
      %v663 = vpop.permute.xlu0 %662
      %666 = vset.pattern.permute.xlu0 0
      %667 = vperm.xlu0 %666, %v392
      %v668 = vpop.permute.xlu0 %667
      %671 = vset.pattern.permute.xlu0 0
      %672 = vperm.xlu0 %671, %v393
      %v673 = vpop.permute.xlu0 %672
      %676 = vset.pattern.permute.xlu0 0
      %677 = vperm.xlu0 %676, %v394
      %v678 = vpop.permute.xlu0 %677
      %681 = vset.pattern.permute.xlu0 0
      %682 = vperm.xlu0 %681, %v395
      %v683 = vpop.permute.xlu0 %682
      %686 = vset.pattern.permute.xlu0 0
      %687 = vperm.xlu0 %686, %v396
      %v688 = vpop.permute.xlu0 %687
      %691 = vset.pattern.permute.xlu0 0
      %692 = vperm.xlu0 %691, %v397
      %v693 = vpop.permute.xlu0 %692
      %696 = vset.pattern.permute.xlu0 0
      %697 = vperm.xlu0 %696, %v398
      %v698 = vpop.permute.xlu0 %697
      %701 = vset.pattern.permute.xlu0 0
      %702 = vperm.xlu0 %701, %v399
      %v703 = vpop.permute.xlu0 %702
      %706 = vset.pattern.permute.xlu0 0
      %707 = vperm.xlu0 %706, %v400
      %v708 = vpop.permute.xlu0 %707
      %711 = vset.pattern.permute.xlu0 0
      %712 = vperm.xlu0 %711, %v401
      %v713 = vpop.permute.xlu0 %712
      %716 = vset.pattern.permute.xlu0 0
      %717 = vperm.xlu0 %716, %v402
      %v718 = vpop.permute.xlu0 %717
      %721 = vset.pattern.permute.xlu0 0
      %722 = vperm.xlu0 %721, %v403
      %v723 = vpop.permute.xlu0 %722
      %726 = vset.pattern.permute.xlu0 0
      %727 = vperm.xlu0 %726, %v404
      %v728 = vpop.permute.xlu0 %727
      %731 = vset.pattern.permute.xlu0 0
      %732 = vperm.xlu0 %731, %v405
      %v733 = vpop.permute.xlu0 %732
      %736 = vset.pattern.permute.xlu0 0
      %737 = vperm.xlu0 %736, %v406
      %v738 = vpop.permute.xlu0 %737
      %741 = vset.pattern.permute.xlu0 0
      %742 = vperm.xlu0 %741, %v407
      %v743 = vpop.permute.xlu0 %742
      %746 = vset.pattern.permute.xlu0 0
      %747 = vperm.xlu0 %746, %v408
      %v748 = vpop.permute.xlu0 %747
      %751 = vset.pattern.permute.xlu0 0
      %752 = vperm.xlu0 %751, %v409
      %v753 = vpop.permute.xlu0 %752
      %756 = vset.pattern.permute.xlu0 0
      %757 = vperm.xlu0 %756, %v410
      %v758 = vpop.permute.xlu0 %757
      %761 = vset.pattern.permute.xlu0 0
      %762 = vperm.xlu0 %761, %v411
      %v763 = vpop.permute.xlu0 %762
      %766 = vset.pattern.permute.xlu0 0
      %767 = vperm.xlu0 %766, %v412
      %v768 = vpop.permute.xlu0 %767
      %771 = vset.pattern.permute.xlu0 0
      %772 = vperm.xlu0 %771, %v413
      %v773 = vpop.permute.xlu0 %772
      %776 = vset.pattern.permute.xlu0 0
      %777 = vperm.xlu0 %776, %v414
      %v778 = vpop.permute.xlu0 %777
      %781 = vset.pattern.permute.xlu0 0
      %782 = vperm.xlu0 %781, %v415
      %v783 = vpop.permute.xlu0 %782
      %786 = vset.pattern.permute.xlu0 0
      %787 = vperm.xlu0 %786, %v416
      %v788 = vpop.permute.xlu0 %787
      %791 = vset.pattern.permute.xlu0 0
      %792 = vperm.xlu0 %791, %v417
      %v793 = vpop.permute.xlu0 %792
      %796 = vset.pattern.permute.xlu0 0
      %797 = vperm.xlu0 %796, %v418
      %v798 = vpop.permute.xlu0 %797
      %801 = vset.pattern.permute.xlu0 0
      %802 = vperm.xlu0 %801, %v419
      %v803 = vpop.permute.xlu0 %802
      %806 = vset.pattern.permute.xlu0 0
      %807 = vperm.xlu0 %806, %v420
      %v808 = vpop.permute.xlu0 %807
      %811 = vset.pattern.permute.xlu0 0
      %812 = vperm.xlu0 %811, %v421
      %v813 = vpop.permute.xlu0 %812
      %816 = vset.pattern.permute.xlu0 0
      %817 = vperm.xlu0 %816, %v422
      %v818 = vpop.permute.xlu0 %817
      %v821 = vlaneseq
      %v822 = vshrl.u32 %v821, 7
      %v823 = vsub.s32 0, %v822
      %v824 = vrot.slane %v424, %v823
      %v825 = vlaneseq
      %v826 = vshrl.u32 %v825, 7
      %v827 = vsub.s32 1, %v826
      %v828 = vrot.slane %v424, %v827
      %v831 = vsub.f32 %v663, %v824
      %v832 = vsub.f32 %v663, %v828
      %v833 = vsub.f32 %v668, %v824
      %v834 = vsub.f32 %v668, %v828
      %v835 = vsub.f32 %v673, %v824
      %v836 = vsub.f32 %v673, %v828
      %v837 = vsub.f32 %v678, %v824
      %v838 = vsub.f32 %v678, %v828
      %v839 = vsub.f32 %v683, %v824
      %v840 = vsub.f32 %v683, %v828
      %v841 = vsub.f32 %v688, %v824
      %v842 = vsub.f32 %v688, %v828
      %v843 = vsub.f32 %v693, %v824
      %v844 = vsub.f32 %v693, %v828
      %v845 = vsub.f32 %v698, %v824
      %v846 = vsub.f32 %v698, %v828
      %v847 = vsub.f32 %v703, %v824
      %v848 = vsub.f32 %v703, %v828
      %v849 = vsub.f32 %v708, %v824
      %v850 = vsub.f32 %v708, %v828
      %v851 = vsub.f32 %v713, %v824
      %v852 = vsub.f32 %v713, %v828
      %v853 = vsub.f32 %v718, %v824
      %v854 = vsub.f32 %v718, %v828
      %v855 = vsub.f32 %v723, %v824
      %v856 = vsub.f32 %v723, %v828
      %v857 = vsub.f32 %v728, %v824
      %v858 = vsub.f32 %v728, %v828
      %v859 = vsub.f32 %v733, %v824
      %v860 = vsub.f32 %v733, %v828
      %v861 = vsub.f32 %v738, %v824
      %v862 = vsub.f32 %v738, %v828
      %v863 = vsub.f32 %v743, %v824
      %v864 = vsub.f32 %v743, %v828
      %v865 = vsub.f32 %v748, %v824
      %v866 = vsub.f32 %v748, %v828
      %v867 = vsub.f32 %v753, %v824
      %v868 = vsub.f32 %v753, %v828
      %v869 = vsub.f32 %v758, %v824
      %v870 = vsub.f32 %v758, %v828
      %v871 = vsub.f32 %v763, %v824
      %v872 = vsub.f32 %v763, %v828
      %v873 = vsub.f32 %v768, %v824
      %v874 = vsub.f32 %v768, %v828
      %v875 = vsub.f32 %v773, %v824
      %v876 = vsub.f32 %v773, %v828
      %v877 = vsub.f32 %v778, %v824
      %v878 = vsub.f32 %v778, %v828
      %v879 = vsub.f32 %v783, %v824
      %v880 = vsub.f32 %v783, %v828
      %v881 = vsub.f32 %v788, %v824
      %v882 = vsub.f32 %v788, %v828
      %v883 = vsub.f32 %v793, %v824
      %v884 = vsub.f32 %v793, %v828
      %v885 = vsub.f32 %v798, %v824
      %v886 = vsub.f32 %v798, %v828
      %v887 = vsub.f32 %v803, %v824
      %v888 = vsub.f32 %v803, %v828
      %v889 = vsub.f32 %v808, %v824
      %v890 = vsub.f32 %v808, %v828
      %v891 = vsub.f32 %v813, %v824
      %v892 = vsub.f32 %v813, %v828
      %v893 = vsub.f32 %v818, %v824
      %v894 = vsub.f32 %v818, %v828
      %v895 = vmul.f32 %v596, %v596
      %v896 = vmul.f32 %v597, %v597
      %v897 = vmul.f32 %v598, %v598
      %v898 = vmul.f32 %v599, %v599
      %v899 = vmul.f32 %v600, %v600
      %v900 = vmul.f32 %v601, %v601
      %v901 = vmul.f32 %v602, %v602
      %v902 = vmul.f32 %v603, %v603
      %v903 = vmul.f32 %v604, %v604
      %v904 = vmul.f32 %v605, %v605
      %v905 = vmul.f32 %v606, %v606
      %v906 = vmul.f32 %v607, %v607
      %v907 = vmul.f32 %v608, %v608
      %v908 = vmul.f32 %v609, %v609
      %v909 = vmul.f32 %v610, %v610
      %v910 = vmul.f32 %v611, %v611
      %v911 = vmul.f32 %v612, %v612
      %v912 = vmul.f32 %v613, %v613
      %v913 = vmul.f32 %v614, %v614
      %v914 = vmul.f32 %v615, %v615
      %v915 = vmul.f32 %v616, %v616
      %v916 = vmul.f32 %v617, %v617
      %v917 = vmul.f32 %v618, %v618
      %v918 = vmul.f32 %v619, %v619
      %v919 = vmul.f32 %v620, %v620
      %v920 = vmul.f32 %v621, %v621
      %v921 = vmul.f32 %v622, %v622
      %v922 = vmul.f32 %v623, %v623
      %v923 = vmul.f32 %v624, %v624
      %v924 = vmul.f32 %v625, %v625
      %v925 = vmul.f32 %v626, %v626
      %v926 = vmul.f32 %v627, %v627
      %v927 = vmul.f32 %v628, %v628
      %v928 = vmul.f32 %v629, %v629
      %v929 = vmul.f32 %v630, %v630
      %v930 = vmul.f32 %v631, %v631
      %v931 = vmul.f32 %v632, %v632
      %v932 = vmul.f32 %v633, %v633
      %v933 = vmul.f32 %v634, %v634
      %v934 = vmul.f32 %v635, %v635
      %v935 = vmul.f32 %v636, %v636
      %v936 = vmul.f32 %v637, %v637
      %v937 = vmul.f32 %v638, %v638
      %v938 = vmul.f32 %v639, %v639
      %v939 = vmul.f32 %v640, %v640
      %v940 = vmul.f32 %v641, %v641
      %v941 = vmul.f32 %v642, %v642
      %v942 = vmul.f32 %v643, %v643
      %v943 = vmul.f32 %v644, %v644
      %v944 = vmul.f32 %v645, %v645
      %v945 = vmul.f32 %v646, %v646
      %v946 = vmul.f32 %v647, %v647
      %v947 = vmul.f32 %v648, %v648
      %v948 = vmul.f32 %v649, %v649
      %v949 = vmul.f32 %v650, %v650
      %v950 = vmul.f32 %v651, %v651
      %v951 = vmul.f32 %v652, %v652
      %v952 = vmul.f32 %v653, %v653
      %v953 = vmul.f32 %v654, %v654
      %v954 = vmul.f32 %v655, %v655
      %v955 = vmul.f32 %v656, %v656
      %v956 = vmul.f32 %v657, %v657
      %v957 = vmul.f32 %v658, %v658
      %v958 = vmul.f32 %v659, %v659
      %v959 = vmul.f32 %v831, %v831
      %v960 = vmul.f32 %v832, %v832
      %v961 = vmul.f32 %v833, %v833
      %v962 = vmul.f32 %v834, %v834
      %v963 = vmul.f32 %v835, %v835
      %v964 = vmul.f32 %v836, %v836
      %v965 = vmul.f32 %v837, %v837
      %v966 = vmul.f32 %v838, %v838
      %v967 = vmul.f32 %v839, %v839
      %v968 = vmul.f32 %v840, %v840
      %v969 = vmul.f32 %v841, %v841
      %v970 = vmul.f32 %v842, %v842
      %v971 = vmul.f32 %v843, %v843
      %v972 = vmul.f32 %v844, %v844
      %v973 = vmul.f32 %v845, %v845
      %v974 = vmul.f32 %v846, %v846
      %v975 = vmul.f32 %v847, %v847
      %v976 = vmul.f32 %v848, %v848
      %v977 = vmul.f32 %v849, %v849
      %v978 = vmul.f32 %v850, %v850
      %v979 = vmul.f32 %v851, %v851
      %v980 = vmul.f32 %v852, %v852
      %v981 = vmul.f32 %v853, %v853
      %v982 = vmul.f32 %v854, %v854
      %v983 = vmul.f32 %v855, %v855
      %v984 = vmul.f32 %v856, %v856
      %v985 = vmul.f32 %v857, %v857
      %v986 = vmul.f32 %v858, %v858
      %v987 = vmul.f32 %v859, %v859
      %v988 = vmul.f32 %v860, %v860
      %v989 = vmul.f32 %v861, %v861
      %v990 = vmul.f32 %v862, %v862
      %v991 = vmul.f32 %v863, %v863
      %v992 = vmul.f32 %v864, %v864
      %v993 = vmul.f32 %v865, %v865
      %v994 = vmul.f32 %v866, %v866
      %v995 = vmul.f32 %v867, %v867
      %v996 = vmul.f32 %v868, %v868
      %v997 = vmul.f32 %v869, %v869
      %v998 = vmul.f32 %v870, %v870
      %v999 = vmul.f32 %v871, %v871
      %v1000 = vmul.f32 %v872, %v872
      %v1001 = vmul.f32 %v873, %v873
      %v1002 = vmul.f32 %v874, %v874
      %v1003 = vmul.f32 %v875, %v875
      %v1004 = vmul.f32 %v876, %v876
      %v1005 = vmul.f32 %v877, %v877
      %v1006 = vmul.f32 %v878, %v878
      %v1007 = vmul.f32 %v879, %v879
      %v1008 = vmul.f32 %v880, %v880
      %v1009 = vmul.f32 %v881, %v881
      %v1010 = vmul.f32 %v882, %v882
      %v1011 = vmul.f32 %v883, %v883
      %v1012 = vmul.f32 %v884, %v884
      %v1013 = vmul.f32 %v885, %v885
      %v1014 = vmul.f32 %v886, %v886
      %v1015 = vmul.f32 %v887, %v887
      %v1016 = vmul.f32 %v888, %v888
      %v1017 = vmul.f32 %v889, %v889
      %v1018 = vmul.f32 %v890, %v890
      %v1019 = vmul.f32 %v891, %v891
      %v1020 = vmul.f32 %v892, %v892
      %v1021 = vmul.f32 %v893, %v893
      %v1022 = vmul.f32 %v894, %v894
      %v1023 = vadd.f32 %v895, %v959
      %v1024 = vadd.f32 %v896, %v960
      %v1025 = vadd.f32 %v897, %v961
      %v1026 = vadd.f32 %v898, %v962
      %v1027 = vadd.f32 %v899, %v963
      %v1028 = vadd.f32 %v900, %v964
      %v1029 = vadd.f32 %v901, %v965
      %v1030 = vadd.f32 %v902, %v966
      %v1031 = vadd.f32 %v903, %v967
      %v1032 = vadd.f32 %v904, %v968
      %v1033 = vadd.f32 %v905, %v969
      %v1034 = vadd.f32 %v906, %v970
      %v1035 = vadd.f32 %v907, %v971
      %v1036 = vadd.f32 %v908, %v972
      %v1037 = vadd.f32 %v909, %v973
      %v1038 = vadd.f32 %v910, %v974
      %v1039 = vadd.f32 %v911, %v975
      %v1040 = vadd.f32 %v912, %v976
      %v1041 = vadd.f32 %v913, %v977
      %v1042 = vadd.f32 %v914, %v978
      %v1043 = vadd.f32 %v915, %v979
      %v1044 = vadd.f32 %v916, %v980
      %v1045 = vadd.f32 %v917, %v981
      %v1046 = vadd.f32 %v918, %v982
      %v1047 = vadd.f32 %v919, %v983
      %v1048 = vadd.f32 %v920, %v984
      %v1049 = vadd.f32 %v921, %v985
      %v1050 = vadd.f32 %v922, %v986
      %v1051 = vadd.f32 %v923, %v987
      %v1052 = vadd.f32 %v924, %v988
      %v1053 = vadd.f32 %v925, %v989
      %v1054 = vadd.f32 %v926, %v990
      %v1055 = vadd.f32 %v927, %v991
      %v1056 = vadd.f32 %v928, %v992
      %v1057 = vadd.f32 %v929, %v993
      %v1058 = vadd.f32 %v930, %v994
      %v1059 = vadd.f32 %v931, %v995
      %v1060 = vadd.f32 %v932, %v996
      %v1061 = vadd.f32 %v933, %v997
      %v1062 = vadd.f32 %v934, %v998
      %v1063 = vadd.f32 %v935, %v999
      %v1064 = vadd.f32 %v936, %v1000
      %v1065 = vadd.f32 %v937, %v1001
      %v1066 = vadd.f32 %v938, %v1002
      %v1067 = vadd.f32 %v939, %v1003
      %v1068 = vadd.f32 %v940, %v1004
      %v1069 = vadd.f32 %v941, %v1005
      %v1070 = vadd.f32 %v942, %v1006
      %v1071 = vadd.f32 %v943, %v1007
      %v1072 = vadd.f32 %v944, %v1008
      %v1073 = vadd.f32 %v945, %v1009
      %v1074 = vadd.f32 %v946, %v1010
      %v1075 = vadd.f32 %v947, %v1011
      %v1076 = vadd.f32 %v948, %v1012
      %v1077 = vadd.f32 %v949, %v1013
      %v1078 = vadd.f32 %v950, %v1014
      %v1079 = vadd.f32 %v951, %v1015
      %v1080 = vadd.f32 %v952, %v1016
      %v1081 = vadd.f32 %v953, %v1017
      %v1082 = vadd.f32 %v954, %v1018
      %v1083 = vadd.f32 %v955, %v1019
      %v1084 = vadd.f32 %v956, %v1020
      %v1085 = vadd.f32 %v957, %v1021
      %v1086 = vadd.f32 %v958, %v1022
      %v1087 = vsub.f32 0.0, %v1023
      %v1088 = vsub.f32 0.0, %v1024
      %v1089 = vsub.f32 0.0, %v1025
      %v1090 = vsub.f32 0.0, %v1026
      %v1091 = vsub.f32 0.0, %v1027
      %v1092 = vsub.f32 0.0, %v1028
      %v1093 = vsub.f32 0.0, %v1029
      %v1094 = vsub.f32 0.0, %v1030
      %v1095 = vsub.f32 0.0, %v1031
      %v1096 = vsub.f32 0.0, %v1032
      %v1097 = vsub.f32 0.0, %v1033
      %v1098 = vsub.f32 0.0, %v1034
      %v1099 = vsub.f32 0.0, %v1035
      %v1100 = vsub.f32 0.0, %v1036
      %v1101 = vsub.f32 0.0, %v1037
      %v1102 = vsub.f32 0.0, %v1038
      %v1103 = vsub.f32 0.0, %v1039
      %v1104 = vsub.f32 0.0, %v1040
      %v1105 = vsub.f32 0.0, %v1041
      %v1106 = vsub.f32 0.0, %v1042
      %v1107 = vsub.f32 0.0, %v1043
      %v1108 = vsub.f32 0.0, %v1044
      %v1109 = vsub.f32 0.0, %v1045
      %v1110 = vsub.f32 0.0, %v1046
      %v1111 = vsub.f32 0.0, %v1047
      %v1112 = vsub.f32 0.0, %v1048
      %v1113 = vsub.f32 0.0, %v1049
      %v1114 = vsub.f32 0.0, %v1050
      %v1115 = vsub.f32 0.0, %v1051
      %v1116 = vsub.f32 0.0, %v1052
      %v1117 = vsub.f32 0.0, %v1053
      %v1118 = vsub.f32 0.0, %v1054
      %v1119 = vsub.f32 0.0, %v1055
      %v1120 = vsub.f32 0.0, %v1056
      %v1121 = vsub.f32 0.0, %v1057
      %v1122 = vsub.f32 0.0, %v1058
      %v1123 = vsub.f32 0.0, %v1059
      %v1124 = vsub.f32 0.0, %v1060
      %v1125 = vsub.f32 0.0, %v1061
      %v1126 = vsub.f32 0.0, %v1062
      %v1127 = vsub.f32 0.0, %v1063
      %v1128 = vsub.f32 0.0, %v1064
      %v1129 = vsub.f32 0.0, %v1065
      %v1130 = vsub.f32 0.0, %v1066
      %v1131 = vsub.f32 0.0, %v1067
      %v1132 = vsub.f32 0.0, %v1068
      %v1133 = vsub.f32 0.0, %v1069
      %v1134 = vsub.f32 0.0, %v1070
      %v1135 = vsub.f32 0.0, %v1071
      %v1136 = vsub.f32 0.0, %v1072
      %v1137 = vsub.f32 0.0, %v1073
      %v1138 = vsub.f32 0.0, %v1074
      %v1139 = vsub.f32 0.0, %v1075
      %v1140 = vsub.f32 0.0, %v1076
      %v1141 = vsub.f32 0.0, %v1077
      %v1142 = vsub.f32 0.0, %v1078
      %v1143 = vsub.f32 0.0, %v1079
      %v1144 = vsub.f32 0.0, %v1080
      %v1145 = vsub.f32 0.0, %v1081
      %v1146 = vsub.f32 0.0, %v1082
      %v1147 = vsub.f32 0.0, %v1083
      %v1148 = vsub.f32 0.0, %v1084
      %v1149 = vsub.f32 0.0, %v1085
      %v1150 = vsub.f32 0.0, %v1086
      %v1151 = vmul.f32 %v1087, 1.442695
      %v1152 = vpow.pop %v1151
      %v1153 = vmul.f32 %v1088, 1.442695
      %v1154 = vpow.pop %v1153
      %v1155 = vmul.f32 %v1089, 1.442695
      %v1156 = vpow.pop %v1155
      %v1157 = vmul.f32 %v1090, 1.442695
      %v1158 = vpow.pop %v1157
      %v1159 = vmul.f32 %v1091, 1.442695
      %v1160 = vpow.pop %v1159
      %v1161 = vmul.f32 %v1092, 1.442695
      %v1162 = vpow.pop %v1161
      %v1163 = vmul.f32 %v1093, 1.442695
      %v1164 = vpow.pop %v1163
      %v1165 = vmul.f32 %v1094, 1.442695
      %v1166 = vpow.pop %v1165
      %v1167 = vmul.f32 %v1095, 1.442695
      %v1168 = vpow.pop %v1167
      %v1169 = vmul.f32 %v1096, 1.442695
      %v1170 = vpow.pop %v1169
      %v1171 = vmul.f32 %v1097, 1.442695
      %v1172 = vpow.pop %v1171
      %v1173 = vmul.f32 %v1098, 1.442695
      %v1174 = vpow.pop %v1173
      %v1175 = vmul.f32 %v1099, 1.442695
      %v1176 = vpow.pop %v1175
      %v1177 = vmul.f32 %v1100, 1.442695
      %v1178 = vpow.pop %v1177
      %v1179 = vmul.f32 %v1101, 1.442695
      %v1180 = vpow.pop %v1179
      %v1181 = vmul.f32 %v1102, 1.442695
      %v1182 = vpow.pop %v1181
      %v1183 = vmul.f32 %v1103, 1.442695
      %v1184 = vpow.pop %v1183
      %v1185 = vmul.f32 %v1104, 1.442695
      %v1186 = vpow.pop %v1185
      %v1187 = vmul.f32 %v1105, 1.442695
      %v1188 = vpow.pop %v1187
      %v1189 = vmul.f32 %v1106, 1.442695
      %v1190 = vpow.pop %v1189
      %v1191 = vmul.f32 %v1107, 1.442695
      %v1192 = vpow.pop %v1191
      %v1193 = vmul.f32 %v1108, 1.442695
      %v1194 = vpow.pop %v1193
      %v1195 = vmul.f32 %v1109, 1.442695
      %v1196 = vpow.pop %v1195
      %v1197 = vmul.f32 %v1110, 1.442695
      %v1198 = vpow.pop %v1197
      %v1199 = vmul.f32 %v1111, 1.442695
      %v1200 = vpow.pop %v1199
      %v1201 = vmul.f32 %v1112, 1.442695
      %v1202 = vpow.pop %v1201
      %v1203 = vmul.f32 %v1113, 1.442695
      %v1204 = vpow.pop %v1203
      %v1205 = vmul.f32 %v1114, 1.442695
      %v1206 = vpow.pop %v1205
      %v1207 = vmul.f32 %v1115, 1.442695
      %v1208 = vpow.pop %v1207
      %v1209 = vmul.f32 %v1116, 1.442695
      %v1210 = vpow.pop %v1209
      %v1211 = vmul.f32 %v1117, 1.442695
      %v1212 = vpow.pop %v1211
      %v1213 = vmul.f32 %v1118, 1.442695
      %v1214 = vpow.pop %v1213
      %v1215 = vmul.f32 %v1119, 1.442695
      %v1216 = vpow.pop %v1215
      %v1217 = vmul.f32 %v1120, 1.442695
      %v1218 = vpow.pop %v1217
      %v1219 = vmul.f32 %v1121, 1.442695
      %v1220 = vpow.pop %v1219
      %v1221 = vmul.f32 %v1122, 1.442695
      %v1222 = vpow.pop %v1221
      %v1223 = vmul.f32 %v1123, 1.442695
      %v1224 = vpow.pop %v1223
      %v1225 = vmul.f32 %v1124, 1.442695
      %v1226 = vpow.pop %v1225
      %v1227 = vmul.f32 %v1125, 1.442695
      %v1228 = vpow.pop %v1227
      %v1229 = vmul.f32 %v1126, 1.442695
      %v1230 = vpow.pop %v1229
      %v1231 = vmul.f32 %v1127, 1.442695
      %v1232 = vpow.pop %v1231
      %v1233 = vmul.f32 %v1128, 1.442695
      %v1234 = vpow.pop %v1233
      %v1235 = vmul.f32 %v1129, 1.442695
      %v1236 = vpow.pop %v1235
      %v1237 = vmul.f32 %v1130, 1.442695
      %v1238 = vpow.pop %v1237
      %v1239 = vmul.f32 %v1131, 1.442695
      %v1240 = vpow.pop %v1239
      %v1241 = vmul.f32 %v1132, 1.442695
      %v1242 = vpow.pop %v1241
      %v1243 = vmul.f32 %v1133, 1.442695
      %v1244 = vpow.pop %v1243
      %v1245 = vmul.f32 %v1134, 1.442695
      %v1246 = vpow.pop %v1245
      %v1247 = vmul.f32 %v1135, 1.442695
      %v1248 = vpow.pop %v1247
      %v1249 = vmul.f32 %v1136, 1.442695
      %v1250 = vpow.pop %v1249
      %v1251 = vmul.f32 %v1137, 1.442695
      %v1252 = vpow.pop %v1251
      %v1253 = vmul.f32 %v1138, 1.442695
      %v1254 = vpow.pop %v1253
      %v1255 = vmul.f32 %v1139, 1.442695
      %v1256 = vpow.pop %v1255
      %v1257 = vmul.f32 %v1140, 1.442695
      %v1258 = vpow.pop %v1257
      %v1259 = vmul.f32 %v1141, 1.442695
      %v1260 = vpow.pop %v1259
      %v1261 = vmul.f32 %v1142, 1.442695
      %v1262 = vpow.pop %v1261
      %v1263 = vmul.f32 %v1143, 1.442695
      %v1264 = vpow.pop %v1263
      %v1265 = vmul.f32 %v1144, 1.442695
      %v1266 = vpow.pop %v1265
      %v1267 = vmul.f32 %v1145, 1.442695
      %v1268 = vpow.pop %v1267
      %v1269 = vmul.f32 %v1146, 1.442695
      %v1270 = vpow.pop %v1269
      %v1271 = vmul.f32 %v1147, 1.442695
      %v1272 = vpow.pop %v1271
      %v1273 = vmul.f32 %v1148, 1.442695
      %v1274 = vpow.pop %v1273
      %v1275 = vmul.f32 %v1149, 1.442695
      %v1276 = vpow.pop %v1275
      %v1277 = vmul.f32 %v1150, 1.442695
      %v1278 = vpow.pop %v1277
      %v1279 = vld [vmem:[%s320] sm:$0xff]
      %v1280 = vld [vmem:[%s320 + $0x8] sm:$0xff]
      %v1281 = vld [vmem:[%s320 + $0x10] sm:$0xff]
      %v1282 = vld [vmem:[%s320 + $0x18] sm:$0xff]
      %v1283 = vld [vmem:[%s320 + $0x20] sm:$0xff]
      %v1284 = vld [vmem:[%s320 + $0x28] sm:$0xff]
      %v1285 = vld [vmem:[%s320 + $0x30] sm:$0xff]
      %v1286 = vld [vmem:[%s320 + $0x38] sm:$0xff]
      %v1287 = vld [vmem:[%s320 + $0x40] sm:$0xff]
      %v1288 = vld [vmem:[%s320 + $0x48] sm:$0xff]
      %v1289 = vld [vmem:[%s320 + $0x50] sm:$0xff]
      %v1290 = vld [vmem:[%s320 + $0x58] sm:$0xff]
      %v1291 = vld [vmem:[%s320 + $0x60] sm:$0xff]
      %v1292 = vld [vmem:[%s320 + $0x68] sm:$0xff]
      %v1293 = vld [vmem:[%s320 + $0x70] sm:$0xff]
      %v1294 = vld [vmem:[%s320 + $0x78] sm:$0xff]
      %v1295 = vld [vmem:[%s320 + $0x80] sm:$0xff]
      %v1296 = vld [vmem:[%s320 + $0x88] sm:$0xff]
      %v1297 = vld [vmem:[%s320 + $0x90] sm:$0xff]
      %v1298 = vld [vmem:[%s320 + $0x98] sm:$0xff]
      %v1299 = vld [vmem:[%s320 + $0xa0] sm:$0xff]
      %v1300 = vld [vmem:[%s320 + $0xa8] sm:$0xff]
      %v1301 = vld [vmem:[%s320 + $0xb0] sm:$0xff]
      %v1302 = vld [vmem:[%s320 + $0xb8] sm:$0xff]
      %v1303 = vld [vmem:[%s320 + $0xc0] sm:$0xff]
      %v1304 = vld [vmem:[%s320 + $0xc8] sm:$0xff]
      %v1305 = vld [vmem:[%s320 + $0xd0] sm:$0xff]
      %v1306 = vld [vmem:[%s320 + $0xd8] sm:$0xff]
      %v1307 = vld [vmem:[%s320 + $0xe0] sm:$0xff]
      %v1308 = vld [vmem:[%s320 + $0xe8] sm:$0xff]
      %v1309 = vld [vmem:[%s320 + $0xf0] sm:$0xff]
      %v1310 = vld [vmem:[%s320 + $0xf8] sm:$0xff]
      %v1311 = vld [vmem:[%s314] sm:$0xff]
      %v1312 = vld [vmem:[%s314 + $0x8] sm:$0xff]
      %v1313 = vld [vmem:[%s314 + $0x10] sm:$0xff]
      %v1314 = vld [vmem:[%s314 + $0x18] sm:$0xff]
      %v1315 = vld [vmem:[%s314 + $0x20] sm:$0xff]
      %v1316 = vld [vmem:[%s314 + $0x28] sm:$0xff]
      %v1317 = vld [vmem:[%s314 + $0x30] sm:$0xff]
      %v1318 = vld [vmem:[%s314 + $0x38] sm:$0xff]
      %v1319 = vld [vmem:[%s314 + $0x40] sm:$0xff]
      %v1320 = vld [vmem:[%s314 + $0x48] sm:$0xff]
      %v1321 = vld [vmem:[%s314 + $0x50] sm:$0xff]
      %v1322 = vld [vmem:[%s314 + $0x58] sm:$0xff]
      %v1323 = vld [vmem:[%s314 + $0x60] sm:$0xff]
      %v1324 = vld [vmem:[%s314 + $0x68] sm:$0xff]
      %v1325 = vld [vmem:[%s314 + $0x70] sm:$0xff]
      %v1326 = vld [vmem:[%s314 + $0x78] sm:$0xff]
      %v1327 = vld [vmem:[%s314 + $0x80] sm:$0xff]
      %v1328 = vld [vmem:[%s314 + $0x88] sm:$0xff]
      %v1329 = vld [vmem:[%s314 + $0x90] sm:$0xff]
      %v1330 = vld [vmem:[%s314 + $0x98] sm:$0xff]
      %v1331 = vld [vmem:[%s314 + $0xa0] sm:$0xff]
      %v1332 = vld [vmem:[%s314 + $0xa8] sm:$0xff]
      %v1333 = vld [vmem:[%s314 + $0xb0] sm:$0xff]
      %v1334 = vld [vmem:[%s314 + $0xb8] sm:$0xff]
      %v1335 = vld [vmem:[%s314 + $0xc0] sm:$0xff]
      %v1336 = vld [vmem:[%s314 + $0xc8] sm:$0xff]
      %v1337 = vld [vmem:[%s314 + $0xd0] sm:$0xff]
      %v1338 = vld [vmem:[%s314 + $0xd8] sm:$0xff]
      %v1339 = vld [vmem:[%s314 + $0xe0] sm:$0xff]
      %v1340 = vld [vmem:[%s314 + $0xe8] sm:$0xff]
      %v1341 = vld [vmem:[%s314 + $0xf0] sm:$0xff]
      %v1342 = vld [vmem:[%s314 + $0xf8] sm:$0xff]
      %1343 = vmatprep.subr.mxu0 0.0
      %v1344 = vand.u32 %v1311, 4294901760
      %1345 = vmatpush1.msra.mxu0 %v1344
      %1346 = vmatprep.subr.mxu0 0.0
      %v1347 = vand.u32 %v1312, 4294901760
      %1348 = vmatpush1.msra.mxu0 %v1347
      %1349 = vmatprep.subr.mxu0 0.0
      %v1350 = vand.u32 %v1313, 4294901760
      %1351 = vmatpush1.msra.mxu0 %v1350
      %1352 = vmatprep.subr.mxu0 0.0
      %v1353 = vand.u32 %v1314, 4294901760
      %1354 = vmatpush1.msra.mxu0 %v1353
      %1355 = vmatprep.subr.mxu0 0.0
      %v1356 = vand.u32 %v1315, 4294901760
      %1357 = vmatpush1.msra.mxu0 %v1356
      %1358 = vmatprep.subr.mxu0 0.0
      %v1359 = vand.u32 %v1316, 4294901760
      %1360 = vmatpush1.msra.mxu0 %v1359
      %1361 = vmatprep.subr.mxu0 0.0
      %v1362 = vand.u32 %v1317, 4294901760
      %1363 = vmatpush1.msra.mxu0 %v1362
      %1364 = vmatprep.subr.mxu0 0.0
      %v1365 = vand.u32 %v1318, 4294901760
      %1366 = vmatpush1.msra.mxu0 %v1365
      %1367 = vmatprep.subr.mxu0 0.0
      %v1368 = vand.u32 %v1319, 4294901760
      %1369 = vmatpush1.msra.mxu0 %v1368
      %1370 = vmatprep.subr.mxu0 0.0
      %v1371 = vand.u32 %v1320, 4294901760
      %1372 = vmatpush1.msra.mxu0 %v1371
      %1373 = vmatprep.subr.mxu0 0.0
      %v1374 = vand.u32 %v1321, 4294901760
      %1375 = vmatpush1.msra.mxu0 %v1374
      %1376 = vmatprep.subr.mxu0 0.0
      %v1377 = vand.u32 %v1322, 4294901760
      %1378 = vmatpush1.msra.mxu0 %v1377
      %1379 = vmatprep.subr.mxu0 0.0
      %v1380 = vand.u32 %v1323, 4294901760
      %1381 = vmatpush1.msra.mxu0 %v1380
      %1382 = vmatprep.subr.mxu0 0.0
      %v1383 = vand.u32 %v1324, 4294901760
      %1384 = vmatpush1.msra.mxu0 %v1383
      %1385 = vmatprep.subr.mxu0 0.0
      %v1386 = vand.u32 %v1325, 4294901760
      %1387 = vmatpush1.msra.mxu0 %v1386
      %1388 = vmatprep.subr.mxu0 0.0
      %v1389 = vand.u32 %v1326, 4294901760
      %1390 = vmatpush1.msra.mxu0 %v1389
      %1391 = vmatprep.subr.mxu0 0.0
      %v1392 = vand.u32 %v1327, 4294901760
      %1393 = vmatpush1.msra.mxu0 %v1392
      %1394 = vmatprep.subr.mxu0 0.0
      %v1395 = vand.u32 %v1328, 4294901760
      %1396 = vmatpush1.msra.mxu0 %v1395
      %1397 = vmatprep.subr.mxu0 0.0
      %v1398 = vand.u32 %v1329, 4294901760
      %1399 = vmatpush1.msra.mxu0 %v1398
      %1400 = vmatprep.subr.mxu0 0.0
      %v1401 = vand.u32 %v1330, 4294901760
      %1402 = vmatpush1.msra.mxu0 %v1401
      %1403 = vmatprep.subr.mxu0 0.0
      %v1404 = vand.u32 %v1331, 4294901760
      %1405 = vmatpush1.msra.mxu0 %v1404
      %1406 = vmatprep.subr.mxu0 0.0
      %v1407 = vand.u32 %v1332, 4294901760
      %1408 = vmatpush1.msra.mxu0 %v1407
      %1409 = vmatprep.subr.mxu0 0.0
      %v1410 = vand.u32 %v1333, 4294901760
      %1411 = vmatpush1.msra.mxu0 %v1410
      %1412 = vmatprep.subr.mxu0 0.0
      %v1413 = vand.u32 %v1334, 4294901760
      %1414 = vmatpush1.msra.mxu0 %v1413
      %1415 = vmatprep.subr.mxu0 0.0
      %v1416 = vand.u32 %v1335, 4294901760
      %1417 = vmatpush1.msra.mxu0 %v1416
      %1418 = vmatprep.subr.mxu0 0.0
      %v1419 = vand.u32 %v1336, 4294901760
      %1420 = vmatpush1.msra.mxu0 %v1419
      %1421 = vmatprep.subr.mxu0 0.0
      %v1422 = vand.u32 %v1337, 4294901760
      %1423 = vmatpush1.msra.mxu0 %v1422
      %1424 = vmatprep.subr.mxu0 0.0
      %v1425 = vand.u32 %v1338, 4294901760
      %1426 = vmatpush1.msra.mxu0 %v1425
      %1427 = vmatprep.subr.mxu0 0.0
      %v1428 = vand.u32 %v1339, 4294901760
      %1429 = vmatpush1.msra.mxu0 %v1428
      %1430 = vmatprep.subr.mxu0 0.0
      %v1431 = vand.u32 %v1340, 4294901760
      %1432 = vmatpush1.msra.mxu0 %v1431
      %1433 = vmatprep.subr.mxu0 0.0
      %v1434 = vand.u32 %v1341, 4294901760
      %1435 = vmatpush1.msra.mxu0 %v1434
      %1436 = vmatprep.subr.mxu0 0.0
      %v1437 = vand.u32 %v1342, 4294901760
      %1438 = vmatpush1.msra.mxu0 %v1437
      %v1439 = vand.u32 %v1154, 4294901760
      %v1440 = vsub.f32 %v1154, %v1439
      %v1441 = vand.u32 %v1440, 4294901760
      %v1442 = vsub.f32 %v1440, %v1441
      %v1443 = vand.u32 %v1442, 4294901760
      %1444 = vmatprep.mubr.f32.mxu0 %v1443
      %v1445 = vand.u32 %v1152, 4294901760
      %v1446 = vsub.f32 %v1152, %v1445
      %v1447 = vand.u32 %v1446, 4294901760
      %v1448 = vsub.f32 %v1446, %v1447
      %v1449 = vand.u32 %v1448, 4294901760
      %1450 = vmatmul.mubr.f32.gmra.mrb[0].mxu0 %v1449
      %v1451 = vpop.f32.mrb[0].mxu0
      %v1452 = vadd.f32 0.0, %v1451
      %v1453 = vpop.f32.mrb[0].mxu0
      %v1454 = vand.u32 %v1158, 4294901760
      %v1455 = vsub.f32 %v1158, %v1454
      %v1456 = vand.u32 %v1455, 4294901760
      %v1457 = vsub.f32 %v1455, %v1456
      %v1458 = vand.u32 %v1457, 4294901760
      %1459 = vmatprep.mubr.f32.mxu0 %v1458
      %v1460 = vand.u32 %v1156, 4294901760
      %v1461 = vsub.f32 %v1156, %v1460
      %v1462 = vand.u32 %v1461, 4294901760
      %v1463 = vsub.f32 %v1461, %v1462
      %v1464 = vand.u32 %v1463, 4294901760
      %1465 = vmatmul.mubr.f32.gmra.mrb[0].mxu0 %v1464
      %v1466 = vpop.f32.mrb[0].mxu0
      %v1467 = vadd.f32 0.0, %v1466
      %v1468 = vpop.f32.mrb[0].mxu0
      %v1469 = vand.u32 %v1162, 4294901760
      %v1470 = vsub.f32 %v1162, %v1469
      %v1471 = vand.u32 %v1470, 4294901760
      %v1472 = vsub.f32 %v1470, %v1471
      %v1473 = vand.u32 %v1472, 4294901760
      %1474 = vmatprep.mubr.f32.mxu0 %v1473
      %v1475 = vand.u32 %v1160, 4294901760
      %v1476 = vsub.f32 %v1160, %v1475
      %v1477 = vand.u32 %v1476, 4294901760
      %v1478 = vsub.f32 %v1476, %v1477
      %v1479 = vand.u32 %v1478, 4294901760
      %1480 = vmatmul.mubr.f32.gmra.mrb[0].mxu0 %v1479
      %v1481 = vpop.f32.mrb[0].mxu0
      %v1482 = vadd.f32 0.0, %v1481
      %v1483 = vpop.f32.mrb[0].mxu0
      %v1484 = vand.u32 %v1166, 4294901760
      %v1485 = vsub.f32 %v1166, %v1484
      %v1486 = vand.u32 %v1485, 4294901760
      %v1487 = vsub.f32 %v1485, %v1486
      %v1488 = vand.u32 %v1487, 4294901760
      %1489 = vmatprep.mubr.f32.mxu0 %v1488
      %v1490 = vand.u32 %v1164, 4294901760
      %v1491 = vsub.f32 %v1164, %v1490
      %v1492 = vand.u32 %v1491, 4294901760
      %v1493 = vsub.f32 %v1491, %v1492
      %v1494 = vand.u32 %v1493, 4294901760
      %1495 = vmatmul.mubr.f32.gmra.mrb[0].mxu0 %v1494
      %v1496 = vpop.f32.mrb[0].mxu0
      %v1497 = vadd.f32 0.0, %v1496
      %v1498 = vpop.f32.mrb[0].mxu0
      %v1499 = vand.u32 %v1170, 4294901760
      %v1500 = vsub.f32 %v1170, %v1499
      %v1501 = vand.u32 %v1500, 4294901760
      %v1502 = vsub.f32 %v1500, %v1501
      %v1503 = vand.u32 %v1502, 4294901760
      %1504 = vmatprep.mubr.f32.mxu0 %v1503
      %v1505 = vand.u32 %v1168, 4294901760
      %v1506 = vsub.f32 %v1168, %v1505
      %v1507 = vand.u32 %v1506, 4294901760
      %v1508 = vsub.f32 %v1506, %v1507
      %v1509 = vand.u32 %v1508, 4294901760
      %1510 = vmatmul.mubr.f32.gmra.mrb[0].mxu0 %v1509
      %v1511 = vpop.f32.mrb[0].mxu0
      %v1512 = vadd.f32 0.0, %v1511
      %v1513 = vpop.f32.mrb[0].mxu0
      %v1514 = vand.u32 %v1174, 4294901760
      %v1515 = vsub.f32 %v1174, %v1514
      %v1516 = vand.u32 %v1515, 4294901760
      %v1517 = vsub.f32 %v1515, %v1516
      %v1518 = vand.u32 %v1517, 4294901760
      %1519 = vmatprep.mubr.f32.mxu0 %v1518
      %v1520 = vand.u32 %v1172, 4294901760
      %v1521 = vsub.f32 %v1172, %v1520
      %v1522 = vand.u32 %v1521, 4294901760
      %v1523 = vsub.f32 %v1521, %v1522
      %v1524 = vand.u32 %v1523, 4294901760
      %1525 = vmatmul.mubr.f32.gmra.mrb[0].mxu0 %v1524
      %v1526 = vpop.f32.mrb[0].mxu0
      %v1527 = vadd.f32 0.0, %v1526
      %v1528 = vpop.f32.mrb[0].mxu0
      %v1529 = vand.u32 %v1178, 4294901760
      %v1530 = vsub.f32 %v1178, %v1529
      %v1531 = vand.u32 %v1530, 4294901760
      %v1532 = vsub.f32 %v1530, %v1531
      %v1533 = vand.u32 %v1532, 4294901760
      %1534 = vmatprep.mubr.f32.mxu0 %v1533
      %v1535 = vand.u32 %v1176, 4294901760
      %v1536 = vsub.f32 %v1176, %v1535
      %v1537 = vand.u32 %v1536, 4294901760
      %v1538 = vsub.f32 %v1536, %v1537
      %v1539 = vand.u32 %v1538, 4294901760
      %1540 = vmatmul.mubr.f32.gmra.mrb[0].mxu0 %v1539
      %v1541 = vpop.f32.mrb[0].mxu0
      %v1542 = vadd.f32 0.0, %v1541
      %v1543 = vpop.f32.mrb[0].mxu0
      %v1544 = vand.u32 %v1182, 4294901760
      %v1545 = vsub.f32 %v1182, %v1544
      %v1546 = vand.u32 %v1545, 4294901760
      %v1547 = vsub.f32 %v1545, %v1546
      %v1548 = vand.u32 %v1547, 4294901760
      %1549 = vmatprep.mubr.f32.mxu0 %v1548
      %v1550 = vand.u32 %v1180, 4294901760
      %v1551 = vsub.f32 %v1180, %v1550
      %v1552 = vand.u32 %v1551, 4294901760
      %v1553 = vsub.f32 %v1551, %v1552
      %v1554 = vand.u32 %v1553, 4294901760
      %1555 = vmatmul.mubr.f32.gmra.mrb[0].mxu0 %v1554
      %v1556 = vpop.f32.mrb[0].mxu0
      %v1557 = vadd.f32 0.0, %v1556
      %v1558 = vpop.f32.mrb[0].mxu0
      %v1559 = vand.u32 %v1186, 4294901760
      %v1560 = vsub.f32 %v1186, %v1559
      %v1561 = vand.u32 %v1560, 4294901760
      %v1562 = vsub.f32 %v1560, %v1561
      %v1563 = vand.u32 %v1562, 4294901760
      %1564 = vmatprep.mubr.f32.mxu0 %v1563
      %v1565 = vand.u32 %v1184, 4294901760
      %v1566 = vsub.f32 %v1184, %v1565
      %v1567 = vand.u32 %v1566, 4294901760
      %v1568 = vsub.f32 %v1566, %v1567
      %v1569 = vand.u32 %v1568, 4294901760
      %1570 = vmatmul.mubr.f32.gmra.mrb[0].mxu0 %v1569
      %v1571 = vpop.f32.mrb[0].mxu0
      %v1572 = vadd.f32 0.0, %v1571
      %v1573 = vpop.f32.mrb[0].mxu0
      %v1574 = vand.u32 %v1190, 4294901760
      %v1575 = vsub.f32 %v1190, %v1574
      %v1576 = vand.u32 %v1575, 4294901760
      %v1577 = vsub.f32 %v1575, %v1576
      %v1578 = vand.u32 %v1577, 4294901760
      %1579 = vmatprep.mubr.f32.mxu0 %v1578
      %v1580 = vand.u32 %v1188, 4294901760
      %v1581 = vsub.f32 %v1188, %v1580
      %v1582 = vand.u32 %v1581, 4294901760
      %v1583 = vsub.f32 %v1581, %v1582
      %v1584 = vand.u32 %v1583, 4294901760
      %1585 = vmatmul.mubr.f32.gmra.mrb[0].mxu0 %v1584
      %v1586 = vpop.f32.mrb[0].mxu0
      %v1587 = vadd.f32 0.0, %v1586
      %v1588 = vpop.f32.mrb[0].mxu0
      %v1589 = vand.u32 %v1194, 4294901760
      %v1590 = vsub.f32 %v1194, %v1589
      %v1591 = vand.u32 %v1590, 4294901760
      %v1592 = vsub.f32 %v1590, %v1591
      %v1593 = vand.u32 %v1592, 4294901760
      %1594 = vmatprep.mubr.f32.mxu0 %v1593
      %v1595 = vand.u32 %v1192, 4294901760
      %v1596 = vsub.f32 %v1192, %v1595
      %v1597 = vand.u32 %v1596, 4294901760
      %v1598 = vsub.f32 %v1596, %v1597
      %v1599 = vand.u32 %v1598, 4294901760
      %1600 = vmatmul.mubr.f32.gmra.mrb[0].mxu0 %v1599
      %v1601 = vpop.f32.mrb[0].mxu0
      %v1602 = vadd.f32 0.0, %v1601
      %v1603 = vpop.f32.mrb[0].mxu0
      %v1604 = vand.u32 %v1198, 4294901760
      %v1605 = vsub.f32 %v1198, %v1604
      %v1606 = vand.u32 %v1605, 4294901760
      %v1607 = vsub.f32 %v1605, %v1606
      %v1608 = vand.u32 %v1607, 4294901760
      %1609 = vmatprep.mubr.f32.mxu0 %v1608
      %v1610 = vand.u32 %v1196, 4294901760
      %v1611 = vsub.f32 %v1196, %v1610
      %v1612 = vand.u32 %v1611, 4294901760
      %v1613 = vsub.f32 %v1611, %v1612
      %v1614 = vand.u32 %v1613, 4294901760
      %1615 = vmatmul.mubr.f32.gmra.mrb[0].mxu0 %v1614
      %v1616 = vpop.f32.mrb[0].mxu0
      %v1617 = vadd.f32 0.0, %v1616
      %v1618 = vpop.f32.mrb[0].mxu0
      %v1619 = vand.u32 %v1202, 4294901760
      %v1620 = vsub.f32 %v1202, %v1619
      %v1621 = vand.u32 %v1620, 4294901760
      %v1622 = vsub.f32 %v1620, %v1621
      %v1623 = vand.u32 %v1622, 4294901760
      %1624 = vmatprep.mubr.f32.mxu0 %v1623
      %v1625 = vand.u32 %v1200, 4294901760
      %v1626 = vsub.f32 %v1200, %v1625
      %v1627 = vand.u32 %v1626, 4294901760
      %v1628 = vsub.f32 %v1626, %v1627
      %v1629 = vand.u32 %v1628, 4294901760
      %1630 = vmatmul.mubr.f32.gmra.mrb[0].mxu0 %v1629
      %v1631 = vpop.f32.mrb[0].mxu0
      %v1632 = vadd.f32 0.0, %v1631
      %v1633 = vpop.f32.mrb[0].mxu0
      %v1634 = vand.u32 %v1206, 4294901760
      %v1635 = vsub.f32 %v1206, %v1634
      %v1636 = vand.u32 %v1635, 4294901760
      %v1637 = vsub.f32 %v1635, %v1636
      %v1638 = vand.u32 %v1637, 4294901760
      %1639 = vmatprep.mubr.f32.mxu0 %v1638
      %v1640 = vand.u32 %v1204, 4294901760
      %v1641 = vsub.f32 %v1204, %v1640
      %v1642 = vand.u32 %v1641, 4294901760
      %v1643 = vsub.f32 %v1641, %v1642
      %v1644 = vand.u32 %v1643, 4294901760
      %1645 = vmatmul.mubr.f32.gmra.mrb[0].mxu0 %v1644
      %v1646 = vpop.f32.mrb[0].mxu0
      %v1647 = vadd.f32 0.0, %v1646
      %v1648 = vpop.f32.mrb[0].mxu0
      %v1649 = vand.u32 %v1210, 4294901760
      %v1650 = vsub.f32 %v1210, %v1649
      %v1651 = vand.u32 %v1650, 4294901760
      %v1652 = vsub.f32 %v1650, %v1651
      %v1653 = vand.u32 %v1652, 4294901760
      %1654 = vmatprep.mubr.f32.mxu0 %v1653
      %v1655 = vand.u32 %v1208, 4294901760
      %v1656 = vsub.f32 %v1208, %v1655
      %v1657 = vand.u32 %v1656, 4294901760
      %v1658 = vsub.f32 %v1656, %v1657
      %v1659 = vand.u32 %v1658, 4294901760
      %1660 = vmatmul.mubr.f32.gmra.mrb[0].mxu0 %v1659
      %v1661 = vpop.f32.mrb[0].mxu0
      %v1662 = vadd.f32 0.0, %v1661
      %v1663 = vpop.f32.mrb[0].mxu0
      %v1664 = vand.u32 %v1214, 4294901760
      %v1665 = vsub.f32 %v1214, %v1664
      %v1666 = vand.u32 %v1665, 4294901760
      %v1667 = vsub.f32 %v1665, %v1666
      %v1668 = vand.u32 %v1667, 4294901760
      %1669 = vmatprep.mubr.f32.mxu0 %v1668
      %v1670 = vand.u32 %v1212, 4294901760
      %v1671 = vsub.f32 %v1212, %v1670
      %v1672 = vand.u32 %v1671, 4294901760
      %v1673 = vsub.f32 %v1671, %v1672
      %v1674 = vand.u32 %v1673, 4294901760
      %1675 = vmatmul.mubr.f32.gmra.mrb[0].mxu0 %v1674
      %v1676 = vpop.f32.mrb[0].mxu0
      %v1677 = vadd.f32 0.0, %v1676
      %v1678 = vpop.f32.mrb[0].mxu0
      %v1679 = vand.u32 %v1218, 4294901760
      %v1680 = vsub.f32 %v1218, %v1679
      %v1681 = vand.u32 %v1680, 4294901760
      %v1682 = vsub.f32 %v1680, %v1681
      %v1683 = vand.u32 %v1682, 4294901760
      %1684 = vmatprep.mubr.f32.mxu0 %v1683
      %v1685 = vand.u32 %v1216, 4294901760
      %v1686 = vsub.f32 %v1216, %v1685
      %v1687 = vand.u32 %v1686, 4294901760
      %v1688 = vsub.f32 %v1686, %v1687
      %v1689 = vand.u32 %v1688, 4294901760
      %1690 = vmatmul.mubr.f32.gmra.mrb[0].mxu0 %v1689
      %v1691 = vpop.f32.mrb[0].mxu0
      %v1692 = vadd.f32 0.0, %v1691
      %v1693 = vpop.f32.mrb[0].mxu0
      %v1694 = vand.u32 %v1222, 4294901760
      %v1695 = vsub.f32 %v1222, %v1694
      %v1696 = vand.u32 %v1695, 4294901760
      %v1697 = vsub.f32 %v1695, %v1696
      %v1698 = vand.u32 %v1697, 4294901760
      %1699 = vmatprep.mubr.f32.mxu0 %v1698
      %v1700 = vand.u32 %v1220, 4294901760
      %v1701 = vsub.f32 %v1220, %v1700
      %v1702 = vand.u32 %v1701, 4294901760
      %v1703 = vsub.f32 %v1701, %v1702
      %v1704 = vand.u32 %v1703, 4294901760
      %1705 = vmatmul.mubr.f32.gmra.mrb[0].mxu0 %v1704
      %v1706 = vpop.f32.mrb[0].mxu0
      %v1707 = vadd.f32 0.0, %v1706
      %v1708 = vpop.f32.mrb[0].mxu0
      %v1709 = vand.u32 %v1226, 4294901760
      %v1710 = vsub.f32 %v1226, %v1709
      %v1711 = vand.u32 %v1710, 4294901760
      %v1712 = vsub.f32 %v1710, %v1711
      %v1713 = vand.u32 %v1712, 4294901760
      %1714 = vmatprep.mubr.f32.mxu0 %v1713
      %v1715 = vand.u32 %v1224, 4294901760
      %v1716 = vsub.f32 %v1224, %v1715
      %v1717 = vand.u32 %v1716, 4294901760
      %v1718 = vsub.f32 %v1716, %v1717
      %v1719 = vand.u32 %v1718, 4294901760
      %1720 = vmatmul.mubr.f32.gmra.mrb[0].mxu0 %v1719
      %v1721 = vpop.f32.mrb[0].mxu0
      %v1722 = vadd.f32 0.0, %v1721
      %v1723 = vpop.f32.mrb[0].mxu0
      %v1724 = vand.u32 %v1230, 4294901760
      %v1725 = vsub.f32 %v1230, %v1724
      %v1726 = vand.u32 %v1725, 4294901760
      %v1727 = vsub.f32 %v1725, %v1726
      %v1728 = vand.u32 %v1727, 4294901760
      %1729 = vmatprep.mubr.f32.mxu0 %v1728
      %v1730 = vand.u32 %v1228, 4294901760
      %v1731 = vsub.f32 %v1228, %v1730
      %v1732 = vand.u32 %v1731, 4294901760
      %v1733 = vsub.f32 %v1731, %v1732
      %v1734 = vand.u32 %v1733, 4294901760
      %1735 = vmatmul.mubr.f32.gmra.mrb[0].mxu0 %v1734
      %v1736 = vpop.f32.mrb[0].mxu0
      %v1737 = vadd.f32 0.0, %v1736
      %v1738 = vpop.f32.mrb[0].mxu0
      %v1739 = vand.u32 %v1234, 4294901760
      %v1740 = vsub.f32 %v1234, %v1739
      %v1741 = vand.u32 %v1740, 4294901760
      %v1742 = vsub.f32 %v1740, %v1741
      %v1743 = vand.u32 %v1742, 4294901760
      %1744 = vmatprep.mubr.f32.mxu0 %v1743
      %v1745 = vand.u32 %v1232, 4294901760
      %v1746 = vsub.f32 %v1232, %v1745
      %v1747 = vand.u32 %v1746, 4294901760
      %v1748 = vsub.f32 %v1746, %v1747
      %v1749 = vand.u32 %v1748, 4294901760
      %1750 = vmatmul.mubr.f32.gmra.mrb[0].mxu0 %v1749
      %v1751 = vpop.f32.mrb[0].mxu0
      %v1752 = vadd.f32 0.0, %v1751
      %v1753 = vpop.f32.mrb[0].mxu0
      %v1754 = vand.u32 %v1238, 4294901760
      %v1755 = vsub.f32 %v1238, %v1754
      %v1756 = vand.u32 %v1755, 4294901760
      %v1757 = vsub.f32 %v1755, %v1756
      %v1758 = vand.u32 %v1757, 4294901760
      %1759 = vmatprep.mubr.f32.mxu0 %v1758
      %v1760 = vand.u32 %v1236, 4294901760
      %v1761 = vsub.f32 %v1236, %v1760
      %v1762 = vand.u32 %v1761, 4294901760
      %v1763 = vsub.f32 %v1761, %v1762
      %v1764 = vand.u32 %v1763, 4294901760
      %1765 = vmatmul.mubr.f32.gmra.mrb[0].mxu0 %v1764
      %v1766 = vpop.f32.mrb[0].mxu0
      %v1767 = vadd.f32 0.0, %v1766
      %v1768 = vpop.f32.mrb[0].mxu0
      %v1769 = vand.u32 %v1242, 4294901760
      %v1770 = vsub.f32 %v1242, %v1769
      %v1771 = vand.u32 %v1770, 4294901760
      %v1772 = vsub.f32 %v1770, %v1771
      %v1773 = vand.u32 %v1772, 4294901760
      %1774 = vmatprep.mubr.f32.mxu0 %v1773
      %v1775 = vand.u32 %v1240, 4294901760
      %v1776 = vsub.f32 %v1240, %v1775
      %v1777 = vand.u32 %v1776, 4294901760
      %v1778 = vsub.f32 %v1776, %v1777
      %v1779 = vand.u32 %v1778, 4294901760
      %1780 = vmatmul.mubr.f32.gmra.mrb[0].mxu0 %v1779
      %v1781 = vpop.f32.mrb[0].mxu0
      %v1782 = vadd.f32 0.0, %v1781
      %v1783 = vpop.f32.mrb[0].mxu0
      %v1784 = vand.u32 %v1246, 4294901760
      %v1785 = vsub.f32 %v1246, %v1784
      %v1786 = vand.u32 %v1785, 4294901760
      %v1787 = vsub.f32 %v1785, %v1786
      %v1788 = vand.u32 %v1787, 4294901760
      %1789 = vmatprep.mubr.f32.mxu0 %v1788
      %v1790 = vand.u32 %v1244, 4294901760
      %v1791 = vsub.f32 %v1244, %v1790
      %v1792 = vand.u32 %v1791, 4294901760
      %v1793 = vsub.f32 %v1791, %v1792
      %v1794 = vand.u32 %v1793, 4294901760
      %1795 = vmatmul.mubr.f32.gmra.mrb[0].mxu0 %v1794
      %v1796 = vpop.f32.mrb[0].mxu0
      %v1797 = vadd.f32 0.0, %v1796
      %v1798 = vpop.f32.mrb[0].mxu0
      %v1799 = vand.u32 %v1250, 4294901760
      %v1800 = vsub.f32 %v1250, %v1799
      %v1801 = vand.u32 %v1800, 4294901760
      %v1802 = vsub.f32 %v1800, %v1801
      %v1803 = vand.u32 %v1802, 4294901760
      %1804 = vmatprep.mubr.f32.mxu0 %v1803
      %v1805 = vand.u32 %v1248, 4294901760
      %v1806 = vsub.f32 %v1248, %v1805
      %v1807 = vand.u32 %v1806, 4294901760
      %v1808 = vsub.f32 %v1806, %v1807
      %v1809 = vand.u32 %v1808, 4294901760
      %1810 = vmatmul.mubr.f32.gmra.mrb[0].mxu0 %v1809
      %v1811 = vpop.f32.mrb[0].mxu0
      %v1812 = vadd.f32 0.0, %v1811
      %v1813 = vpop.f32.mrb[0].mxu0
      %v1814 = vand.u32 %v1254, 4294901760
      %v1815 = vsub.f32 %v1254, %v1814
      %v1816 = vand.u32 %v1815, 4294901760
      %v1817 = vsub.f32 %v1815, %v1816
      %v1818 = vand.u32 %v1817, 4294901760
      %1819 = vmatprep.mubr.f32.mxu0 %v1818
      %v1820 = vand.u32 %v1252, 4294901760
      %v1821 = vsub.f32 %v1252, %v1820
      %v1822 = vand.u32 %v1821, 4294901760
      %v1823 = vsub.f32 %v1821, %v1822
      %v1824 = vand.u32 %v1823, 4294901760
      %1825 = vmatmul.mubr.f32.gmra.mrb[0].mxu0 %v1824
      %v1826 = vpop.f32.mrb[0].mxu0
      %v1827 = vadd.f32 0.0, %v1826
      %v1828 = vpop.f32.mrb[0].mxu0
      %v1829 = vand.u32 %v1258, 4294901760
      %v1830 = vsub.f32 %v1258, %v1829
      %v1831 = vand.u32 %v1830, 4294901760
      %v1832 = vsub.f32 %v1830, %v1831
      %v1833 = vand.u32 %v1832, 4294901760
      %1834 = vmatprep.mubr.f32.mxu0 %v1833
      %v1835 = vand.u32 %v1256, 4294901760
      %v1836 = vsub.f32 %v1256, %v1835
      %v1837 = vand.u32 %v1836, 4294901760
      %v1838 = vsub.f32 %v1836, %v1837
      %v1839 = vand.u32 %v1838, 4294901760
      %1840 = vmatmul.mubr.f32.gmra.mrb[0].mxu0 %v1839
      %v1841 = vpop.f32.mrb[0].mxu0
      %v1842 = vadd.f32 0.0, %v1841
      %v1843 = vpop.f32.mrb[0].mxu0
      %v1844 = vand.u32 %v1262, 4294901760
      %v1845 = vsub.f32 %v1262, %v1844
      %v1846 = vand.u32 %v1845, 4294901760
      %v1847 = vsub.f32 %v1845, %v1846
      %v1848 = vand.u32 %v1847, 4294901760
      %1849 = vmatprep.mubr.f32.mxu0 %v1848
      %v1850 = vand.u32 %v1260, 4294901760
      %v1851 = vsub.f32 %v1260, %v1850
      %v1852 = vand.u32 %v1851, 4294901760
      %v1853 = vsub.f32 %v1851, %v1852
      %v1854 = vand.u32 %v1853, 4294901760
      %1855 = vmatmul.mubr.f32.gmra.mrb[0].mxu0 %v1854
      %v1856 = vpop.f32.mrb[0].mxu0
      %v1857 = vadd.f32 0.0, %v1856
      %v1858 = vpop.f32.mrb[0].mxu0
      %v1859 = vand.u32 %v1266, 4294901760
      %v1860 = vsub.f32 %v1266, %v1859
      %v1861 = vand.u32 %v1860, 4294901760
      %v1862 = vsub.f32 %v1860, %v1861
      %v1863 = vand.u32 %v1862, 4294901760
      %1864 = vmatprep.mubr.f32.mxu0 %v1863
      %v1865 = vand.u32 %v1264, 4294901760
      %v1866 = vsub.f32 %v1264, %v1865
      %v1867 = vand.u32 %v1866, 4294901760
      %v1868 = vsub.f32 %v1866, %v1867
      %v1869 = vand.u32 %v1868, 4294901760
      %1870 = vmatmul.mubr.f32.gmra.mrb[0].mxu0 %v1869
      %v1871 = vpop.f32.mrb[0].mxu0
      %v1872 = vadd.f32 0.0, %v1871
      %v1873 = vpop.f32.mrb[0].mxu0
      %v1874 = vand.u32 %v1270, 4294901760
      %v1875 = vsub.f32 %v1270, %v1874
      %v1876 = vand.u32 %v1875, 4294901760
      %v1877 = vsub.f32 %v1875, %v1876
      %v1878 = vand.u32 %v1877, 4294901760
      %1879 = vmatprep.mubr.f32.mxu0 %v1878
      %v1880 = vand.u32 %v1268, 4294901760
      %v1881 = vsub.f32 %v1268, %v1880
      %v1882 = vand.u32 %v1881, 4294901760
      %v1883 = vsub.f32 %v1881, %v1882
      %v1884 = vand.u32 %v1883, 4294901760
      %1885 = vmatmul.mubr.f32.gmra.mrb[0].mxu0 %v1884
      %v1886 = vpop.f32.mrb[0].mxu0
      %v1887 = vadd.f32 0.0, %v1886
      %v1888 = vpop.f32.mrb[0].mxu0
      %v1889 = vand.u32 %v1274, 4294901760
      %v1890 = vsub.f32 %v1274, %v1889
      %v1891 = vand.u32 %v1890, 4294901760
      %v1892 = vsub.f32 %v1890, %v1891
      %v1893 = vand.u32 %v1892, 4294901760
      %1894 = vmatprep.mubr.f32.mxu0 %v1893
      %v1895 = vand.u32 %v1272, 4294901760
      %v1896 = vsub.f32 %v1272, %v1895
      %v1897 = vand.u32 %v1896, 4294901760
      %v1898 = vsub.f32 %v1896, %v1897
      %v1899 = vand.u32 %v1898, 4294901760
      %1900 = vmatmul.mubr.f32.gmra.mrb[0].mxu0 %v1899
      %v1901 = vpop.f32.mrb[0].mxu0
      %v1902 = vadd.f32 0.0, %v1901
      %v1903 = vpop.f32.mrb[0].mxu0
      %v1904 = vand.u32 %v1278, 4294901760
      %v1905 = vsub.f32 %v1278, %v1904
      %v1906 = vand.u32 %v1905, 4294901760
      %v1907 = vsub.f32 %v1905, %v1906
      %v1908 = vand.u32 %v1907, 4294901760
      %1909 = vmatprep.mubr.f32.mxu0 %v1908
      %v1910 = vand.u32 %v1276, 4294901760
      %v1911 = vsub.f32 %v1276, %v1910
      %v1912 = vand.u32 %v1911, 4294901760
      %v1913 = vsub.f32 %v1911, %v1912
      %v1914 = vand.u32 %v1913, 4294901760
      %1915 = vmatmul.mubr.f32.gmra.mrb[0].mxu0 %v1914
      %v1916 = vpop.f32.mrb[0].mxu0
      %v1917 = vadd.f32 0.0, %v1916
      %v1918 = vpop.f32.mrb[0].mxu0
      %1919 = vdwg.mxu0
      %1920 = vmatprep.subr.mxu0 0.0
      %v1921 = vand.u32 %v1311, 4294901760
      %v1922 = vsub.f32 %v1311, %v1921
      %v1923 = vand.u32 %v1922, 4294901760
      %v1924 = vsub.f32 %v1922, %v1923
      %v1925 = vand.u32 %v1924, 4294901760
      %1926 = vmatpush1.msra.mxu0 %v1925
      %1927 = vmatprep.subr.mxu0 0.0
      %v1928 = vand.u32 %v1312, 4294901760
      %v1929 = vsub.f32 %v1312, %v1928
      %v1930 = vand.u32 %v1929, 4294901760
      %v1931 = vsub.f32 %v1929, %v1930
      %v1932 = vand.u32 %v1931, 4294901760
      %1933 = vmatpush1.msra.mxu0 %v1932
      %1934 = vmatprep.subr.mxu0 0.0
      %v1935 = vand.u32 %v1313, 4294901760
      %v1936 = vsub.f32 %v1313, %v1935
      %v1937 = vand.u32 %v1936, 4294901760
      %v1938 = vsub.f32 %v1936, %v1937
      %v1939 = vand.u32 %v1938, 4294901760
      %1940 = vmatpush1.msra.mxu0 %v1939
      %1941 = vmatprep.subr.mxu0 0.0
      %v1942 = vand.u32 %v1314, 4294901760
      %v1943 = vsub.f32 %v1314, %v1942
      %v1944 = vand.u32 %v1943, 4294901760
      %v1945 = vsub.f32 %v1943, %v1944
      %v1946 = vand.u32 %v1945, 4294901760
      %1947 = vmatpush1.msra.mxu0 %v1946
      %1948 = vmatprep.subr.mxu0 0.0
      %v1949 = vand.u32 %v1315, 4294901760
      %v1950 = vsub.f32 %v1315, %v1949
      %v1951 = vand.u32 %v1950, 4294901760
      %v1952 = vsub.f32 %v1950, %v1951
      %v1953 = vand.u32 %v1952, 4294901760
      %1954 = vmatpush1.msra.mxu0 %v1953
      %1955 = vmatprep.subr.mxu0 0.0
      %v1956 = vand.u32 %v1316, 4294901760
      %v1957 = vsub.f32 %v1316, %v1956
      %v1958 = vand.u32 %v1957, 4294901760
      %v1959 = vsub.f32 %v1957, %v1958
      %v1960 = vand.u32 %v1959, 4294901760
      %1961 = vmatpush1.msra.mxu0 %v1960
      %1962 = vmatprep.subr.mxu0 0.0
      %v1963 = vand.u32 %v1317, 4294901760
      %v1964 = vsub.f32 %v1317, %v1963
      %v1965 = vand.u32 %v1964, 4294901760
      %v1966 = vsub.f32 %v1964, %v1965
      %v1967 = vand.u32 %v1966, 4294901760
      %1968 = vmatpush1.msra.mxu0 %v1967
      %1969 = vmatprep.subr.mxu0 0.0
      %v1970 = vand.u32 %v1318, 4294901760
      %v1971 = vsub.f32 %v1318, %v1970
      %v1972 = vand.u32 %v1971, 4294901760
      %v1973 = vsub.f32 %v1971, %v1972
      %v1974 = vand.u32 %v1973, 4294901760
      %1975 = vmatpush1.msra.mxu0 %v1974
      %1976 = vmatprep.subr.mxu0 0.0
      %v1977 = vand.u32 %v1319, 4294901760
      %v1978 = vsub.f32 %v1319, %v1977
      %v1979 = vand.u32 %v1978, 4294901760
      %v1980 = vsub.f32 %v1978, %v1979
      %v1981 = vand.u32 %v1980, 4294901760
      %1982 = vmatpush1.msra.mxu0 %v1981
      %1983 = vmatprep.subr.mxu0 0.0
      %v1984 = vand.u32 %v1320, 4294901760
      %v1985 = vsub.f32 %v1320, %v1984
      %v1986 = vand.u32 %v1985, 4294901760
      %v1987 = vsub.f32 %v1985, %v1986
      %v1988 = vand.u32 %v1987, 4294901760
      %1989 = vmatpush1.msra.mxu0 %v1988
      %1990 = vmatprep.subr.mxu0 0.0
      %v1991 = vand.u32 %v1321, 4294901760
      %v1992 = vsub.f32 %v1321, %v1991
      %v1993 = vand.u32 %v1992, 4294901760
      %v1994 = vsub.f32 %v1992, %v1993
      %v1995 = vand.u32 %v1994, 4294901760
      %1996 = vmatpush1.msra.mxu0 %v1995
      %1997 = vmatprep.subr.mxu0 0.0
      %v1998 = vand.u32 %v1322, 4294901760
      %v1999 = vsub.f32 %v1322, %v1998
      %v2000 = vand.u32 %v1999, 4294901760
      %v2001 = vsub.f32 %v1999, %v2000
      %v2002 = vand.u32 %v2001, 4294901760
      %2003 = vmatpush1.msra.mxu0 %v2002
      %2004 = vmatprep.subr.mxu0 0.0
      %v2005 = vand.u32 %v1323, 4294901760
      %v2006 = vsub.f32 %v1323, %v2005
      %v2007 = vand.u32 %v2006, 4294901760
      %v2008 = vsub.f32 %v2006, %v2007
      %v2009 = vand.u32 %v2008, 4294901760
      %2010 = vmatpush1.msra.mxu0 %v2009
      %2011 = vmatprep.subr.mxu0 0.0
      %v2012 = vand.u32 %v1324, 4294901760
      %v2013 = vsub.f32 %v1324, %v2012
      %v2014 = vand.u32 %v2013, 4294901760
      %v2015 = vsub.f32 %v2013, %v2014
      %v2016 = vand.u32 %v2015, 4294901760
      %2017 = vmatpush1.msra.mxu0 %v2016
      %2018 = vmatprep.subr.mxu0 0.0
      %v2019 = vand.u32 %v1325, 4294901760
      %v2020 = vsub.f32 %v1325, %v2019
      %v2021 = vand.u32 %v2020, 4294901760
      %v2022 = vsub.f32 %v2020, %v2021
      %v2023 = vand.u32 %v2022, 4294901760
      %2024 = vmatpush1.msra.mxu0 %v2023
      %2025 = vmatprep.subr.mxu0 0.0
      %v2026 = vand.u32 %v1326, 4294901760
      %v2027 = vsub.f32 %v1326, %v2026
      %v2028 = vand.u32 %v2027, 4294901760
      %v2029 = vsub.f32 %v2027, %v2028
      %v2030 = vand.u32 %v2029, 4294901760
      %2031 = vmatpush1.msra.mxu0 %v2030
      %2032 = vmatprep.subr.mxu0 0.0
      %v2033 = vand.u32 %v1327, 4294901760
      %v2034 = vsub.f32 %v1327, %v2033
      %v2035 = vand.u32 %v2034, 4294901760
      %v2036 = vsub.f32 %v2034, %v2035
      %v2037 = vand.u32 %v2036, 4294901760
      %2038 = vmatpush1.msra.mxu0 %v2037
      %2039 = vmatprep.subr.mxu0 0.0
      %v2040 = vand.u32 %v1328, 4294901760
      %v2041 = vsub.f32 %v1328, %v2040
      %v2042 = vand.u32 %v2041, 4294901760
      %v2043 = vsub.f32 %v2041, %v2042
      %v2044 = vand.u32 %v2043, 4294901760
      %2045 = vmatpush1.msra.mxu0 %v2044
      %2046 = vmatprep.subr.mxu0 0.0
      %v2047 = vand.u32 %v1329, 4294901760
      %v2048 = vsub.f32 %v1329, %v2047
      %v2049 = vand.u32 %v2048, 4294901760
      %v2050 = vsub.f32 %v2048, %v2049
      %v2051 = vand.u32 %v2050, 4294901760
      %2052 = vmatpush1.msra.mxu0 %v2051
      %2053 = vmatprep.subr.mxu0 0.0
      %v2054 = vand.u32 %v1330, 4294901760
      %v2055 = vsub.f32 %v1330, %v2054
      %v2056 = vand.u32 %v2055, 4294901760
      %v2057 = vsub.f32 %v2055, %v2056
      %v2058 = vand.u32 %v2057, 4294901760
      %2059 = vmatpush1.msra.mxu0 %v2058
      %2060 = vmatprep.subr.mxu0 0.0
      %v2061 = vand.u32 %v1331, 4294901760
      %v2062 = vsub.f32 %v1331, %v2061
      %v2063 = vand.u32 %v2062, 4294901760
      %v2064 = vsub.f32 %v2062, %v2063
      %v2065 = vand.u32 %v2064, 4294901760
      %2066 = vmatpush1.msra.mxu0 %v2065
      %2067 = vmatprep.subr.mxu0 0.0
      %v2068 = vand.u32 %v1332, 4294901760
      %v2069 = vsub.f32 %v1332, %v2068
      %v2070 = vand.u32 %v2069, 4294901760
      %v2071 = vsub.f32 %v2069, %v2070
      %v2072 = vand.u32 %v2071, 4294901760
      %2073 = vmatpush1.msra.mxu0 %v2072
      %2074 = vmatprep.subr.mxu0 0.0
      %v2075 = vand.u32 %v1333, 4294901760
      %v2076 = vsub.f32 %v1333, %v2075
      %v2077 = vand.u32 %v2076, 4294901760
      %v2078 = vsub.f32 %v2076, %v2077
      %v2079 = vand.u32 %v2078, 4294901760
      %2080 = vmatpush1.msra.mxu0 %v2079
      %2081 = vmatprep.subr.mxu0 0.0
      %v2082 = vand.u32 %v1334, 4294901760
      %v2083 = vsub.f32 %v1334, %v2082
      %v2084 = vand.u32 %v2083, 4294901760
      %v2085 = vsub.f32 %v2083, %v2084
      %v2086 = vand.u32 %v2085, 4294901760
      %2087 = vmatpush1.msra.mxu0 %v2086
      %2088 = vmatprep.subr.mxu0 0.0
      %v2089 = vand.u32 %v1335, 4294901760
      %v2090 = vsub.f32 %v1335, %v2089
      %v2091 = vand.u32 %v2090, 4294901760
      %v2092 = vsub.f32 %v2090, %v2091
      %v2093 = vand.u32 %v2092, 4294901760
      %2094 = vmatpush1.msra.mxu0 %v2093
      %2095 = vmatprep.subr.mxu0 0.0
      %v2096 = vand.u32 %v1336, 4294901760
      %v2097 = vsub.f32 %v1336, %v2096
      %v2098 = vand.u32 %v2097, 4294901760
      %v2099 = vsub.f32 %v2097, %v2098
      %v2100 = vand.u32 %v2099, 4294901760
      %2101 = vmatpush1.msra.mxu0 %v2100
      %2102 = vmatprep.subr.mxu0 0.0
      %v2103 = vand.u32 %v1337, 4294901760
      %v2104 = vsub.f32 %v1337, %v2103
      %v2105 = vand.u32 %v2104, 4294901760
      %v2106 = vsub.f32 %v2104, %v2105
      %v2107 = vand.u32 %v2106, 4294901760
      %2108 = vmatpush1.msra.mxu0 %v2107
      %2109 = vmatprep.subr.mxu0 0.0
      %v2110 = vand.u32 %v1338, 4294901760
      %v2111 = vsub.f32 %v1338, %v2110
      %v2112 = vand.u32 %v2111, 4294901760
      %v2113 = vsub.f32 %v2111, %v2112
      %v2114 = vand.u32 %v2113, 4294901760
      %2115 = vmatpush1.msra.mxu0 %v2114
      %2116 = vmatprep.subr.mxu0 0.0
      %v2117 = vand.u32 %v1339, 4294901760
      %v2118 = vsub.f32 %v1339, %v2117
      %v2119 = vand.u32 %v2118, 4294901760
      %v2120 = vsub.f32 %v2118, %v2119
      %v2121 = vand.u32 %v2120, 4294901760
      %2122 = vmatpush1.msra.mxu0 %v2121
      %2123 = vmatprep.subr.mxu0 0.0
      %v2124 = vand.u32 %v1340, 4294901760
      %v2125 = vsub.f32 %v1340, %v2124
      %v2126 = vand.u32 %v2125, 4294901760
      %v2127 = vsub.f32 %v2125, %v2126
      %v2128 = vand.u32 %v2127, 4294901760
      %2129 = vmatpush1.msra.mxu0 %v2128
      %2130 = vmatprep.subr.mxu0 0.0
      %v2131 = vand.u32 %v1341, 4294901760
      %v2132 = vsub.f32 %v1341, %v2131
      %v2133 = vand.u32 %v2132, 4294901760
      %v2134 = vsub.f32 %v2132, %v2133
      %v2135 = vand.u32 %v2134, 4294901760
      %2136 = vmatpush1.msra.mxu0 %v2135
      %2137 = vmatprep.subr.mxu0 0.0
      %v2138 = vand.u32 %v1342, 4294901760
      %v2139 = vsub.f32 %v1342, %v2138
      %v2140 = vand.u32 %v2139, 4294901760
      %v2141 = vsub.f32 %v2139, %v2140
      %v2142 = vand.u32 %v2141, 4294901760
      %2143 = vmatpush1.msra.mxu0 %v2142
      %v2144 = vand.u32 %v1154, 4294901760
      %2145 = vmatprep.mubr.f32.mxu0 %v2144
      %v2146 = vand.u32 %v1152, 4294901760
      %2147 = vmatmul.mubr.f32.gmra.mrb[0].mxu0 %v2146
      %v2148 = vpop.f32.mrb[0].mxu0
      %v2149 = vadd.f32 %v1452, %v2148
      %v2150 = vpop.f32.mrb[0].mxu0
      %v2151 = vand.u32 %v1158, 4294901760
      %2152 = vmatprep.mubr.f32.mxu0 %v2151
      %v2153 = vand.u32 %v1156, 4294901760
      %2154 = vmatmul.mubr.f32.gmra.mrb[0].mxu0 %v2153
      %v2155 = vpop.f32.mrb[0].mxu0
      %v2156 = vadd.f32 %v1467, %v2155
      %v2157 = vpop.f32.mrb[0].mxu0
      %v2158 = vand.u32 %v1162, 4294901760
      %2159 = vmatprep.mubr.f32.mxu0 %v2158
      %v2160 = vand.u32 %v1160, 4294901760
      %2161 = vmatmul.mubr.f32.gmra.mrb[0].mxu0 %v2160
      %v2162 = vpop.f32.mrb[0].mxu0
      %v2163 = vadd.f32 %v1482, %v2162
      %v2164 = vpop.f32.mrb[0].mxu0
      %v2165 = vand.u32 %v1166, 4294901760
      %2166 = vmatprep.mubr.f32.mxu0 %v2165
      %v2167 = vand.u32 %v1164, 4294901760
      %2168 = vmatmul.mubr.f32.gmra.mrb[0].mxu0 %v2167
      %v2169 = vpop.f32.mrb[0].mxu0
      %v2170 = vadd.f32 %v1497, %v2169
      %v2171 = vpop.f32.mrb[0].mxu0
      %v2172 = vand.u32 %v1170, 4294901760
      %2173 = vmatprep.mubr.f32.mxu0 %v2172
      %v2174 = vand.u32 %v1168, 4294901760
      %2175 = vmatmul.mubr.f32.gmra.mrb[0].mxu0 %v2174
      %v2176 = vpop.f32.mrb[0].mxu0
      %v2177 = vadd.f32 %v1512, %v2176
      %v2178 = vpop.f32.mrb[0].mxu0
      %v2179 = vand.u32 %v1174, 4294901760
      %2180 = vmatprep.mubr.f32.mxu0 %v2179
      %v2181 = vand.u32 %v1172, 4294901760
      %2182 = vmatmul.mubr.f32.gmra.mrb[0].mxu0 %v2181
      %v2183 = vpop.f32.mrb[0].mxu0
      %v2184 = vadd.f32 %v1527, %v2183
      %v2185 = vpop.f32.mrb[0].mxu0
      %v2186 = vand.u32 %v1178, 4294901760
      %2187 = vmatprep.mubr.f32.mxu0 %v2186
      %v2188 = vand.u32 %v1176, 4294901760
      %2189 = vmatmul.mubr.f32.gmra.mrb[0].mxu0 %v2188
      %v2190 = vpop.f32.mrb[0].mxu0
      %v2191 = vadd.f32 %v1542, %v2190
      %v2192 = vpop.f32.mrb[0].mxu0
      %v2193 = vand.u32 %v1182, 4294901760
      %2194 = vmatprep.mubr.f32.mxu0 %v2193
      %v2195 = vand.u32 %v1180, 4294901760
      %2196 = vmatmul.mubr.f32.gmra.mrb[0].mxu0 %v2195
      %v2197 = vpop.f32.mrb[0].mxu0
      %v2198 = vadd.f32 %v1557, %v2197
      %v2199 = vpop.f32.mrb[0].mxu0
      %v2200 = vand.u32 %v1186, 4294901760
      %2201 = vmatprep.mubr.f32.mxu0 %v2200
      %v2202 = vand.u32 %v1184, 4294901760
      %2203 = vmatmul.mubr.f32.gmra.mrb[0].mxu0 %v2202
      %v2204 = vpop.f32.mrb[0].mxu0
      %v2205 = vadd.f32 %v1572, %v2204
      %v2206 = vpop.f32.mrb[0].mxu0
      %v2207 = vand.u32 %v1190, 4294901760
      %2208 = vmatprep.mubr.f32.mxu0 %v2207
      %v2209 = vand.u32 %v1188, 4294901760
      %2210 = vmatmul.mubr.f32.gmra.mrb[0].mxu0 %v2209
      %v2211 = vpop.f32.mrb[0].mxu0
      %v2212 = vadd.f32 %v1587, %v2211
      %v2213 = vpop.f32.mrb[0].mxu0
      %v2214 = vand.u32 %v1194, 4294901760
      %2215 = vmatprep.mubr.f32.mxu0 %v2214
      %v2216 = vand.u32 %v1192, 4294901760
      %2217 = vmatmul.mubr.f32.gmra.mrb[0].mxu0 %v2216
      %v2218 = vpop.f32.mrb[0].mxu0
      %v2219 = vadd.f32 %v1602, %v2218
      %v2220 = vpop.f32.mrb[0].mxu0
      %v2221 = vand.u32 %v1198, 4294901760
      %2222 = vmatprep.mubr.f32.mxu0 %v2221
      %v2223 = vand.u32 %v1196, 4294901760
      %2224 = vmatmul.mubr.f32.gmra.mrb[0].mxu0 %v2223
      %v2225 = vpop.f32.mrb[0].mxu0
      %v2226 = vadd.f32 %v1617, %v2225
      %v2227 = vpop.f32.mrb[0].mxu0
      %v2228 = vand.u32 %v1202, 4294901760
      %2229 = vmatprep.mubr.f32.mxu0 %v2228
      %v2230 = vand.u32 %v1200, 4294901760
      %2231 = vmatmul.mubr.f32.gmra.mrb[0].mxu0 %v2230
      %v2232 = vpop.f32.mrb[0].mxu0
      %v2233 = vadd.f32 %v1632, %v2232
      %v2234 = vpop.f32.mrb[0].mxu0
      %v2235 = vand.u32 %v1206, 4294901760
      %2236 = vmatprep.mubr.f32.mxu0 %v2235
      %v2237 = vand.u32 %v1204, 4294901760
      %2238 = vmatmul.mubr.f32.gmra.mrb[0].mxu0 %v2237
      %v2239 = vpop.f32.mrb[0].mxu0
      %v2240 = vadd.f32 %v1647, %v2239
      %v2241 = vpop.f32.mrb[0].mxu0
      %v2242 = vand.u32 %v1210, 4294901760
      %2243 = vmatprep.mubr.f32.mxu0 %v2242
      %v2244 = vand.u32 %v1208, 4294901760
      %2245 = vmatmul.mubr.f32.gmra.mrb[0].mxu0 %v2244
      %v2246 = vpop.f32.mrb[0].mxu0
      %v2247 = vadd.f32 %v1662, %v2246
      %v2248 = vpop.f32.mrb[0].mxu0
      %v2249 = vand.u32 %v1214, 4294901760
      %2250 = vmatprep.mubr.f32.mxu0 %v2249
      %v2251 = vand.u32 %v1212, 4294901760
      %2252 = vmatmul.mubr.f32.gmra.mrb[0].mxu0 %v2251
      %v2253 = vpop.f32.mrb[0].mxu0
      %v2254 = vadd.f32 %v1677, %v2253
      %v2255 = vpop.f32.mrb[0].mxu0
      %v2256 = vand.u32 %v1218, 4294901760
      %2257 = vmatprep.mubr.f32.mxu0 %v2256
      %v2258 = vand.u32 %v1216, 4294901760
      %2259 = vmatmul.mubr.f32.gmra.mrb[0].mxu0 %v2258
      %v2260 = vpop.f32.mrb[0].mxu0
      %v2261 = vadd.f32 %v1692, %v2260
      %v2262 = vpop.f32.mrb[0].mxu0
      %v2263 = vand.u32 %v1222, 4294901760
      %2264 = vmatprep.mubr.f32.mxu0 %v2263
      %v2265 = vand.u32 %v1220, 4294901760
      %2266 = vmatmul.mubr.f32.gmra.mrb[0].mxu0 %v2265
      %v2267 = vpop.f32.mrb[0].mxu0
      %v2268 = vadd.f32 %v1707, %v2267
      %v2269 = vpop.f32.mrb[0].mxu0
      %v2270 = vand.u32 %v1226, 4294901760
      %2271 = vmatprep.mubr.f32.mxu0 %v2270
      %v2272 = vand.u32 %v1224, 4294901760
      %2273 = vmatmul.mubr.f32.gmra.mrb[0].mxu0 %v2272
      %v2274 = vpop.f32.mrb[0].mxu0
      %v2275 = vadd.f32 %v1722, %v2274
      %v2276 = vpop.f32.mrb[0].mxu0
      %v2277 = vand.u32 %v1230, 4294901760
      %2278 = vmatprep.mubr.f32.mxu0 %v2277
      %v2279 = vand.u32 %v1228, 4294901760
      %2280 = vmatmul.mubr.f32.gmra.mrb[0].mxu0 %v2279
      %v2281 = vpop.f32.mrb[0].mxu0
      %v2282 = vadd.f32 %v1737, %v2281
      %v2283 = vpop.f32.mrb[0].mxu0
      %v2284 = vand.u32 %v1234, 4294901760
      %2285 = vmatprep.mubr.f32.mxu0 %v2284
      %v2286 = vand.u32 %v1232, 4294901760
      %2287 = vmatmul.mubr.f32.gmra.mrb[0].mxu0 %v2286
      %v2288 = vpop.f32.mrb[0].mxu0
      %v2289 = vadd.f32 %v1752, %v2288
      %v2290 = vpop.f32.mrb[0].mxu0
      %v2291 = vand.u32 %v1238, 4294901760
      %2292 = vmatprep.mubr.f32.mxu0 %v2291
      %v2293 = vand.u32 %v1236, 4294901760
      %2294 = vmatmul.mubr.f32.gmra.mrb[0].mxu0 %v2293
      %v2295 = vpop.f32.mrb[0].mxu0
      %v2296 = vadd.f32 %v1767, %v2295
      %v2297 = vpop.f32.mrb[0].mxu0
      %v2298 = vand.u32 %v1242, 4294901760
      %2299 = vmatprep.mubr.f32.mxu0 %v2298
      %v2300 = vand.u32 %v1240, 4294901760
      %2301 = vmatmul.mubr.f32.gmra.mrb[0].mxu0 %v2300
      %v2302 = vpop.f32.mrb[0].mxu0
      %v2303 = vadd.f32 %v1782, %v2302
      %v2304 = vpop.f32.mrb[0].mxu0
      %v2305 = vand.u32 %v1246, 4294901760
      %2306 = vmatprep.mubr.f32.mxu0 %v2305
      %v2307 = vand.u32 %v1244, 4294901760
      %2308 = vmatmul.mubr.f32.gmra.mrb[0].mxu0 %v2307
      %v2309 = vpop.f32.mrb[0].mxu0
      %v2310 = vadd.f32 %v1797, %v2309
      %v2311 = vpop.f32.mrb[0].mxu0
      %v2312 = vand.u32 %v1250, 4294901760
      %2313 = vmatprep.mubr.f32.mxu0 %v2312
      %v2314 = vand.u32 %v1248, 4294901760
      %2315 = vmatmul.mubr.f32.gmra.mrb[0].mxu0 %v2314
      %v2316 = vpop.f32.mrb[0].mxu0
      %v2317 = vadd.f32 %v1812, %v2316
      %v2318 = vpop.f32.mrb[0].mxu0
      %v2319 = vand.u32 %v1254, 4294901760
      %2320 = vmatprep.mubr.f32.mxu0 %v2319
      %v2321 = vand.u32 %v1252, 4294901760
      %2322 = vmatmul.mubr.f32.gmra.mrb[0].mxu0 %v2321
      %v2323 = vpop.f32.mrb[0].mxu0
      %v2324 = vadd.f32 %v1827, %v2323
      %v2325 = vpop.f32.mrb[0].mxu0
      %v2326 = vand.u32 %v1258, 4294901760
      %2327 = vmatprep.mubr.f32.mxu0 %v2326
      %v2328 = vand.u32 %v1256, 4294901760
      %2329 = vmatmul.mubr.f32.gmra.mrb[0].mxu0 %v2328
      %v2330 = vpop.f32.mrb[0].mxu0
      %v2331 = vadd.f32 %v1842, %v2330
      %v2332 = vpop.f32.mrb[0].mxu0
      %v2333 = vand.u32 %v1262, 4294901760
      %2334 = vmatprep.mubr.f32.mxu0 %v2333
      %v2335 = vand.u32 %v1260, 4294901760
      %2336 = vmatmul.mubr.f32.gmra.mrb[0].mxu0 %v2335
      %v2337 = vpop.f32.mrb[0].mxu0
      %v2338 = vadd.f32 %v1857, %v2337
      %v2339 = vpop.f32.mrb[0].mxu0
      %v2340 = vand.u32 %v1266, 4294901760
      %2341 = vmatprep.mubr.f32.mxu0 %v2340
      %v2342 = vand.u32 %v1264, 4294901760
      %2343 = vmatmul.mubr.f32.gmra.mrb[0].mxu0 %v2342
      %v2344 = vpop.f32.mrb[0].mxu0
      %v2345 = vadd.f32 %v1872, %v2344
      %v2346 = vpop.f32.mrb[0].mxu0
      %v2347 = vand.u32 %v1270, 4294901760
      %2348 = vmatprep.mubr.f32.mxu0 %v2347
      %v2349 = vand.u32 %v1268, 4294901760
      %2350 = vmatmul.mubr.f32.gmra.mrb[0].mxu0 %v2349
      %v2351 = vpop.f32.mrb[0].mxu0
      %v2352 = vadd.f32 %v1887, %v2351
      %v2353 = vpop.f32.mrb[0].mxu0
      %v2354 = vand.u32 %v1274, 4294901760
      %2355 = vmatprep.mubr.f32.mxu0 %v2354
      %v2356 = vand.u32 %v1272, 4294901760
      %2357 = vmatmul.mubr.f32.gmra.mrb[0].mxu0 %v2356
      %v2358 = vpop.f32.mrb[0].mxu0
      %v2359 = vadd.f32 %v1902, %v2358
      %v2360 = vpop.f32.mrb[0].mxu0
      %v2361 = vand.u32 %v1278, 4294901760
      %2362 = vmatprep.mubr.f32.mxu0 %v2361
      %v2363 = vand.u32 %v1276, 4294901760
      %2364 = vmatmul.mubr.f32.gmra.mrb[0].mxu0 %v2363
      %v2365 = vpop.f32.mrb[0].mxu0
      %v2366 = vadd.f32 %v1917, %v2365
      %v2367 = vpop.f32.mrb[0].mxu0
      %2368 = vdwg.mxu0
      %2369 = vmatprep.subr.mxu0 0.0
      %v2370 = vand.u32 %v1311, 4294901760
      %v2371 = vsub.f32 %v1311, %v2370
      %2372 = vmatpush1.msra.mxu0 %v2371
      %2373 = vmatprep.subr.mxu0 0.0
      %v2374 = vand.u32 %v1312, 4294901760
      %v2375 = vsub.f32 %v1312, %v2374
      %2376 = vmatpush1.msra.mxu0 %v2375
      %2377 = vmatprep.subr.mxu0 0.0
      %v2378 = vand.u32 %v1313, 4294901760
      %v2379 = vsub.f32 %v1313, %v2378
      %2380 = vmatpush1.msra.mxu0 %v2379
      %2381 = vmatprep.subr.mxu0 0.0
      %v2382 = vand.u32 %v1314, 4294901760
      %v2383 = vsub.f32 %v1314, %v2382
      %2384 = vmatpush1.msra.mxu0 %v2383
      %2385 = vmatprep.subr.mxu0 0.0
      %v2386 = vand.u32 %v1315, 4294901760
      %v2387 = vsub.f32 %v1315, %v2386
      %2388 = vmatpush1.msra.mxu0 %v2387
      %2389 = vmatprep.subr.mxu0 0.0
      %v2390 = vand.u32 %v1316, 4294901760
      %v2391 = vsub.f32 %v1316, %v2390
      %2392 = vmatpush1.msra.mxu0 %v2391
      %2393 = vmatprep.subr.mxu0 0.0
      %v2394 = vand.u32 %v1317, 4294901760
      %v2395 = vsub.f32 %v1317, %v2394
      %2396 = vmatpush1.msra.mxu0 %v2395
      %2397 = vmatprep.subr.mxu0 0.0
      %v2398 = vand.u32 %v1318, 4294901760
      %v2399 = vsub.f32 %v1318, %v2398
      %2400 = vmatpush1.msra.mxu0 %v2399
      %2401 = vmatprep.subr.mxu0 0.0
      %v2402 = vand.u32 %v1319, 4294901760
      %v2403 = vsub.f32 %v1319, %v2402
      %2404 = vmatpush1.msra.mxu0 %v2403
      %2405 = vmatprep.subr.mxu0 0.0
      %v2406 = vand.u32 %v1320, 4294901760
      %v2407 = vsub.f32 %v1320, %v2406
      %2408 = vmatpush1.msra.mxu0 %v2407
      %2409 = vmatprep.subr.mxu0 0.0
      %v2410 = vand.u32 %v1321, 4294901760
      %v2411 = vsub.f32 %v1321, %v2410
      %2412 = vmatpush1.msra.mxu0 %v2411
      %2413 = vmatprep.subr.mxu0 0.0
      %v2414 = vand.u32 %v1322, 4294901760
      %v2415 = vsub.f32 %v1322, %v2414
      %2416 = vmatpush1.msra.mxu0 %v2415
      %2417 = vmatprep.subr.mxu0 0.0
      %v2418 = vand.u32 %v1323, 4294901760
      %v2419 = vsub.f32 %v1323, %v2418
      %2420 = vmatpush1.msra.mxu0 %v2419
      %2421 = vmatprep.subr.mxu0 0.0
      %v2422 = vand.u32 %v1324, 4294901760
      %v2423 = vsub.f32 %v1324, %v2422
      %2424 = vmatpush1.msra.mxu0 %v2423
      %2425 = vmatprep.subr.mxu0 0.0
      %v2426 = vand.u32 %v1325, 4294901760
      %v2427 = vsub.f32 %v1325, %v2426
      %2428 = vmatpush1.msra.mxu0 %v2427
      %2429 = vmatprep.subr.mxu0 0.0
      %v2430 = vand.u32 %v1326, 4294901760
      %v2431 = vsub.f32 %v1326, %v2430
      %2432 = vmatpush1.msra.mxu0 %v2431
      %2433 = vmatprep.subr.mxu0 0.0
      %v2434 = vand.u32 %v1327, 4294901760
      %v2435 = vsub.f32 %v1327, %v2434
      %2436 = vmatpush1.msra.mxu0 %v2435
      %2437 = vmatprep.subr.mxu0 0.0
      %v2438 = vand.u32 %v1328, 4294901760
      %v2439 = vsub.f32 %v1328, %v2438
      %2440 = vmatpush1.msra.mxu0 %v2439
      %2441 = vmatprep.subr.mxu0 0.0
      %v2442 = vand.u32 %v1329, 4294901760
      %v2443 = vsub.f32 %v1329, %v2442
      %2444 = vmatpush1.msra.mxu0 %v2443
      %2445 = vmatprep.subr.mxu0 0.0
      %v2446 = vand.u32 %v1330, 4294901760
      %v2447 = vsub.f32 %v1330, %v2446
      %2448 = vmatpush1.msra.mxu0 %v2447
      %2449 = vmatprep.subr.mxu0 0.0
      %v2450 = vand.u32 %v1331, 4294901760
      %v2451 = vsub.f32 %v1331, %v2450
      %2452 = vmatpush1.msra.mxu0 %v2451
      %2453 = vmatprep.subr.mxu0 0.0
      %v2454 = vand.u32 %v1332, 4294901760
      %v2455 = vsub.f32 %v1332, %v2454
      %2456 = vmatpush1.msra.mxu0 %v2455
      %2457 = vmatprep.subr.mxu0 0.0
      %v2458 = vand.u32 %v1333, 4294901760
      %v2459 = vsub.f32 %v1333, %v2458
      %2460 = vmatpush1.msra.mxu0 %v2459
      %2461 = vmatprep.subr.mxu0 0.0
      %v2462 = vand.u32 %v1334, 4294901760
      %v2463 = vsub.f32 %v1334, %v2462
      %2464 = vmatpush1.msra.mxu0 %v2463
      %2465 = vmatprep.subr.mxu0 0.0
      %v2466 = vand.u32 %v1335, 4294901760
      %v2467 = vsub.f32 %v1335, %v2466
      %2468 = vmatpush1.msra.mxu0 %v2467
      %2469 = vmatprep.subr.mxu0 0.0
      %v2470 = vand.u32 %v1336, 4294901760
      %v2471 = vsub.f32 %v1336, %v2470
      %2472 = vmatpush1.msra.mxu0 %v2471
      %2473 = vmatprep.subr.mxu0 0.0
      %v2474 = vand.u32 %v1337, 4294901760
      %v2475 = vsub.f32 %v1337, %v2474
      %2476 = vmatpush1.msra.mxu0 %v2475
      %2477 = vmatprep.subr.mxu0 0.0
      %v2478 = vand.u32 %v1338, 4294901760
      %v2479 = vsub.f32 %v1338, %v2478
      %2480 = vmatpush1.msra.mxu0 %v2479
      %2481 = vmatprep.subr.mxu0 0.0
      %v2482 = vand.u32 %v1339, 4294901760
      %v2483 = vsub.f32 %v1339, %v2482
      %2484 = vmatpush1.msra.mxu0 %v2483
      %2485 = vmatprep.subr.mxu0 0.0
      %v2486 = vand.u32 %v1340, 4294901760
      %v2487 = vsub.f32 %v1340, %v2486
      %2488 = vmatpush1.msra.mxu0 %v2487
      %2489 = vmatprep.subr.mxu0 0.0
      %v2490 = vand.u32 %v1341, 4294901760
      %v2491 = vsub.f32 %v1341, %v2490
      %2492 = vmatpush1.msra.mxu0 %v2491
      %2493 = vmatprep.subr.mxu0 0.0
      %v2494 = vand.u32 %v1342, 4294901760
      %v2495 = vsub.f32 %v1342, %v2494
      %2496 = vmatpush1.msra.mxu0 %v2495
      %v2497 = vand.u32 %v1154, 4294901760
      %v2498 = vsub.f32 %v1154, %v2497
      %2499 = vmatprep.mubr.f32.mxu0 %v2498
      %v2500 = vand.u32 %v1152, 4294901760
      %v2501 = vsub.f32 %v1152, %v2500
      %2502 = vmatmul.mubr.f32.gmra.mrb[0].mxu0 %v2501
      %v2503 = vpop.f32.mrb[0].mxu0
      %v2504 = vadd.f32 %v2149, %v2503
      %v2505 = vpop.f32.mrb[0].mxu0
      %v2506 = vand.u32 %v1158, 4294901760
      %v2507 = vsub.f32 %v1158, %v2506
      %2508 = vmatprep.mubr.f32.mxu0 %v2507
      %v2509 = vand.u32 %v1156, 4294901760
      %v2510 = vsub.f32 %v1156, %v2509
      %2511 = vmatmul.mubr.f32.gmra.mrb[0].mxu0 %v2510
      %v2512 = vpop.f32.mrb[0].mxu0
      %v2513 = vadd.f32 %v2156, %v2512
      %v2514 = vpop.f32.mrb[0].mxu0
      %v2515 = vand.u32 %v1162, 4294901760
      %v2516 = vsub.f32 %v1162, %v2515
      %2517 = vmatprep.mubr.f32.mxu0 %v2516
      %v2518 = vand.u32 %v1160, 4294901760
      %v2519 = vsub.f32 %v1160, %v2518
      %2520 = vmatmul.mubr.f32.gmra.mrb[0].mxu0 %v2519
      %v2521 = vpop.f32.mrb[0].mxu0
      %v2522 = vadd.f32 %v2163, %v2521
      %v2523 = vpop.f32.mrb[0].mxu0
      %v2524 = vand.u32 %v1166, 4294901760
      %v2525 = vsub.f32 %v1166, %v2524
      %2526 = vmatprep.mubr.f32.mxu0 %v2525
      %v2527 = vand.u32 %v1164, 4294901760
      %v2528 = vsub.f32 %v1164, %v2527
      %2529 = vmatmul.mubr.f32.gmra.mrb[0].mxu0 %v2528
      %v2530 = vpop.f32.mrb[0].mxu0
      %v2531 = vadd.f32 %v2170, %v2530
      %v2532 = vpop.f32.mrb[0].mxu0
      %v2533 = vand.u32 %v1170, 4294901760
      %v2534 = vsub.f32 %v1170, %v2533
      %2535 = vmatprep.mubr.f32.mxu0 %v2534
      %v2536 = vand.u32 %v1168, 4294901760
      %v2537 = vsub.f32 %v1168, %v2536
      %2538 = vmatmul.mubr.f32.gmra.mrb[0].mxu0 %v2537
      %v2539 = vpop.f32.mrb[0].mxu0
      %v2540 = vadd.f32 %v2177, %v2539
      %v2541 = vpop.f32.mrb[0].mxu0
      %v2542 = vand.u32 %v1174, 4294901760
      %v2543 = vsub.f32 %v1174, %v2542
      %2544 = vmatprep.mubr.f32.mxu0 %v2543
      %v2545 = vand.u32 %v1172, 4294901760
      %v2546 = vsub.f32 %v1172, %v2545
      %2547 = vmatmul.mubr.f32.gmra.mrb[0].mxu0 %v2546
      %v2548 = vpop.f32.mrb[0].mxu0
      %v2549 = vadd.f32 %v2184, %v2548
      %v2550 = vpop.f32.mrb[0].mxu0
      %v2551 = vand.u32 %v1178, 4294901760
      %v2552 = vsub.f32 %v1178, %v2551
      %2553 = vmatprep.mubr.f32.mxu0 %v2552
      %v2554 = vand.u32 %v1176, 4294901760
      %v2555 = vsub.f32 %v1176, %v2554
      %2556 = vmatmul.mubr.f32.gmra.mrb[0].mxu0 %v2555
      %v2557 = vpop.f32.mrb[0].mxu0
      %v2558 = vadd.f32 %v2191, %v2557
      %v2559 = vpop.f32.mrb[0].mxu0
      %v2560 = vand.u32 %v1182, 4294901760
      %v2561 = vsub.f32 %v1182, %v2560
      %2562 = vmatprep.mubr.f32.mxu0 %v2561
      %v2563 = vand.u32 %v1180, 4294901760
      %v2564 = vsub.f32 %v1180, %v2563
      %2565 = vmatmul.mubr.f32.gmra.mrb[0].mxu0 %v2564
      %v2566 = vpop.f32.mrb[0].mxu0
      %v2567 = vadd.f32 %v2198, %v2566
      %v2568 = vpop.f32.mrb[0].mxu0
      %v2569 = vand.u32 %v1186, 4294901760
      %v2570 = vsub.f32 %v1186, %v2569
      %2571 = vmatprep.mubr.f32.mxu0 %v2570
      %v2572 = vand.u32 %v1184, 4294901760
      %v2573 = vsub.f32 %v1184, %v2572
      %2574 = vmatmul.mubr.f32.gmra.mrb[0].mxu0 %v2573
      %v2575 = vpop.f32.mrb[0].mxu0
      %v2576 = vadd.f32 %v2205, %v2575
      %v2577 = vpop.f32.mrb[0].mxu0
      %v2578 = vand.u32 %v1190, 4294901760
      %v2579 = vsub.f32 %v1190, %v2578
      %2580 = vmatprep.mubr.f32.mxu0 %v2579
      %v2581 = vand.u32 %v1188, 4294901760
      %v2582 = vsub.f32 %v1188, %v2581
      %2583 = vmatmul.mubr.f32.gmra.mrb[0].mxu0 %v2582
      %v2584 = vpop.f32.mrb[0].mxu0
      %v2585 = vadd.f32 %v2212, %v2584
      %v2586 = vpop.f32.mrb[0].mxu0
      %v2587 = vand.u32 %v1194, 4294901760
      %v2588 = vsub.f32 %v1194, %v2587
      %2589 = vmatprep.mubr.f32.mxu0 %v2588
      %v2590 = vand.u32 %v1192, 4294901760
      %v2591 = vsub.f32 %v1192, %v2590
      %2592 = vmatmul.mubr.f32.gmra.mrb[0].mxu0 %v2591
      %v2593 = vpop.f32.mrb[0].mxu0
      %v2594 = vadd.f32 %v2219, %v2593
      %v2595 = vpop.f32.mrb[0].mxu0
      %v2596 = vand.u32 %v1198, 4294901760
      %v2597 = vsub.f32 %v1198, %v2596
      %2598 = vmatprep.mubr.f32.mxu0 %v2597
      %v2599 = vand.u32 %v1196, 4294901760
      %v2600 = vsub.f32 %v1196, %v2599
      %2601 = vmatmul.mubr.f32.gmra.mrb[0].mxu0 %v2600
      %v2602 = vpop.f32.mrb[0].mxu0
      %v2603 = vadd.f32 %v2226, %v2602
      %v2604 = vpop.f32.mrb[0].mxu0
      %v2605 = vand.u32 %v1202, 4294901760
      %v2606 = vsub.f32 %v1202, %v2605
      %2607 = vmatprep.mubr.f32.mxu0 %v2606
      %v2608 = vand.u32 %v1200, 4294901760
      %v2609 = vsub.f32 %v1200, %v2608
      %2610 = vmatmul.mubr.f32.gmra.mrb[0].mxu0 %v2609
      %v2611 = vpop.f32.mrb[0].mxu0
      %v2612 = vadd.f32 %v2233, %v2611
      %v2613 = vpop.f32.mrb[0].mxu0
      %v2614 = vand.u32 %v1206, 4294901760
      %v2615 = vsub.f32 %v1206, %v2614
      %2616 = vmatprep.mubr.f32.mxu0 %v2615
      %v2617 = vand.u32 %v1204, 4294901760
      %v2618 = vsub.f32 %v1204, %v2617
      %2619 = vmatmul.mubr.f32.gmra.mrb[0].mxu0 %v2618
      %v2620 = vpop.f32.mrb[0].mxu0
      %v2621 = vadd.f32 %v2240, %v2620
      %v2622 = vpop.f32.mrb[0].mxu0
      %v2623 = vand.u32 %v1210, 4294901760
      %v2624 = vsub.f32 %v1210, %v2623
      %2625 = vmatprep.mubr.f32.mxu0 %v2624
      %v2626 = vand.u32 %v1208, 4294901760
      %v2627 = vsub.f32 %v1208, %v2626
      %2628 = vmatmul.mubr.f32.gmra.mrb[0].mxu0 %v2627
      %v2629 = vpop.f32.mrb[0].mxu0
      %v2630 = vadd.f32 %v2247, %v2629
      %v2631 = vpop.f32.mrb[0].mxu0
      %v2632 = vand.u32 %v1214, 4294901760
      %v2633 = vsub.f32 %v1214, %v2632
      %2634 = vmatprep.mubr.f32.mxu0 %v2633
      %v2635 = vand.u32 %v1212, 4294901760
      %v2636 = vsub.f32 %v1212, %v2635
      %2637 = vmatmul.mubr.f32.gmra.mrb[0].mxu0 %v2636
      %v2638 = vpop.f32.mrb[0].mxu0
      %v2639 = vadd.f32 %v2254, %v2638
      %v2640 = vpop.f32.mrb[0].mxu0
      %v2641 = vand.u32 %v1218, 4294901760
      %v2642 = vsub.f32 %v1218, %v2641
      %2643 = vmatprep.mubr.f32.mxu0 %v2642
      %v2644 = vand.u32 %v1216, 4294901760
      %v2645 = vsub.f32 %v1216, %v2644
      %2646 = vmatmul.mubr.f32.gmra.mrb[0].mxu0 %v2645
      %v2647 = vpop.f32.mrb[0].mxu0
      %v2648 = vadd.f32 %v2261, %v2647
      %v2649 = vpop.f32.mrb[0].mxu0
      %v2650 = vand.u32 %v1222, 4294901760
      %v2651 = vsub.f32 %v1222, %v2650
      %2652 = vmatprep.mubr.f32.mxu0 %v2651
      %v2653 = vand.u32 %v1220, 4294901760
      %v2654 = vsub.f32 %v1220, %v2653
      %2655 = vmatmul.mubr.f32.gmra.mrb[0].mxu0 %v2654
      %v2656 = vpop.f32.mrb[0].mxu0
      %v2657 = vadd.f32 %v2268, %v2656
      %v2658 = vpop.f32.mrb[0].mxu0
      %v2659 = vand.u32 %v1226, 4294901760
      %v2660 = vsub.f32 %v1226, %v2659
      %2661 = vmatprep.mubr.f32.mxu0 %v2660
      %v2662 = vand.u32 %v1224, 4294901760
      %v2663 = vsub.f32 %v1224, %v2662
      %2664 = vmatmul.mubr.f32.gmra.mrb[0].mxu0 %v2663
      %v2665 = vpop.f32.mrb[0].mxu0
      %v2666 = vadd.f32 %v2275, %v2665
      %v2667 = vpop.f32.mrb[0].mxu0
      %v2668 = vand.u32 %v1230, 4294901760
      %v2669 = vsub.f32 %v1230, %v2668
      %2670 = vmatprep.mubr.f32.mxu0 %v2669
      %v2671 = vand.u32 %v1228, 4294901760
      %v2672 = vsub.f32 %v1228, %v2671
      %2673 = vmatmul.mubr.f32.gmra.mrb[0].mxu0 %v2672
      %v2674 = vpop.f32.mrb[0].mxu0
      %v2675 = vadd.f32 %v2282, %v2674
      %v2676 = vpop.f32.mrb[0].mxu0
      %v2677 = vand.u32 %v1234, 4294901760
      %v2678 = vsub.f32 %v1234, %v2677
      %2679 = vmatprep.mubr.f32.mxu0 %v2678
      %v2680 = vand.u32 %v1232, 4294901760
      %v2681 = vsub.f32 %v1232, %v2680
      %2682 = vmatmul.mubr.f32.gmra.mrb[0].mxu0 %v2681
      %v2683 = vpop.f32.mrb[0].mxu0
      %v2684 = vadd.f32 %v2289, %v2683
      %v2685 = vpop.f32.mrb[0].mxu0
      %v2686 = vand.u32 %v1238, 4294901760
      %v2687 = vsub.f32 %v1238, %v2686
      %2688 = vmatprep.mubr.f32.mxu0 %v2687
      %v2689 = vand.u32 %v1236, 4294901760
      %v2690 = vsub.f32 %v1236, %v2689
      %2691 = vmatmul.mubr.f32.gmra.mrb[0].mxu0 %v2690
      %v2692 = vpop.f32.mrb[0].mxu0
      %v2693 = vadd.f32 %v2296, %v2692
      %v2694 = vpop.f32.mrb[0].mxu0
      %v2695 = vand.u32 %v1242, 4294901760
      %v2696 = vsub.f32 %v1242, %v2695
      %2697 = vmatprep.mubr.f32.mxu0 %v2696
      %v2698 = vand.u32 %v1240, 4294901760
      %v2699 = vsub.f32 %v1240, %v2698
      %2700 = vmatmul.mubr.f32.gmra.mrb[0].mxu0 %v2699
      %v2701 = vpop.f32.mrb[0].mxu0
      %v2702 = vadd.f32 %v2303, %v2701
      %v2703 = vpop.f32.mrb[0].mxu0
      %v2704 = vand.u32 %v1246, 4294901760
      %v2705 = vsub.f32 %v1246, %v2704
      %2706 = vmatprep.mubr.f32.mxu0 %v2705
      %v2707 = vand.u32 %v1244, 4294901760
      %v2708 = vsub.f32 %v1244, %v2707
      %2709 = vmatmul.mubr.f32.gmra.mrb[0].mxu0 %v2708
      %v2710 = vpop.f32.mrb[0].mxu0
      %v2711 = vadd.f32 %v2310, %v2710
      %v2712 = vpop.f32.mrb[0].mxu0
      %v2713 = vand.u32 %v1250, 4294901760
      %v2714 = vsub.f32 %v1250, %v2713
      %2715 = vmatprep.mubr.f32.mxu0 %v2714
      %v2716 = vand.u32 %v1248, 4294901760
      %v2717 = vsub.f32 %v1248, %v2716
      %2718 = vmatmul.mubr.f32.gmra.mrb[0].mxu0 %v2717
      %v2719 = vpop.f32.mrb[0].mxu0
      %v2720 = vadd.f32 %v2317, %v2719
      %v2721 = vpop.f32.mrb[0].mxu0
      %v2722 = vand.u32 %v1254, 4294901760
      %v2723 = vsub.f32 %v1254, %v2722
      %2724 = vmatprep.mubr.f32.mxu0 %v2723
      %v2725 = vand.u32 %v1252, 4294901760
      %v2726 = vsub.f32 %v1252, %v2725
      %2727 = vmatmul.mubr.f32.gmra.mrb[0].mxu0 %v2726
      %v2728 = vpop.f32.mrb[0].mxu0
      %v2729 = vadd.f32 %v2324, %v2728
      %v2730 = vpop.f32.mrb[0].mxu0
      %v2731 = vand.u32 %v1258, 4294901760
      %v2732 = vsub.f32 %v1258, %v2731
      %2733 = vmatprep.mubr.f32.mxu0 %v2732
      %v2734 = vand.u32 %v1256, 4294901760
      %v2735 = vsub.f32 %v1256, %v2734
      %2736 = vmatmul.mubr.f32.gmra.mrb[0].mxu0 %v2735
      %v2737 = vpop.f32.mrb[0].mxu0
      %v2738 = vadd.f32 %v2331, %v2737
      %v2739 = vpop.f32.mrb[0].mxu0
      %v2740 = vand.u32 %v1262, 4294901760
      %v2741 = vsub.f32 %v1262, %v2740
      %2742 = vmatprep.mubr.f32.mxu0 %v2741
      %v2743 = vand.u32 %v1260, 4294901760
      %v2744 = vsub.f32 %v1260, %v2743
      %2745 = vmatmul.mubr.f32.gmra.mrb[0].mxu0 %v2744
      %v2746 = vpop.f32.mrb[0].mxu0
      %v2747 = vadd.f32 %v2338, %v2746
      %v2748 = vpop.f32.mrb[0].mxu0
      %v2749 = vand.u32 %v1266, 4294901760
      %v2750 = vsub.f32 %v1266, %v2749
      %2751 = vmatprep.mubr.f32.mxu0 %v2750
      %v2752 = vand.u32 %v1264, 4294901760
      %v2753 = vsub.f32 %v1264, %v2752
      %2754 = vmatmul.mubr.f32.gmra.mrb[0].mxu0 %v2753
      %v2755 = vpop.f32.mrb[0].mxu0
      %v2756 = vadd.f32 %v2345, %v2755
      %v2757 = vpop.f32.mrb[0].mxu0
      %v2758 = vand.u32 %v1270, 4294901760
      %v2759 = vsub.f32 %v1270, %v2758
      %2760 = vmatprep.mubr.f32.mxu0 %v2759
      %v2761 = vand.u32 %v1268, 4294901760
      %v2762 = vsub.f32 %v1268, %v2761
      %2763 = vmatmul.mubr.f32.gmra.mrb[0].mxu0 %v2762
      %v2764 = vpop.f32.mrb[0].mxu0
      %v2765 = vadd.f32 %v2352, %v2764
      %v2766 = vpop.f32.mrb[0].mxu0
      %v2767 = vand.u32 %v1274, 4294901760
      %v2768 = vsub.f32 %v1274, %v2767
      %2769 = vmatprep.mubr.f32.mxu0 %v2768
      %v2770 = vand.u32 %v1272, 4294901760
      %v2771 = vsub.f32 %v1272, %v2770
      %2772 = vmatmul.mubr.f32.gmra.mrb[0].mxu0 %v2771
      %v2773 = vpop.f32.mrb[0].mxu0
      %v2774 = vadd.f32 %v2359, %v2773
      %v2775 = vpop.f32.mrb[0].mxu0
      %v2776 = vand.u32 %v1278, 4294901760
      %v2777 = vsub.f32 %v1278, %v2776
      %2778 = vmatprep.mubr.f32.mxu0 %v2777
      %v2779 = vand.u32 %v1276, 4294901760
      %v2780 = vsub.f32 %v1276, %v2779
      %2781 = vmatmul.mubr.f32.gmra.mrb[0].mxu0 %v2780
      %v2782 = vpop.f32.mrb[0].mxu0
      %v2783 = vadd.f32 %v2366, %v2782
      %v2784 = vpop.f32.mrb[0].mxu0
      %2785 = vdwg.mxu0
      %2786 = vmatprep.subr.mxu0 0.0
      %v2787 = vand.u32 %v1311, 4294901760
      %2788 = vmatpush1.msra.mxu0 %v2787
      %2789 = vmatprep.subr.mxu0 0.0
      %v2790 = vand.u32 %v1312, 4294901760
      %2791 = vmatpush1.msra.mxu0 %v2790
      %2792 = vmatprep.subr.mxu0 0.0
      %v2793 = vand.u32 %v1313, 4294901760
      %2794 = vmatpush1.msra.mxu0 %v2793
      %2795 = vmatprep.subr.mxu0 0.0
      %v2796 = vand.u32 %v1314, 4294901760
      %2797 = vmatpush1.msra.mxu0 %v2796
      %2798 = vmatprep.subr.mxu0 0.0
      %v2799 = vand.u32 %v1315, 4294901760
      %2800 = vmatpush1.msra.mxu0 %v2799
      %2801 = vmatprep.subr.mxu0 0.0
      %v2802 = vand.u32 %v1316, 4294901760
      %2803 = vmatpush1.msra.mxu0 %v2802
      %2804 = vmatprep.subr.mxu0 0.0
      %v2805 = vand.u32 %v1317, 4294901760
      %2806 = vmatpush1.msra.mxu0 %v2805
      %2807 = vmatprep.subr.mxu0 0.0
      %v2808 = vand.u32 %v1318, 4294901760
      %2809 = vmatpush1.msra.mxu0 %v2808
      %2810 = vmatprep.subr.mxu0 0.0
      %v2811 = vand.u32 %v1319, 4294901760
      %2812 = vmatpush1.msra.mxu0 %v2811
      %2813 = vmatprep.subr.mxu0 0.0
      %v2814 = vand.u32 %v1320, 4294901760
      %2815 = vmatpush1.msra.mxu0 %v2814
      %2816 = vmatprep.subr.mxu0 0.0
      %v2817 = vand.u32 %v1321, 4294901760
      %2818 = vmatpush1.msra.mxu0 %v2817
      %2819 = vmatprep.subr.mxu0 0.0
      %v2820 = vand.u32 %v1322, 4294901760
      %2821 = vmatpush1.msra.mxu0 %v2820
      %2822 = vmatprep.subr.mxu0 0.0
      %v2823 = vand.u32 %v1323, 4294901760
      %2824 = vmatpush1.msra.mxu0 %v2823
      %2825 = vmatprep.subr.mxu0 0.0
      %v2826 = vand.u32 %v1324, 4294901760
      %2827 = vmatpush1.msra.mxu0 %v2826
      %2828 = vmatprep.subr.mxu0 0.0
      %v2829 = vand.u32 %v1325, 4294901760
      %2830 = vmatpush1.msra.mxu0 %v2829
      %2831 = vmatprep.subr.mxu0 0.0
      %v2832 = vand.u32 %v1326, 4294901760
      %2833 = vmatpush1.msra.mxu0 %v2832
      %2834 = vmatprep.subr.mxu0 0.0
      %v2835 = vand.u32 %v1327, 4294901760
      %2836 = vmatpush1.msra.mxu0 %v2835
      %2837 = vmatprep.subr.mxu0 0.0
      %v2838 = vand.u32 %v1328, 4294901760
      %2839 = vmatpush1.msra.mxu0 %v2838
      %2840 = vmatprep.subr.mxu0 0.0
      %v2841 = vand.u32 %v1329, 4294901760
      %2842 = vmatpush1.msra.mxu0 %v2841
      %2843 = vmatprep.subr.mxu0 0.0
      %v2844 = vand.u32 %v1330, 4294901760
      %2845 = vmatpush1.msra.mxu0 %v2844
      %2846 = vmatprep.subr.mxu0 0.0
      %v2847 = vand.u32 %v1331, 4294901760
      %2848 = vmatpush1.msra.mxu0 %v2847
      %2849 = vmatprep.subr.mxu0 0.0
      %v2850 = vand.u32 %v1332, 4294901760
      %2851 = vmatpush1.msra.mxu0 %v2850
      %2852 = vmatprep.subr.mxu0 0.0
      %v2853 = vand.u32 %v1333, 4294901760
      %2854 = vmatpush1.msra.mxu0 %v2853
      %2855 = vmatprep.subr.mxu0 0.0
      %v2856 = vand.u32 %v1334, 4294901760
      %2857 = vmatpush1.msra.mxu0 %v2856
      %2858 = vmatprep.subr.mxu0 0.0
      %v2859 = vand.u32 %v1335, 4294901760
      %2860 = vmatpush1.msra.mxu0 %v2859
      %2861 = vmatprep.subr.mxu0 0.0
      %v2862 = vand.u32 %v1336, 4294901760
      %2863 = vmatpush1.msra.mxu0 %v2862
      %2864 = vmatprep.subr.mxu0 0.0
      %v2865 = vand.u32 %v1337, 4294901760
      %2866 = vmatpush1.msra.mxu0 %v2865
      %2867 = vmatprep.subr.mxu0 0.0
      %v2868 = vand.u32 %v1338, 4294901760
      %2869 = vmatpush1.msra.mxu0 %v2868
      %2870 = vmatprep.subr.mxu0 0.0
      %v2871 = vand.u32 %v1339, 4294901760
      %2872 = vmatpush1.msra.mxu0 %v2871
      %2873 = vmatprep.subr.mxu0 0.0
      %v2874 = vand.u32 %v1340, 4294901760
      %2875 = vmatpush1.msra.mxu0 %v2874
      %2876 = vmatprep.subr.mxu0 0.0
      %v2877 = vand.u32 %v1341, 4294901760
      %2878 = vmatpush1.msra.mxu0 %v2877
      %2879 = vmatprep.subr.mxu0 0.0
      %v2880 = vand.u32 %v1342, 4294901760
      %2881 = vmatpush1.msra.mxu0 %v2880
      %v2882 = vand.u32 %v1154, 4294901760
      %v2883 = vsub.f32 %v1154, %v2882
      %v2884 = vand.u32 %v2883, 4294901760
      %2885 = vmatprep.mubr.f32.mxu0 %v2884
      %v2886 = vand.u32 %v1152, 4294901760
      %v2887 = vsub.f32 %v1152, %v2886
      %v2888 = vand.u32 %v2887, 4294901760
      %2889 = vmatmul.mubr.f32.gmra.mrb[0].mxu0 %v2888
      %v2890 = vpop.f32.mrb[0].mxu0
      %v2891 = vadd.f32 %v2504, %v2890
      %v2892 = vpop.f32.mrb[0].mxu0
      %v2893 = vand.u32 %v1158, 4294901760
      %v2894 = vsub.f32 %v1158, %v2893
      %v2895 = vand.u32 %v2894, 4294901760
      %2896 = vmatprep.mubr.f32.mxu0 %v2895
      %v2897 = vand.u32 %v1156, 4294901760
      %v2898 = vsub.f32 %v1156, %v2897
      %v2899 = vand.u32 %v2898, 4294901760
      %2900 = vmatmul.mubr.f32.gmra.mrb[0].mxu0 %v2899
      %v2901 = vpop.f32.mrb[0].mxu0
      %v2902 = vadd.f32 %v2513, %v2901
      %v2903 = vpop.f32.mrb[0].mxu0
      %v2904 = vand.u32 %v1162, 4294901760
      %v2905 = vsub.f32 %v1162, %v2904
      %v2906 = vand.u32 %v2905, 4294901760
      %2907 = vmatprep.mubr.f32.mxu0 %v2906
      %v2908 = vand.u32 %v1160, 4294901760
      %v2909 = vsub.f32 %v1160, %v2908
      %v2910 = vand.u32 %v2909, 4294901760
      %2911 = vmatmul.mubr.f32.gmra.mrb[0].mxu0 %v2910
      %v2912 = vpop.f32.mrb[0].mxu0
      %v2913 = vadd.f32 %v2522, %v2912
      %v2914 = vpop.f32.mrb[0].mxu0
      %v2915 = vand.u32 %v1166, 4294901760
      %v2916 = vsub.f32 %v1166, %v2915
      %v2917 = vand.u32 %v2916, 4294901760
      %2918 = vmatprep.mubr.f32.mxu0 %v2917
      %v2919 = vand.u32 %v1164, 4294901760
      %v2920 = vsub.f32 %v1164, %v2919
      %v2921 = vand.u32 %v2920, 4294901760
      %2922 = vmatmul.mubr.f32.gmra.mrb[0].mxu0 %v2921
      %v2923 = vpop.f32.mrb[0].mxu0
      %v2924 = vadd.f32 %v2531, %v2923
      %v2925 = vpop.f32.mrb[0].mxu0
      %v2926 = vand.u32 %v1170, 4294901760
      %v2927 = vsub.f32 %v1170, %v2926
      %v2928 = vand.u32 %v2927, 4294901760
      %2929 = vmatprep.mubr.f32.mxu0 %v2928
      %v2930 = vand.u32 %v1168, 4294901760
      %v2931 = vsub.f32 %v1168, %v2930
      %v2932 = vand.u32 %v2931, 4294901760
      %2933 = vmatmul.mubr.f32.gmra.mrb[0].mxu0 %v2932
      %v2934 = vpop.f32.mrb[0].mxu0
      %v2935 = vadd.f32 %v2540, %v2934
      %v2936 = vpop.f32.mrb[0].mxu0
      %v2937 = vand.u32 %v1174, 4294901760
      %v2938 = vsub.f32 %v1174, %v2937
      %v2939 = vand.u32 %v2938, 4294901760
      %2940 = vmatprep.mubr.f32.mxu0 %v2939
      %v2941 = vand.u32 %v1172, 4294901760
      %v2942 = vsub.f32 %v1172, %v2941
      %v2943 = vand.u32 %v2942, 4294901760
      %2944 = vmatmul.mubr.f32.gmra.mrb[0].mxu0 %v2943
      %v2945 = vpop.f32.mrb[0].mxu0
      %v2946 = vadd.f32 %v2549, %v2945
      %v2947 = vpop.f32.mrb[0].mxu0
      %v2948 = vand.u32 %v1178, 4294901760
      %v2949 = vsub.f32 %v1178, %v2948
      %v2950 = vand.u32 %v2949, 4294901760
      %2951 = vmatprep.mubr.f32.mxu0 %v2950
      %v2952 = vand.u32 %v1176, 4294901760
      %v2953 = vsub.f32 %v1176, %v2952
      %v2954 = vand.u32 %v2953, 4294901760
      %2955 = vmatmul.mubr.f32.gmra.mrb[0].mxu0 %v2954
      %v2956 = vpop.f32.mrb[0].mxu0
      %v2957 = vadd.f32 %v2558, %v2956
      %v2958 = vpop.f32.mrb[0].mxu0
      %v2959 = vand.u32 %v1182, 4294901760
      %v2960 = vsub.f32 %v1182, %v2959
      %v2961 = vand.u32 %v2960, 4294901760
      %2962 = vmatprep.mubr.f32.mxu0 %v2961
      %v2963 = vand.u32 %v1180, 4294901760
      %v2964 = vsub.f32 %v1180, %v2963
      %v2965 = vand.u32 %v2964, 4294901760
      %2966 = vmatmul.mubr.f32.gmra.mrb[0].mxu0 %v2965
      %v2967 = vpop.f32.mrb[0].mxu0
      %v2968 = vadd.f32 %v2567, %v2967
      %v2969 = vpop.f32.mrb[0].mxu0
      %v2970 = vand.u32 %v1186, 4294901760
      %v2971 = vsub.f32 %v1186, %v2970
      %v2972 = vand.u32 %v2971, 4294901760
      %2973 = vmatprep.mubr.f32.mxu0 %v2972
      %v2974 = vand.u32 %v1184, 4294901760
      %v2975 = vsub.f32 %v1184, %v2974
      %v2976 = vand.u32 %v2975, 4294901760
      %2977 = vmatmul.mubr.f32.gmra.mrb[0].mxu0 %v2976
      %v2978 = vpop.f32.mrb[0].mxu0
      %v2979 = vadd.f32 %v2576, %v2978
      %v2980 = vpop.f32.mrb[0].mxu0
      %v2981 = vand.u32 %v1190, 4294901760
      %v2982 = vsub.f32 %v1190, %v2981
      %v2983 = vand.u32 %v2982, 4294901760
      %2984 = vmatprep.mubr.f32.mxu0 %v2983
      %v2985 = vand.u32 %v1188, 4294901760
      %v2986 = vsub.f32 %v1188, %v2985
      %v2987 = vand.u32 %v2986, 4294901760
      %2988 = vmatmul.mubr.f32.gmra.mrb[0].mxu0 %v2987
      %v2989 = vpop.f32.mrb[0].mxu0
      %v2990 = vadd.f32 %v2585, %v2989
      %v2991 = vpop.f32.mrb[0].mxu0
      %v2992 = vand.u32 %v1194, 4294901760
      %v2993 = vsub.f32 %v1194, %v2992
      %v2994 = vand.u32 %v2993, 4294901760
      %2995 = vmatprep.mubr.f32.mxu0 %v2994
      %v2996 = vand.u32 %v1192, 4294901760
      %v2997 = vsub.f32 %v1192, %v2996
      %v2998 = vand.u32 %v2997, 4294901760
      %2999 = vmatmul.mubr.f32.gmra.mrb[0].mxu0 %v2998
      %v3000 = vpop.f32.mrb[0].mxu0
      %v3001 = vadd.f32 %v2594, %v3000
      %v3002 = vpop.f32.mrb[0].mxu0
      %v3003 = vand.u32 %v1198, 4294901760
      %v3004 = vsub.f32 %v1198, %v3003
      %v3005 = vand.u32 %v3004, 4294901760
      %3006 = vmatprep.mubr.f32.mxu0 %v3005
      %v3007 = vand.u32 %v1196, 4294901760
      %v3008 = vsub.f32 %v1196, %v3007
      %v3009 = vand.u32 %v3008, 4294901760
      %3010 = vmatmul.mubr.f32.gmra.mrb[0].mxu0 %v3009
      %v3011 = vpop.f32.mrb[0].mxu0
      %v3012 = vadd.f32 %v2603, %v3011
      %v3013 = vpop.f32.mrb[0].mxu0
      %v3014 = vand.u32 %v1202, 4294901760
      %v3015 = vsub.f32 %v1202, %v3014
      %v3016 = vand.u32 %v3015, 4294901760
      %3017 = vmatprep.mubr.f32.mxu0 %v3016
      %v3018 = vand.u32 %v1200, 4294901760
      %v3019 = vsub.f32 %v1200, %v3018
      %v3020 = vand.u32 %v3019, 4294901760
      %3021 = vmatmul.mubr.f32.gmra.mrb[0].mxu0 %v3020
      %v3022 = vpop.f32.mrb[0].mxu0
      %v3023 = vadd.f32 %v2612, %v3022
      %v3024 = vpop.f32.mrb[0].mxu0
      %v3025 = vand.u32 %v1206, 4294901760
      %v3026 = vsub.f32 %v1206, %v3025
      %v3027 = vand.u32 %v3026, 4294901760
      %3028 = vmatprep.mubr.f32.mxu0 %v3027
      %v3029 = vand.u32 %v1204, 4294901760
      %v3030 = vsub.f32 %v1204, %v3029
      %v3031 = vand.u32 %v3030, 4294901760
      %3032 = vmatmul.mubr.f32.gmra.mrb[0].mxu0 %v3031
      %v3033 = vpop.f32.mrb[0].mxu0
      %v3034 = vadd.f32 %v2621, %v3033
      %v3035 = vpop.f32.mrb[0].mxu0
      %v3036 = vand.u32 %v1210, 4294901760
      %v3037 = vsub.f32 %v1210, %v3036
      %v3038 = vand.u32 %v3037, 4294901760
      %3039 = vmatprep.mubr.f32.mxu0 %v3038
      %v3040 = vand.u32 %v1208, 4294901760
      %v3041 = vsub.f32 %v1208, %v3040
      %v3042 = vand.u32 %v3041, 4294901760
      %3043 = vmatmul.mubr.f32.gmra.mrb[0].mxu0 %v3042
      %v3044 = vpop.f32.mrb[0].mxu0
      %v3045 = vadd.f32 %v2630, %v3044
      %v3046 = vpop.f32.mrb[0].mxu0
      %v3047 = vand.u32 %v1214, 4294901760
      %v3048 = vsub.f32 %v1214, %v3047
      %v3049 = vand.u32 %v3048, 4294901760
      %3050 = vmatprep.mubr.f32.mxu0 %v3049
      %v3051 = vand.u32 %v1212, 4294901760
      %v3052 = vsub.f32 %v1212, %v3051
      %v3053 = vand.u32 %v3052, 4294901760
      %3054 = vmatmul.mubr.f32.gmra.mrb[0].mxu0 %v3053
      %v3055 = vpop.f32.mrb[0].mxu0
      %v3056 = vadd.f32 %v2639, %v3055
      %v3057 = vpop.f32.mrb[0].mxu0
      %v3058 = vand.u32 %v1218, 4294901760
      %v3059 = vsub.f32 %v1218, %v3058
      %v3060 = vand.u32 %v3059, 4294901760
      %3061 = vmatprep.mubr.f32.mxu0 %v3060
      %v3062 = vand.u32 %v1216, 4294901760
      %v3063 = vsub.f32 %v1216, %v3062
      %v3064 = vand.u32 %v3063, 4294901760
      %3065 = vmatmul.mubr.f32.gmra.mrb[0].mxu0 %v3064
      %v3066 = vpop.f32.mrb[0].mxu0
      %v3067 = vadd.f32 %v2648, %v3066
      %v3068 = vpop.f32.mrb[0].mxu0
      %v3069 = vand.u32 %v1222, 4294901760
      %v3070 = vsub.f32 %v1222, %v3069
      %v3071 = vand.u32 %v3070, 4294901760
      %3072 = vmatprep.mubr.f32.mxu0 %v3071
      %v3073 = vand.u32 %v1220, 4294901760
      %v3074 = vsub.f32 %v1220, %v3073
      %v3075 = vand.u32 %v3074, 4294901760
      %3076 = vmatmul.mubr.f32.gmra.mrb[0].mxu0 %v3075
      %v3077 = vpop.f32.mrb[0].mxu0
      %v3078 = vadd.f32 %v2657, %v3077
      %v3079 = vpop.f32.mrb[0].mxu0
      %v3080 = vand.u32 %v1226, 4294901760
      %v3081 = vsub.f32 %v1226, %v3080
      %v3082 = vand.u32 %v3081, 4294901760
      %3083 = vmatprep.mubr.f32.mxu0 %v3082
      %v3084 = vand.u32 %v1224, 4294901760
      %v3085 = vsub.f32 %v1224, %v3084
      %v3086 = vand.u32 %v3085, 4294901760
      %3087 = vmatmul.mubr.f32.gmra.mrb[0].mxu0 %v3086
      %v3088 = vpop.f32.mrb[0].mxu0
      %v3089 = vadd.f32 %v2666, %v3088
      %v3090 = vpop.f32.mrb[0].mxu0
      %v3091 = vand.u32 %v1230, 4294901760
      %v3092 = vsub.f32 %v1230, %v3091
      %v3093 = vand.u32 %v3092, 4294901760
      %3094 = vmatprep.mubr.f32.mxu0 %v3093
      %v3095 = vand.u32 %v1228, 4294901760
      %v3096 = vsub.f32 %v1228, %v3095
      %v3097 = vand.u32 %v3096, 4294901760
      %3098 = vmatmul.mubr.f32.gmra.mrb[0].mxu0 %v3097
      %v3099 = vpop.f32.mrb[0].mxu0
      %v3100 = vadd.f32 %v2675, %v3099
      %v3101 = vpop.f32.mrb[0].mxu0
      %v3102 = vand.u32 %v1234, 4294901760
      %v3103 = vsub.f32 %v1234, %v3102
      %v3104 = vand.u32 %v3103, 4294901760
      %3105 = vmatprep.mubr.f32.mxu0 %v3104
      %v3106 = vand.u32 %v1232, 4294901760
      %v3107 = vsub.f32 %v1232, %v3106
      %v3108 = vand.u32 %v3107, 4294901760
      %3109 = vmatmul.mubr.f32.gmra.mrb[0].mxu0 %v3108
      %v3110 = vpop.f32.mrb[0].mxu0
      %v3111 = vadd.f32 %v2684, %v3110
      %v3112 = vpop.f32.mrb[0].mxu0
      %v3113 = vand.u32 %v1238, 4294901760
      %v3114 = vsub.f32 %v1238, %v3113
      %v3115 = vand.u32 %v3114, 4294901760
      %3116 = vmatprep.mubr.f32.mxu0 %v3115
      %v3117 = vand.u32 %v1236, 4294901760
      %v3118 = vsub.f32 %v1236, %v3117
      %v3119 = vand.u32 %v3118, 4294901760
      %3120 = vmatmul.mubr.f32.gmra.mrb[0].mxu0 %v3119
      %v3121 = vpop.f32.mrb[0].mxu0
      %v3122 = vadd.f32 %v2693, %v3121
      %v3123 = vpop.f32.mrb[0].mxu0
      %v3124 = vand.u32 %v1242, 4294901760
      %v3125 = vsub.f32 %v1242, %v3124
      %v3126 = vand.u32 %v3125, 4294901760
      %3127 = vmatprep.mubr.f32.mxu0 %v3126
      %v3128 = vand.u32 %v1240, 4294901760
      %v3129 = vsub.f32 %v1240, %v3128
      %v3130 = vand.u32 %v3129, 4294901760
      %3131 = vmatmul.mubr.f32.gmra.mrb[0].mxu0 %v3130
      %v3132 = vpop.f32.mrb[0].mxu0
      %v3133 = vadd.f32 %v2702, %v3132
      %v3134 = vpop.f32.mrb[0].mxu0
      %v3135 = vand.u32 %v1246, 4294901760
      %v3136 = vsub.f32 %v1246, %v3135
      %v3137 = vand.u32 %v3136, 4294901760
      %3138 = vmatprep.mubr.f32.mxu0 %v3137
      %v3139 = vand.u32 %v1244, 4294901760
      %v3140 = vsub.f32 %v1244, %v3139
      %v3141 = vand.u32 %v3140, 4294901760
      %3142 = vmatmul.mubr.f32.gmra.mrb[0].mxu0 %v3141
      %v3143 = vpop.f32.mrb[0].mxu0
      %v3144 = vadd.f32 %v2711, %v3143
      %v3145 = vpop.f32.mrb[0].mxu0
      %v3146 = vand.u32 %v1250, 4294901760
      %v3147 = vsub.f32 %v1250, %v3146
      %v3148 = vand.u32 %v3147, 4294901760
      %3149 = vmatprep.mubr.f32.mxu0 %v3148
      %v3150 = vand.u32 %v1248, 4294901760
      %v3151 = vsub.f32 %v1248, %v3150
      %v3152 = vand.u32 %v3151, 4294901760
      %3153 = vmatmul.mubr.f32.gmra.mrb[0].mxu0 %v3152
      %v3154 = vpop.f32.mrb[0].mxu0
      %v3155 = vadd.f32 %v2720, %v3154
      %v3156 = vpop.f32.mrb[0].mxu0
      %v3157 = vand.u32 %v1254, 4294901760
      %v3158 = vsub.f32 %v1254, %v3157
      %v3159 = vand.u32 %v3158, 4294901760
      %3160 = vmatprep.mubr.f32.mxu0 %v3159
      %v3161 = vand.u32 %v1252, 4294901760
      %v3162 = vsub.f32 %v1252, %v3161
      %v3163 = vand.u32 %v3162, 4294901760
      %3164 = vmatmul.mubr.f32.gmra.mrb[0].mxu0 %v3163
      %v3165 = vpop.f32.mrb[0].mxu0
      %v3166 = vadd.f32 %v2729, %v3165
      %v3167 = vpop.f32.mrb[0].mxu0
      %v3168 = vand.u32 %v1258, 4294901760
      %v3169 = vsub.f32 %v1258, %v3168
      %v3170 = vand.u32 %v3169, 4294901760
      %3171 = vmatprep.mubr.f32.mxu0 %v3170
      %v3172 = vand.u32 %v1256, 4294901760
      %v3173 = vsub.f32 %v1256, %v3172
      %v3174 = vand.u32 %v3173, 4294901760
      %3175 = vmatmul.mubr.f32.gmra.mrb[0].mxu0 %v3174
      %v3176 = vpop.f32.mrb[0].mxu0
      %v3177 = vadd.f32 %v2738, %v3176
      %v3178 = vpop.f32.mrb[0].mxu0
      %v3179 = vand.u32 %v1262, 4294901760
      %v3180 = vsub.f32 %v1262, %v3179
      %v3181 = vand.u32 %v3180, 4294901760
      %3182 = vmatprep.mubr.f32.mxu0 %v3181
      %v3183 = vand.u32 %v1260, 4294901760
      %v3184 = vsub.f32 %v1260, %v3183
      %v3185 = vand.u32 %v3184, 4294901760
      %3186 = vmatmul.mubr.f32.gmra.mrb[0].mxu0 %v3185
      %v3187 = vpop.f32.mrb[0].mxu0
      %v3188 = vadd.f32 %v2747, %v3187
      %v3189 = vpop.f32.mrb[0].mxu0
      %v3190 = vand.u32 %v1266, 4294901760
      %v3191 = vsub.f32 %v1266, %v3190
      %v3192 = vand.u32 %v3191, 4294901760
      %3193 = vmatprep.mubr.f32.mxu0 %v3192
      %v3194 = vand.u32 %v1264, 4294901760
      %v3195 = vsub.f32 %v1264, %v3194
      %v3196 = vand.u32 %v3195, 4294901760
      %3197 = vmatmul.mubr.f32.gmra.mrb[0].mxu0 %v3196
      %v3198 = vpop.f32.mrb[0].mxu0
      %v3199 = vadd.f32 %v2756, %v3198
      %v3200 = vpop.f32.mrb[0].mxu0
      %v3201 = vand.u32 %v1270, 4294901760
      %v3202 = vsub.f32 %v1270, %v3201
      %v3203 = vand.u32 %v3202, 4294901760
      %3204 = vmatprep.mubr.f32.mxu0 %v3203
      %v3205 = vand.u32 %v1268, 4294901760
      %v3206 = vsub.f32 %v1268, %v3205
      %v3207 = vand.u32 %v3206, 4294901760
      %3208 = vmatmul.mubr.f32.gmra.mrb[0].mxu0 %v3207
      %v3209 = vpop.f32.mrb[0].mxu0
      %v3210 = vadd.f32 %v2765, %v3209
      %v3211 = vpop.f32.mrb[0].mxu0
      %v3212 = vand.u32 %v1274, 4294901760
      %v3213 = vsub.f32 %v1274, %v3212
      %v3214 = vand.u32 %v3213, 4294901760
      %3215 = vmatprep.mubr.f32.mxu0 %v3214
      %v3216 = vand.u32 %v1272, 4294901760
      %v3217 = vsub.f32 %v1272, %v3216
      %v3218 = vand.u32 %v3217, 4294901760
      %3219 = vmatmul.mubr.f32.gmra.mrb[0].mxu0 %v3218
      %v3220 = vpop.f32.mrb[0].mxu0
      %v3221 = vadd.f32 %v2774, %v3220
      %v3222 = vpop.f32.mrb[0].mxu0
      %v3223 = vand.u32 %v1278, 4294901760
      %v3224 = vsub.f32 %v1278, %v3223
      %v3225 = vand.u32 %v3224, 4294901760
      %3226 = vmatprep.mubr.f32.mxu0 %v3225
      %v3227 = vand.u32 %v1276, 4294901760
      %v3228 = vsub.f32 %v1276, %v3227
      %v3229 = vand.u32 %v3228, 4294901760
      %3230 = vmatmul.mubr.f32.gmra.mrb[0].mxu0 %v3229
      %v3231 = vpop.f32.mrb[0].mxu0
      %v3232 = vadd.f32 %v2783, %v3231
      %v3233 = vpop.f32.mrb[0].mxu0
      %3234 = vdwg.mxu0
      %3235 = vmatprep.subr.mxu0 0.0
      %v3236 = vand.u32 %v1311, 4294901760
      %v3237 = vsub.f32 %v1311, %v3236
      %v3238 = vand.u32 %v3237, 4294901760
      %3239 = vmatpush1.msra.mxu0 %v3238
      %3240 = vmatprep.subr.mxu0 0.0
      %v3241 = vand.u32 %v1312, 4294901760
      %v3242 = vsub.f32 %v1312, %v3241
      %v3243 = vand.u32 %v3242, 4294901760
      %3244 = vmatpush1.msra.mxu0 %v3243
      %3245 = vmatprep.subr.mxu0 0.0
      %v3246 = vand.u32 %v1313, 4294901760
      %v3247 = vsub.f32 %v1313, %v3246
      %v3248 = vand.u32 %v3247, 4294901760
      %3249 = vmatpush1.msra.mxu0 %v3248
      %3250 = vmatprep.subr.mxu0 0.0
      %v3251 = vand.u32 %v1314, 4294901760
      %v3252 = vsub.f32 %v1314, %v3251
      %v3253 = vand.u32 %v3252, 4294901760
      %3254 = vmatpush1.msra.mxu0 %v3253
      %3255 = vmatprep.subr.mxu0 0.0
      %v3256 = vand.u32 %v1315, 4294901760
      %v3257 = vsub.f32 %v1315, %v3256
      %v3258 = vand.u32 %v3257, 4294901760
      %3259 = vmatpush1.msra.mxu0 %v3258
      %3260 = vmatprep.subr.mxu0 0.0
      %v3261 = vand.u32 %v1316, 4294901760
      %v3262 = vsub.f32 %v1316, %v3261
      %v3263 = vand.u32 %v3262, 4294901760
      %3264 = vmatpush1.msra.mxu0 %v3263
      %3265 = vmatprep.subr.mxu0 0.0
      %v3266 = vand.u32 %v1317, 4294901760
      %v3267 = vsub.f32 %v1317, %v3266
      %v3268 = vand.u32 %v3267, 4294901760
      %3269 = vmatpush1.msra.mxu0 %v3268
      %3270 = vmatprep.subr.mxu0 0.0
      %v3271 = vand.u32 %v1318, 4294901760
      %v3272 = vsub.f32 %v1318, %v3271
      %v3273 = vand.u32 %v3272, 4294901760
      %3274 = vmatpush1.msra.mxu0 %v3273
      %3275 = vmatprep.subr.mxu0 0.0
      %v3276 = vand.u32 %v1319, 4294901760
      %v3277 = vsub.f32 %v1319, %v3276
      %v3278 = vand.u32 %v3277, 4294901760
      %3279 = vmatpush1.msra.mxu0 %v3278
      %3280 = vmatprep.subr.mxu0 0.0
      %v3281 = vand.u32 %v1320, 4294901760
      %v3282 = vsub.f32 %v1320, %v3281
      %v3283 = vand.u32 %v3282, 4294901760
      %3284 = vmatpush1.msra.mxu0 %v3283
      %3285 = vmatprep.subr.mxu0 0.0
      %v3286 = vand.u32 %v1321, 4294901760
      %v3287 = vsub.f32 %v1321, %v3286
      %v3288 = vand.u32 %v3287, 4294901760
      %3289 = vmatpush1.msra.mxu0 %v3288
      %3290 = vmatprep.subr.mxu0 0.0
      %v3291 = vand.u32 %v1322, 4294901760
      %v3292 = vsub.f32 %v1322, %v3291
      %v3293 = vand.u32 %v3292, 4294901760
      %3294 = vmatpush1.msra.mxu0 %v3293
      %3295 = vmatprep.subr.mxu0 0.0
      %v3296 = vand.u32 %v1323, 4294901760
      %v3297 = vsub.f32 %v1323, %v3296
      %v3298 = vand.u32 %v3297, 4294901760
      %3299 = vmatpush1.msra.mxu0 %v3298
      %3300 = vmatprep.subr.mxu0 0.0
      %v3301 = vand.u32 %v1324, 4294901760
      %v3302 = vsub.f32 %v1324, %v3301
      %v3303 = vand.u32 %v3302, 4294901760
      %3304 = vmatpush1.msra.mxu0 %v3303
      %3305 = vmatprep.subr.mxu0 0.0
      %v3306 = vand.u32 %v1325, 4294901760
      %v3307 = vsub.f32 %v1325, %v3306
      %v3308 = vand.u32 %v3307, 4294901760
      %3309 = vmatpush1.msra.mxu0 %v3308
      %3310 = vmatprep.subr.mxu0 0.0
      %v3311 = vand.u32 %v1326, 4294901760
      %v3312 = vsub.f32 %v1326, %v3311
      %v3313 = vand.u32 %v3312, 4294901760
      %3314 = vmatpush1.msra.mxu0 %v3313
      %3315 = vmatprep.subr.mxu0 0.0
      %v3316 = vand.u32 %v1327, 4294901760
      %v3317 = vsub.f32 %v1327, %v3316
      %v3318 = vand.u32 %v3317, 4294901760
      %3319 = vmatpush1.msra.mxu0 %v3318
      %3320 = vmatprep.subr.mxu0 0.0
      %v3321 = vand.u32 %v1328, 4294901760
      %v3322 = vsub.f32 %v1328, %v3321
      %v3323 = vand.u32 %v3322, 4294901760
      %3324 = vmatpush1.msra.mxu0 %v3323
      %3325 = vmatprep.subr.mxu0 0.0
      %v3326 = vand.u32 %v1329, 4294901760
      %v3327 = vsub.f32 %v1329, %v3326
      %v3328 = vand.u32 %v3327, 4294901760
      %3329 = vmatpush1.msra.mxu0 %v3328
      %3330 = vmatprep.subr.mxu0 0.0
      %v3331 = vand.u32 %v1330, 4294901760
      %v3332 = vsub.f32 %v1330, %v3331
      %v3333 = vand.u32 %v3332, 4294901760
      %3334 = vmatpush1.msra.mxu0 %v3333
      %3335 = vmatprep.subr.mxu0 0.0
      %v3336 = vand.u32 %v1331, 4294901760
      %v3337 = vsub.f32 %v1331, %v3336
      %v3338 = vand.u32 %v3337, 4294901760
      %3339 = vmatpush1.msra.mxu0 %v3338
      %3340 = vmatprep.subr.mxu0 0.0
      %v3341 = vand.u32 %v1332, 4294901760
      %v3342 = vsub.f32 %v1332, %v3341
      %v3343 = vand.u32 %v3342, 4294901760
      %3344 = vmatpush1.msra.mxu0 %v3343
      %3345 = vmatprep.subr.mxu0 0.0
      %v3346 = vand.u32 %v1333, 4294901760
      %v3347 = vsub.f32 %v1333, %v3346
      %v3348 = vand.u32 %v3347, 4294901760
      %3349 = vmatpush1.msra.mxu0 %v3348
      %3350 = vmatprep.subr.mxu0 0.0
      %v3351 = vand.u32 %v1334, 4294901760
      %v3352 = vsub.f32 %v1334, %v3351
      %v3353 = vand.u32 %v3352, 4294901760
      %3354 = vmatpush1.msra.mxu0 %v3353
      %3355 = vmatprep.subr.mxu0 0.0
      %v3356 = vand.u32 %v1335, 4294901760
      %v3357 = vsub.f32 %v1335, %v3356
      %v3358 = vand.u32 %v3357, 4294901760
      %3359 = vmatpush1.msra.mxu0 %v3358
      %3360 = vmatprep.subr.mxu0 0.0
      %v3361 = vand.u32 %v1336, 4294901760
      %v3362 = vsub.f32 %v1336, %v3361
      %v3363 = vand.u32 %v3362, 4294901760
      %3364 = vmatpush1.msra.mxu0 %v3363
      %3365 = vmatprep.subr.mxu0 0.0
      %v3366 = vand.u32 %v1337, 4294901760
      %v3367 = vsub.f32 %v1337, %v3366
      %v3368 = vand.u32 %v3367, 4294901760
      %3369 = vmatpush1.msra.mxu0 %v3368
      %3370 = vmatprep.subr.mxu0 0.0
      %v3371 = vand.u32 %v1338, 4294901760
      %v3372 = vsub.f32 %v1338, %v3371
      %v3373 = vand.u32 %v3372, 4294901760
      %3374 = vmatpush1.msra.mxu0 %v3373
      %3375 = vmatprep.subr.mxu0 0.0
      %v3376 = vand.u32 %v1339, 4294901760
      %v3377 = vsub.f32 %v1339, %v3376
      %v3378 = vand.u32 %v3377, 4294901760
      %3379 = vmatpush1.msra.mxu0 %v3378
      %3380 = vmatprep.subr.mxu0 0.0
      %v3381 = vand.u32 %v1340, 4294901760
      %v3382 = vsub.f32 %v1340, %v3381
      %v3383 = vand.u32 %v3382, 4294901760
      %3384 = vmatpush1.msra.mxu0 %v3383
      %3385 = vmatprep.subr.mxu0 0.0
      %v3386 = vand.u32 %v1341, 4294901760
      %v3387 = vsub.f32 %v1341, %v3386
      %v3388 = vand.u32 %v3387, 4294901760
      %3389 = vmatpush1.msra.mxu0 %v3388
      %3390 = vmatprep.subr.mxu0 0.0
      %v3391 = vand.u32 %v1342, 4294901760
      %v3392 = vsub.f32 %v1342, %v3391
      %v3393 = vand.u32 %v3392, 4294901760
      %3394 = vmatpush1.msra.mxu0 %v3393
      %v3395 = vand.u32 %v1154, 4294901760
      %3396 = vmatprep.mubr.f32.mxu0 %v3395
      %v3397 = vand.u32 %v1152, 4294901760
      %3398 = vmatmul.mubr.f32.gmra.mrb[0].mxu0 %v3397
      %v3399 = vpop.f32.mrb[0].mxu0
      %v3400 = vadd.f32 %v2891, %v3399
      %v3401 = vpop.f32.mrb[0].mxu0
      %v3402 = vand.u32 %v1158, 4294901760
      %3403 = vmatprep.mubr.f32.mxu0 %v3402
      %v3404 = vand.u32 %v1156, 4294901760
      %3405 = vmatmul.mubr.f32.gmra.mrb[0].mxu0 %v3404
      %v3406 = vpop.f32.mrb[0].mxu0
      %v3407 = vadd.f32 %v2902, %v3406
      %v3408 = vpop.f32.mrb[0].mxu0
      %v3409 = vand.u32 %v1162, 4294901760
      %3410 = vmatprep.mubr.f32.mxu0 %v3409
      %v3411 = vand.u32 %v1160, 4294901760
      %3412 = vmatmul.mubr.f32.gmra.mrb[0].mxu0 %v3411
      %v3413 = vpop.f32.mrb[0].mxu0
      %v3414 = vadd.f32 %v2913, %v3413
      %v3415 = vpop.f32.mrb[0].mxu0
      %v3416 = vand.u32 %v1166, 4294901760
      %3417 = vmatprep.mubr.f32.mxu0 %v3416
      %v3418 = vand.u32 %v1164, 4294901760
      %3419 = vmatmul.mubr.f32.gmra.mrb[0].mxu0 %v3418
      %v3420 = vpop.f32.mrb[0].mxu0
      %v3421 = vadd.f32 %v2924, %v3420
      %v3422 = vpop.f32.mrb[0].mxu0
      %v3423 = vand.u32 %v1170, 4294901760
      %3424 = vmatprep.mubr.f32.mxu0 %v3423
      %v3425 = vand.u32 %v1168, 4294901760
      %3426 = vmatmul.mubr.f32.gmra.mrb[0].mxu0 %v3425
      %v3427 = vpop.f32.mrb[0].mxu0
      %v3428 = vadd.f32 %v2935, %v3427
      %v3429 = vpop.f32.mrb[0].mxu0
      %v3430 = vand.u32 %v1174, 4294901760
      %3431 = vmatprep.mubr.f32.mxu0 %v3430
      %v3432 = vand.u32 %v1172, 4294901760
      %3433 = vmatmul.mubr.f32.gmra.mrb[0].mxu0 %v3432
      %v3434 = vpop.f32.mrb[0].mxu0
      %v3435 = vadd.f32 %v2946, %v3434
      %v3436 = vpop.f32.mrb[0].mxu0
      %v3437 = vand.u32 %v1178, 4294901760
      %3438 = vmatprep.mubr.f32.mxu0 %v3437
      %v3439 = vand.u32 %v1176, 4294901760
      %3440 = vmatmul.mubr.f32.gmra.mrb[0].mxu0 %v3439
      %v3441 = vpop.f32.mrb[0].mxu0
      %v3442 = vadd.f32 %v2957, %v3441
      %v3443 = vpop.f32.mrb[0].mxu0
      %v3444 = vand.u32 %v1182, 4294901760
      %3445 = vmatprep.mubr.f32.mxu0 %v3444
      %v3446 = vand.u32 %v1180, 4294901760
      %3447 = vmatmul.mubr.f32.gmra.mrb[0].mxu0 %v3446
      %v3448 = vpop.f32.mrb[0].mxu0
      %v3449 = vadd.f32 %v2968, %v3448
      %v3450 = vpop.f32.mrb[0].mxu0
      %v3451 = vand.u32 %v1186, 4294901760
      %3452 = vmatprep.mubr.f32.mxu0 %v3451
      %v3453 = vand.u32 %v1184, 4294901760
      %3454 = vmatmul.mubr.f32.gmra.mrb[0].mxu0 %v3453
      %v3455 = vpop.f32.mrb[0].mxu0
      %v3456 = vadd.f32 %v2979, %v3455
      %v3457 = vpop.f32.mrb[0].mxu0
      %v3458 = vand.u32 %v1190, 4294901760
      %3459 = vmatprep.mubr.f32.mxu0 %v3458
      %v3460 = vand.u32 %v1188, 4294901760
      %3461 = vmatmul.mubr.f32.gmra.mrb[0].mxu0 %v3460
      %v3462 = vpop.f32.mrb[0].mxu0
      %v3463 = vadd.f32 %v2990, %v3462
      %v3464 = vpop.f32.mrb[0].mxu0
      %v3465 = vand.u32 %v1194, 4294901760
      %3466 = vmatprep.mubr.f32.mxu0 %v3465
      %v3467 = vand.u32 %v1192, 4294901760
      %3468 = vmatmul.mubr.f32.gmra.mrb[0].mxu0 %v3467
      %v3469 = vpop.f32.mrb[0].mxu0
      %v3470 = vadd.f32 %v3001, %v3469
      %v3471 = vpop.f32.mrb[0].mxu0
      %v3472 = vand.u32 %v1198, 4294901760
      %3473 = vmatprep.mubr.f32.mxu0 %v3472
      %v3474 = vand.u32 %v1196, 4294901760
      %3475 = vmatmul.mubr.f32.gmra.mrb[0].mxu0 %v3474
      %v3476 = vpop.f32.mrb[0].mxu0
      %v3477 = vadd.f32 %v3012, %v3476
      %v3478 = vpop.f32.mrb[0].mxu0
      %v3479 = vand.u32 %v1202, 4294901760
      %3480 = vmatprep.mubr.f32.mxu0 %v3479
      %v3481 = vand.u32 %v1200, 4294901760
      %3482 = vmatmul.mubr.f32.gmra.mrb[0].mxu0 %v3481
      %v3483 = vpop.f32.mrb[0].mxu0
      %v3484 = vadd.f32 %v3023, %v3483
      %v3485 = vpop.f32.mrb[0].mxu0
      %v3486 = vand.u32 %v1206, 4294901760
      %3487 = vmatprep.mubr.f32.mxu0 %v3486
      %v3488 = vand.u32 %v1204, 4294901760
      %3489 = vmatmul.mubr.f32.gmra.mrb[0].mxu0 %v3488
      %v3490 = vpop.f32.mrb[0].mxu0
      %v3491 = vadd.f32 %v3034, %v3490
      %v3492 = vpop.f32.mrb[0].mxu0
      %v3493 = vand.u32 %v1210, 4294901760
      %3494 = vmatprep.mubr.f32.mxu0 %v3493
      %v3495 = vand.u32 %v1208, 4294901760
      %3496 = vmatmul.mubr.f32.gmra.mrb[0].mxu0 %v3495
      %v3497 = vpop.f32.mrb[0].mxu0
      %v3498 = vadd.f32 %v3045, %v3497
      %v3499 = vpop.f32.mrb[0].mxu0
      %v3500 = vand.u32 %v1214, 4294901760
      %3501 = vmatprep.mubr.f32.mxu0 %v3500
      %v3502 = vand.u32 %v1212, 4294901760
      %3503 = vmatmul.mubr.f32.gmra.mrb[0].mxu0 %v3502
      %v3504 = vpop.f32.mrb[0].mxu0
      %v3505 = vadd.f32 %v3056, %v3504
      %v3506 = vpop.f32.mrb[0].mxu0
      %v3507 = vand.u32 %v1218, 4294901760
      %3508 = vmatprep.mubr.f32.mxu0 %v3507
      %v3509 = vand.u32 %v1216, 4294901760
      %3510 = vmatmul.mubr.f32.gmra.mrb[0].mxu0 %v3509
      %v3511 = vpop.f32.mrb[0].mxu0
      %v3512 = vadd.f32 %v3067, %v3511
      %v3513 = vpop.f32.mrb[0].mxu0
      %v3514 = vand.u32 %v1222, 4294901760
      %3515 = vmatprep.mubr.f32.mxu0 %v3514
      %v3516 = vand.u32 %v1220, 4294901760
      %3517 = vmatmul.mubr.f32.gmra.mrb[0].mxu0 %v3516
      %v3518 = vpop.f32.mrb[0].mxu0
      %v3519 = vadd.f32 %v3078, %v3518
      %v3520 = vpop.f32.mrb[0].mxu0
      %v3521 = vand.u32 %v1226, 4294901760
      %3522 = vmatprep.mubr.f32.mxu0 %v3521
      %v3523 = vand.u32 %v1224, 4294901760
      %3524 = vmatmul.mubr.f32.gmra.mrb[0].mxu0 %v3523
      %v3525 = vpop.f32.mrb[0].mxu0
      %v3526 = vadd.f32 %v3089, %v3525
      %v3527 = vpop.f32.mrb[0].mxu0
      %v3528 = vand.u32 %v1230, 4294901760
      %3529 = vmatprep.mubr.f32.mxu0 %v3528
      %v3530 = vand.u32 %v1228, 4294901760
      %3531 = vmatmul.mubr.f32.gmra.mrb[0].mxu0 %v3530
      %v3532 = vpop.f32.mrb[0].mxu0
      %v3533 = vadd.f32 %v3100, %v3532
      %v3534 = vpop.f32.mrb[0].mxu0
      %v3535 = vand.u32 %v1234, 4294901760
      %3536 = vmatprep.mubr.f32.mxu0 %v3535
      %v3537 = vand.u32 %v1232, 4294901760
      %3538 = vmatmul.mubr.f32.gmra.mrb[0].mxu0 %v3537
      %v3539 = vpop.f32.mrb[0].mxu0
      %v3540 = vadd.f32 %v3111, %v3539
      %v3541 = vpop.f32.mrb[0].mxu0
      %v3542 = vand.u32 %v1238, 4294901760
      %3543 = vmatprep.mubr.f32.mxu0 %v3542
      %v3544 = vand.u32 %v1236, 4294901760
      %3545 = vmatmul.mubr.f32.gmra.mrb[0].mxu0 %v3544
      %v3546 = vpop.f32.mrb[0].mxu0
      %v3547 = vadd.f32 %v3122, %v3546
      %v3548 = vpop.f32.mrb[0].mxu0
      %v3549 = vand.u32 %v1242, 4294901760
      %3550 = vmatprep.mubr.f32.mxu0 %v3549
      %v3551 = vand.u32 %v1240, 4294901760
      %3552 = vmatmul.mubr.f32.gmra.mrb[0].mxu0 %v3551
      %v3553 = vpop.f32.mrb[0].mxu0
      %v3554 = vadd.f32 %v3133, %v3553
      %v3555 = vpop.f32.mrb[0].mxu0
      %v3556 = vand.u32 %v1246, 4294901760
      %3557 = vmatprep.mubr.f32.mxu0 %v3556
      %v3558 = vand.u32 %v1244, 4294901760
      %3559 = vmatmul.mubr.f32.gmra.mrb[0].mxu0 %v3558
      %v3560 = vpop.f32.mrb[0].mxu0
      %v3561 = vadd.f32 %v3144, %v3560
      %v3562 = vpop.f32.mrb[0].mxu0
      %v3563 = vand.u32 %v1250, 4294901760
      %3564 = vmatprep.mubr.f32.mxu0 %v3563
      %v3565 = vand.u32 %v1248, 4294901760
      %3566 = vmatmul.mubr.f32.gmra.mrb[0].mxu0 %v3565
      %v3567 = vpop.f32.mrb[0].mxu0
      %v3568 = vadd.f32 %v3155, %v3567
      %v3569 = vpop.f32.mrb[0].mxu0
      %v3570 = vand.u32 %v1254, 4294901760
      %3571 = vmatprep.mubr.f32.mxu0 %v3570
      %v3572 = vand.u32 %v1252, 4294901760
      %3573 = vmatmul.mubr.f32.gmra.mrb[0].mxu0 %v3572
      %v3574 = vpop.f32.mrb[0].mxu0
      %v3575 = vadd.f32 %v3166, %v3574
      %v3576 = vpop.f32.mrb[0].mxu0
      %v3577 = vand.u32 %v1258, 4294901760
      %3578 = vmatprep.mubr.f32.mxu0 %v3577
      %v3579 = vand.u32 %v1256, 4294901760
      %3580 = vmatmul.mubr.f32.gmra.mrb[0].mxu0 %v3579
      %v3581 = vpop.f32.mrb[0].mxu0
      %v3582 = vadd.f32 %v3177, %v3581
      %v3583 = vpop.f32.mrb[0].mxu0
      %v3584 = vand.u32 %v1262, 4294901760
      %3585 = vmatprep.mubr.f32.mxu0 %v3584
      %v3586 = vand.u32 %v1260, 4294901760
      %3587 = vmatmul.mubr.f32.gmra.mrb[0].mxu0 %v3586
      %v3588 = vpop.f32.mrb[0].mxu0
      %v3589 = vadd.f32 %v3188, %v3588
      %v3590 = vpop.f32.mrb[0].mxu0
      %v3591 = vand.u32 %v1266, 4294901760
      %3592 = vmatprep.mubr.f32.mxu0 %v3591
      %v3593 = vand.u32 %v1264, 4294901760
      %3594 = vmatmul.mubr.f32.gmra.mrb[0].mxu0 %v3593
      %v3595 = vpop.f32.mrb[0].mxu0
      %v3596 = vadd.f32 %v3199, %v3595
      %v3597 = vpop.f32.mrb[0].mxu0
      %v3598 = vand.u32 %v1270, 4294901760
      %3599 = vmatprep.mubr.f32.mxu0 %v3598
      %v3600 = vand.u32 %v1268, 4294901760
      %3601 = vmatmul.mubr.f32.gmra.mrb[0].mxu0 %v3600
      %v3602 = vpop.f32.mrb[0].mxu0
      %v3603 = vadd.f32 %v3210, %v3602
      %v3604 = vpop.f32.mrb[0].mxu0
      %v3605 = vand.u32 %v1274, 4294901760
      %3606 = vmatprep.mubr.f32.mxu0 %v3605
      %v3607 = vand.u32 %v1272, 4294901760
      %3608 = vmatmul.mubr.f32.gmra.mrb[0].mxu0 %v3607
      %v3609 = vpop.f32.mrb[0].mxu0
      %v3610 = vadd.f32 %v3221, %v3609
      %v3611 = vpop.f32.mrb[0].mxu0
      %v3612 = vand.u32 %v1278, 4294901760
      %3613 = vmatprep.mubr.f32.mxu0 %v3612
      %v3614 = vand.u32 %v1276, 4294901760
      %3615 = vmatmul.mubr.f32.gmra.mrb[0].mxu0 %v3614
      %v3616 = vpop.f32.mrb[0].mxu0
      %v3617 = vadd.f32 %v3232, %v3616
      %v3618 = vpop.f32.mrb[0].mxu0
      %3619 = vdwg.mxu0
      %3620 = vmatprep.subr.mxu0 0.0
      %v3621 = vand.u32 %v1311, 4294901760
      %3622 = vmatpush1.msra.mxu0 %v3621
      %3623 = vmatprep.subr.mxu0 0.0
      %v3624 = vand.u32 %v1312, 4294901760
      %3625 = vmatpush1.msra.mxu0 %v3624
      %3626 = vmatprep.subr.mxu0 0.0
      %v3627 = vand.u32 %v1313, 4294901760
      %3628 = vmatpush1.msra.mxu0 %v3627
      %3629 = vmatprep.subr.mxu0 0.0
      %v3630 = vand.u32 %v1314, 4294901760
      %3631 = vmatpush1.msra.mxu0 %v3630
      %3632 = vmatprep.subr.mxu0 0.0
      %v3633 = vand.u32 %v1315, 4294901760
      %3634 = vmatpush1.msra.mxu0 %v3633
      %3635 = vmatprep.subr.mxu0 0.0
      %v3636 = vand.u32 %v1316, 4294901760
      %3637 = vmatpush1.msra.mxu0 %v3636
      %3638 = vmatprep.subr.mxu0 0.0
      %v3639 = vand.u32 %v1317, 4294901760
      %3640 = vmatpush1.msra.mxu0 %v3639
      %3641 = vmatprep.subr.mxu0 0.0
      %v3642 = vand.u32 %v1318, 4294901760
      %3643 = vmatpush1.msra.mxu0 %v3642
      %3644 = vmatprep.subr.mxu0 0.0
      %v3645 = vand.u32 %v1319, 4294901760
      %3646 = vmatpush1.msra.mxu0 %v3645
      %3647 = vmatprep.subr.mxu0 0.0
      %v3648 = vand.u32 %v1320, 4294901760
      %3649 = vmatpush1.msra.mxu0 %v3648
      %3650 = vmatprep.subr.mxu0 0.0
      %v3651 = vand.u32 %v1321, 4294901760
      %3652 = vmatpush1.msra.mxu0 %v3651
      %3653 = vmatprep.subr.mxu0 0.0
      %v3654 = vand.u32 %v1322, 4294901760
      %3655 = vmatpush1.msra.mxu0 %v3654
      %3656 = vmatprep.subr.mxu0 0.0
      %v3657 = vand.u32 %v1323, 4294901760
      %3658 = vmatpush1.msra.mxu0 %v3657
      %3659 = vmatprep.subr.mxu0 0.0
      %v3660 = vand.u32 %v1324, 4294901760
      %3661 = vmatpush1.msra.mxu0 %v3660
      %3662 = vmatprep.subr.mxu0 0.0
      %v3663 = vand.u32 %v1325, 4294901760
      %3664 = vmatpush1.msra.mxu0 %v3663
      %3665 = vmatprep.subr.mxu0 0.0
      %v3666 = vand.u32 %v1326, 4294901760
      %3667 = vmatpush1.msra.mxu0 %v3666
      %3668 = vmatprep.subr.mxu0 0.0
      %v3669 = vand.u32 %v1327, 4294901760
      %3670 = vmatpush1.msra.mxu0 %v3669
      %3671 = vmatprep.subr.mxu0 0.0
      %v3672 = vand.u32 %v1328, 4294901760
      %3673 = vmatpush1.msra.mxu0 %v3672
      %3674 = vmatprep.subr.mxu0 0.0
      %v3675 = vand.u32 %v1329, 4294901760
      %3676 = vmatpush1.msra.mxu0 %v3675
      %3677 = vmatprep.subr.mxu0 0.0
      %v3678 = vand.u32 %v1330, 4294901760
      %3679 = vmatpush1.msra.mxu0 %v3678
      %3680 = vmatprep.subr.mxu0 0.0
      %v3681 = vand.u32 %v1331, 4294901760
      %3682 = vmatpush1.msra.mxu0 %v3681
      %3683 = vmatprep.subr.mxu0 0.0
      %v3684 = vand.u32 %v1332, 4294901760
      %3685 = vmatpush1.msra.mxu0 %v3684
      %3686 = vmatprep.subr.mxu0 0.0
      %v3687 = vand.u32 %v1333, 4294901760
      %3688 = vmatpush1.msra.mxu0 %v3687
      %3689 = vmatprep.subr.mxu0 0.0
      %v3690 = vand.u32 %v1334, 4294901760
      %3691 = vmatpush1.msra.mxu0 %v3690
      %3692 = vmatprep.subr.mxu0 0.0
      %v3693 = vand.u32 %v1335, 4294901760
      %3694 = vmatpush1.msra.mxu0 %v3693
      %3695 = vmatprep.subr.mxu0 0.0
      %v3696 = vand.u32 %v1336, 4294901760
      %3697 = vmatpush1.msra.mxu0 %v3696
      %3698 = vmatprep.subr.mxu0 0.0
      %v3699 = vand.u32 %v1337, 4294901760
      %3700 = vmatpush1.msra.mxu0 %v3699
      %3701 = vmatprep.subr.mxu0 0.0
      %v3702 = vand.u32 %v1338, 4294901760
      %3703 = vmatpush1.msra.mxu0 %v3702
      %3704 = vmatprep.subr.mxu0 0.0
      %v3705 = vand.u32 %v1339, 4294901760
      %3706 = vmatpush1.msra.mxu0 %v3705
      %3707 = vmatprep.subr.mxu0 0.0
      %v3708 = vand.u32 %v1340, 4294901760
      %3709 = vmatpush1.msra.mxu0 %v3708
      %3710 = vmatprep.subr.mxu0 0.0
      %v3711 = vand.u32 %v1341, 4294901760
      %3712 = vmatpush1.msra.mxu0 %v3711
      %3713 = vmatprep.subr.mxu0 0.0
      %v3714 = vand.u32 %v1342, 4294901760
      %3715 = vmatpush1.msra.mxu0 %v3714
      %v3716 = vand.u32 %v1154, 4294901760
      %3717 = vmatprep.mubr.f32.mxu0 %v3716
      %v3718 = vand.u32 %v1152, 4294901760
      %3719 = vmatmul.mubr.f32.gmra.mrb[0].mxu0 %v3718
      %v3720 = vpop.f32.mrb[0].mxu0
      %v3721 = vadd.f32 %v3400, %v3720
      %v3722 = vpop.f32.mrb[0].mxu0
      %v3723 = vand.u32 %v1158, 4294901760
      %3724 = vmatprep.mubr.f32.mxu0 %v3723
      %v3725 = vand.u32 %v1156, 4294901760
      %3726 = vmatmul.mubr.f32.gmra.mrb[0].mxu0 %v3725
      %v3727 = vpop.f32.mrb[0].mxu0
      %v3728 = vadd.f32 %v3407, %v3727
      %v3729 = vpop.f32.mrb[0].mxu0
      %v3730 = vand.u32 %v1162, 4294901760
      %3731 = vmatprep.mubr.f32.mxu0 %v3730
      %v3732 = vand.u32 %v1160, 4294901760
      %3733 = vmatmul.mubr.f32.gmra.mrb[0].mxu0 %v3732
      %v3734 = vpop.f32.mrb[0].mxu0
      %v3735 = vadd.f32 %v3414, %v3734
      %v3736 = vpop.f32.mrb[0].mxu0
      %v3737 = vand.u32 %v1166, 4294901760
      %3738 = vmatprep.mubr.f32.mxu0 %v3737
      %v3739 = vand.u32 %v1164, 4294901760
      %3740 = vmatmul.mubr.f32.gmra.mrb[0].mxu0 %v3739
      %v3741 = vpop.f32.mrb[0].mxu0
      %v3742 = vadd.f32 %v3421, %v3741
      %v3743 = vpop.f32.mrb[0].mxu0
      %v3744 = vand.u32 %v1170, 4294901760
      %3745 = vmatprep.mubr.f32.mxu0 %v3744
      %v3746 = vand.u32 %v1168, 4294901760
      %3747 = vmatmul.mubr.f32.gmra.mrb[0].mxu0 %v3746
      %v3748 = vpop.f32.mrb[0].mxu0
      %v3749 = vadd.f32 %v3428, %v3748
      %v3750 = vpop.f32.mrb[0].mxu0
      %v3751 = vand.u32 %v1174, 4294901760
      %3752 = vmatprep.mubr.f32.mxu0 %v3751
      %v3753 = vand.u32 %v1172, 4294901760
      %3754 = vmatmul.mubr.f32.gmra.mrb[0].mxu0 %v3753
      %v3755 = vpop.f32.mrb[0].mxu0
      %v3756 = vadd.f32 %v3435, %v3755
      %v3757 = vpop.f32.mrb[0].mxu0
      %v3758 = vand.u32 %v1178, 4294901760
      %3759 = vmatprep.mubr.f32.mxu0 %v3758
      %v3760 = vand.u32 %v1176, 4294901760
      %3761 = vmatmul.mubr.f32.gmra.mrb[0].mxu0 %v3760
      %v3762 = vpop.f32.mrb[0].mxu0
      %v3763 = vadd.f32 %v3442, %v3762
      %v3764 = vpop.f32.mrb[0].mxu0
      %v3765 = vand.u32 %v1182, 4294901760
      %3766 = vmatprep.mubr.f32.mxu0 %v3765
      %v3767 = vand.u32 %v1180, 4294901760
      %3768 = vmatmul.mubr.f32.gmra.mrb[0].mxu0 %v3767
      %v3769 = vpop.f32.mrb[0].mxu0
      %v3770 = vadd.f32 %v3449, %v3769
      %v3771 = vpop.f32.mrb[0].mxu0
      %v3772 = vand.u32 %v1186, 4294901760
      %3773 = vmatprep.mubr.f32.mxu0 %v3772
      %v3774 = vand.u32 %v1184, 4294901760
      %3775 = vmatmul.mubr.f32.gmra.mrb[0].mxu0 %v3774
      %v3776 = vpop.f32.mrb[0].mxu0
      %v3777 = vadd.f32 %v3456, %v3776
      %v3778 = vpop.f32.mrb[0].mxu0
      %v3779 = vand.u32 %v1190, 4294901760
      %3780 = vmatprep.mubr.f32.mxu0 %v3779
      %v3781 = vand.u32 %v1188, 4294901760
      %3782 = vmatmul.mubr.f32.gmra.mrb[0].mxu0 %v3781
      %v3783 = vpop.f32.mrb[0].mxu0
      %v3784 = vadd.f32 %v3463, %v3783
      %v3785 = vpop.f32.mrb[0].mxu0
      %v3786 = vand.u32 %v1194, 4294901760
      %3787 = vmatprep.mubr.f32.mxu0 %v3786
      %v3788 = vand.u32 %v1192, 4294901760
      %3789 = vmatmul.mubr.f32.gmra.mrb[0].mxu0 %v3788
      %v3790 = vpop.f32.mrb[0].mxu0
      %v3791 = vadd.f32 %v3470, %v3790
      %v3792 = vpop.f32.mrb[0].mxu0
      %v3793 = vand.u32 %v1198, 4294901760
      %3794 = vmatprep.mubr.f32.mxu0 %v3793
      %v3795 = vand.u32 %v1196, 4294901760
      %3796 = vmatmul.mubr.f32.gmra.mrb[0].mxu0 %v3795
      %v3797 = vpop.f32.mrb[0].mxu0
      %v3798 = vadd.f32 %v3477, %v3797
      %v3799 = vpop.f32.mrb[0].mxu0
      %v3800 = vand.u32 %v1202, 4294901760
      %3801 = vmatprep.mubr.f32.mxu0 %v3800
      %v3802 = vand.u32 %v1200, 4294901760
      %3803 = vmatmul.mubr.f32.gmra.mrb[0].mxu0 %v3802
      %v3804 = vpop.f32.mrb[0].mxu0
      %v3805 = vadd.f32 %v3484, %v3804
      %v3806 = vpop.f32.mrb[0].mxu0
      %v3807 = vand.u32 %v1206, 4294901760
      %3808 = vmatprep.mubr.f32.mxu0 %v3807
      %v3809 = vand.u32 %v1204, 4294901760
      %3810 = vmatmul.mubr.f32.gmra.mrb[0].mxu0 %v3809
      %v3811 = vpop.f32.mrb[0].mxu0
      %v3812 = vadd.f32 %v3491, %v3811
      %v3813 = vpop.f32.mrb[0].mxu0
      %v3814 = vand.u32 %v1210, 4294901760
      %3815 = vmatprep.mubr.f32.mxu0 %v3814
      %v3816 = vand.u32 %v1208, 4294901760
      %3817 = vmatmul.mubr.f32.gmra.mrb[0].mxu0 %v3816
      %v3818 = vpop.f32.mrb[0].mxu0
      %v3819 = vadd.f32 %v3498, %v3818
      %v3820 = vpop.f32.mrb[0].mxu0
      %v3821 = vand.u32 %v1214, 4294901760
      %3822 = vmatprep.mubr.f32.mxu0 %v3821
      %v3823 = vand.u32 %v1212, 4294901760
      %3824 = vmatmul.mubr.f32.gmra.mrb[0].mxu0 %v3823
      %v3825 = vpop.f32.mrb[0].mxu0
      %v3826 = vadd.f32 %v3505, %v3825
      %v3827 = vpop.f32.mrb[0].mxu0
      %v3828 = vand.u32 %v1218, 4294901760
      %3829 = vmatprep.mubr.f32.mxu0 %v3828
      %v3830 = vand.u32 %v1216, 4294901760
      %3831 = vmatmul.mubr.f32.gmra.mrb[0].mxu0 %v3830
      %v3832 = vpop.f32.mrb[0].mxu0
      %v3833 = vadd.f32 %v3512, %v3832
      %v3834 = vpop.f32.mrb[0].mxu0
      %v3835 = vand.u32 %v1222, 4294901760
      %3836 = vmatprep.mubr.f32.mxu0 %v3835
      %v3837 = vand.u32 %v1220, 4294901760
      %3838 = vmatmul.mubr.f32.gmra.mrb[0].mxu0 %v3837
      %v3839 = vpop.f32.mrb[0].mxu0
      %v3840 = vadd.f32 %v3519, %v3839
      %v3841 = vpop.f32.mrb[0].mxu0
      %v3842 = vand.u32 %v1226, 4294901760
      %3843 = vmatprep.mubr.f32.mxu0 %v3842
      %v3844 = vand.u32 %v1224, 4294901760
      %3845 = vmatmul.mubr.f32.gmra.mrb[0].mxu0 %v3844
      %v3846 = vpop.f32.mrb[0].mxu0
      %v3847 = vadd.f32 %v3526, %v3846
      %v3848 = vpop.f32.mrb[0].mxu0
      %v3849 = vand.u32 %v1230, 4294901760
      %3850 = vmatprep.mubr.f32.mxu0 %v3849
      %v3851 = vand.u32 %v1228, 4294901760
      %3852 = vmatmul.mubr.f32.gmra.mrb[0].mxu0 %v3851
      %v3853 = vpop.f32.mrb[0].mxu0
      %v3854 = vadd.f32 %v3533, %v3853
      %v3855 = vpop.f32.mrb[0].mxu0
      %v3856 = vand.u32 %v1234, 4294901760
      %3857 = vmatprep.mubr.f32.mxu0 %v3856
      %v3858 = vand.u32 %v1232, 4294901760
      %3859 = vmatmul.mubr.f32.gmra.mrb[0].mxu0 %v3858
      %v3860 = vpop.f32.mrb[0].mxu0
      %v3861 = vadd.f32 %v3540, %v3860
      %v3862 = vpop.f32.mrb[0].mxu0
      %v3863 = vand.u32 %v1238, 4294901760
      %3864 = vmatprep.mubr.f32.mxu0 %v3863
      %v3865 = vand.u32 %v1236, 4294901760
      %3866 = vmatmul.mubr.f32.gmra.mrb[0].mxu0 %v3865
      %v3867 = vpop.f32.mrb[0].mxu0
      %v3868 = vadd.f32 %v3547, %v3867
      %v3869 = vpop.f32.mrb[0].mxu0
      %v3870 = vand.u32 %v1242, 4294901760
      %3871 = vmatprep.mubr.f32.mxu0 %v3870
      %v3872 = vand.u32 %v1240, 4294901760
      %3873 = vmatmul.mubr.f32.gmra.mrb[0].mxu0 %v3872
      %v3874 = vpop.f32.mrb[0].mxu0
      %v3875 = vadd.f32 %v3554, %v3874
      %v3876 = vpop.f32.mrb[0].mxu0
      %v3877 = vand.u32 %v1246, 4294901760
      %3878 = vmatprep.mubr.f32.mxu0 %v3877
      %v3879 = vand.u32 %v1244, 4294901760
      %3880 = vmatmul.mubr.f32.gmra.mrb[0].mxu0 %v3879
      %v3881 = vpop.f32.mrb[0].mxu0
      %v3882 = vadd.f32 %v3561, %v3881
      %v3883 = vpop.f32.mrb[0].mxu0
      %v3884 = vand.u32 %v1250, 4294901760
      %3885 = vmatprep.mubr.f32.mxu0 %v3884
      %v3886 = vand.u32 %v1248, 4294901760
      %3887 = vmatmul.mubr.f32.gmra.mrb[0].mxu0 %v3886
      %v3888 = vpop.f32.mrb[0].mxu0
      %v3889 = vadd.f32 %v3568, %v3888
      %v3890 = vpop.f32.mrb[0].mxu0
      %v3891 = vand.u32 %v1254, 4294901760
      %3892 = vmatprep.mubr.f32.mxu0 %v3891
      %v3893 = vand.u32 %v1252, 4294901760
      %3894 = vmatmul.mubr.f32.gmra.mrb[0].mxu0 %v3893
      %v3895 = vpop.f32.mrb[0].mxu0
      %v3896 = vadd.f32 %v3575, %v3895
      %v3897 = vpop.f32.mrb[0].mxu0
      %v3898 = vand.u32 %v1258, 4294901760
      %3899 = vmatprep.mubr.f32.mxu0 %v3898
      %v3900 = vand.u32 %v1256, 4294901760
      %3901 = vmatmul.mubr.f32.gmra.mrb[0].mxu0 %v3900
      %v3902 = vpop.f32.mrb[0].mxu0
      %v3903 = vadd.f32 %v3582, %v3902
      %v3904 = vpop.f32.mrb[0].mxu0
      %v3905 = vand.u32 %v1262, 4294901760
      %3906 = vmatprep.mubr.f32.mxu0 %v3905
      %v3907 = vand.u32 %v1260, 4294901760
      %3908 = vmatmul.mubr.f32.gmra.mrb[0].mxu0 %v3907
      %v3909 = vpop.f32.mrb[0].mxu0
      %v3910 = vadd.f32 %v3589, %v3909
      %v3911 = vpop.f32.mrb[0].mxu0
      %v3912 = vand.u32 %v1266, 4294901760
      %3913 = vmatprep.mubr.f32.mxu0 %v3912
      %v3914 = vand.u32 %v1264, 4294901760
      %3915 = vmatmul.mubr.f32.gmra.mrb[0].mxu0 %v3914
      %v3916 = vpop.f32.mrb[0].mxu0
      %v3917 = vadd.f32 %v3596, %v3916
      %v3918 = vpop.f32.mrb[0].mxu0
      %v3919 = vand.u32 %v1270, 4294901760
      %3920 = vmatprep.mubr.f32.mxu0 %v3919
      %v3921 = vand.u32 %v1268, 4294901760
      %3922 = vmatmul.mubr.f32.gmra.mrb[0].mxu0 %v3921
      %v3923 = vpop.f32.mrb[0].mxu0
      %v3924 = vadd.f32 %v3603, %v3923
      %v3925 = vpop.f32.mrb[0].mxu0
      %v3926 = vand.u32 %v1274, 4294901760
      %3927 = vmatprep.mubr.f32.mxu0 %v3926
      %v3928 = vand.u32 %v1272, 4294901760
      %3929 = vmatmul.mubr.f32.gmra.mrb[0].mxu0 %v3928
      %v3930 = vpop.f32.mrb[0].mxu0
      %v3931 = vadd.f32 %v3610, %v3930
      %v3932 = vpop.f32.mrb[0].mxu0
      %v3933 = vand.u32 %v1278, 4294901760
      %3934 = vmatprep.mubr.f32.mxu0 %v3933
      %v3935 = vand.u32 %v1276, 4294901760
      %3936 = vmatmul.mubr.f32.gmra.mrb[0].mxu0 %v3935
      %v3937 = vpop.f32.mrb[0].mxu0
      %v3938 = vadd.f32 %v3617, %v3937
      %v3939 = vpop.f32.mrb[0].mxu0
      %3940 = vdwg.mxu0
      %v3941 = vadd.f32 %v1279, %v3721
      %v3942 = vadd.f32 %v1280, %v3728
      %v3943 = vadd.f32 %v1281, %v3735
      %v3944 = vadd.f32 %v1282, %v3742
      %v3945 = vadd.f32 %v1283, %v3749
      %v3946 = vadd.f32 %v1284, %v3756
      %v3947 = vadd.f32 %v1285, %v3763
      %v3948 = vadd.f32 %v1286, %v3770
      %v3949 = vadd.f32 %v1287, %v3777
      %v3950 = vadd.f32 %v1288, %v3784
      %v3951 = vadd.f32 %v1289, %v3791
      %v3952 = vadd.f32 %v1290, %v3798
      %v3953 = vadd.f32 %v1291, %v3805
      %v3954 = vadd.f32 %v1292, %v3812
      %v3955 = vadd.f32 %v1293, %v3819
      %v3956 = vadd.f32 %v1294, %v3826
      %v3957 = vadd.f32 %v1295, %v3833
      %v3958 = vadd.f32 %v1296, %v3840
      %v3959 = vadd.f32 %v1297, %v3847
      %v3960 = vadd.f32 %v1298, %v3854
      %v3961 = vadd.f32 %v1299, %v3861
      %v3962 = vadd.f32 %v1300, %v3868
      %v3963 = vadd.f32 %v1301, %v3875
      %v3964 = vadd.f32 %v1302, %v3882
      %v3965 = vadd.f32 %v1303, %v3889
      %v3966 = vadd.f32 %v1304, %v3896
      %v3967 = vadd.f32 %v1305, %v3903
      %v3968 = vadd.f32 %v1306, %v3910
      %v3969 = vadd.f32 %v1307, %v3917
      %v3970 = vadd.f32 %v1308, %v3924
      %v3971 = vadd.f32 %v1309, %v3931
      %v3972 = vadd.f32 %v1310, %v3938
      %vm3973 = vcmask 7168
      %3974 = vst.msk [vmem:[%s320] sm:$0xff] %vm3973, %v3941
      %3975 = vst.msk [vmem:[%s320 + $0x8] sm:$0xff] %vm3973, %v3942
      %3976 = vst.msk [vmem:[%s320 + $0x10] sm:$0xff] %vm3973, %v3943
      %3977 = vst.msk [vmem:[%s320 + $0x18] sm:$0xff] %vm3973, %v3944
      %3978 = vst.msk [vmem:[%s320 + $0x20] sm:$0xff] %vm3973, %v3945
      %3979 = vst.msk [vmem:[%s320 + $0x28] sm:$0xff] %vm3973, %v3946
      %3980 = vst.msk [vmem:[%s320 + $0x30] sm:$0xff] %vm3973, %v3947
      %3981 = vst.msk [vmem:[%s320 + $0x38] sm:$0xff] %vm3973, %v3948
      %3982 = vst.msk [vmem:[%s320 + $0x40] sm:$0xff] %vm3973, %v3949
      %3983 = vst.msk [vmem:[%s320 + $0x48] sm:$0xff] %vm3973, %v3950
      %3984 = vst.msk [vmem:[%s320 + $0x50] sm:$0xff] %vm3973, %v3951
      %3985 = vst.msk [vmem:[%s320 + $0x58] sm:$0xff] %vm3973, %v3952
      %3986 = vst.msk [vmem:[%s320 + $0x60] sm:$0xff] %vm3973, %v3953
      %3987 = vst.msk [vmem:[%s320 + $0x68] sm:$0xff] %vm3973, %v3954
      %3988 = vst.msk [vmem:[%s320 + $0x70] sm:$0xff] %vm3973, %v3955
      %3989 = vst.msk [vmem:[%s320 + $0x78] sm:$0xff] %vm3973, %v3956
      %3990 = vst.msk [vmem:[%s320 + $0x80] sm:$0xff] %vm3973, %v3957
      %3991 = vst.msk [vmem:[%s320 + $0x88] sm:$0xff] %vm3973, %v3958
      %3992 = vst.msk [vmem:[%s320 + $0x90] sm:$0xff] %vm3973, %v3959
      %3993 = vst.msk [vmem:[%s320 + $0x98] sm:$0xff] %vm3973, %v3960
      %3994 = vst.msk [vmem:[%s320 + $0xa0] sm:$0xff] %vm3973, %v3961
      %3995 = vst.msk [vmem:[%s320 + $0xa8] sm:$0xff] %vm3973, %v3962
      %3996 = vst.msk [vmem:[%s320 + $0xb0] sm:$0xff] %vm3973, %v3963
      %3997 = vst.msk [vmem:[%s320 + $0xb8] sm:$0xff] %vm3973, %v3964
      %3998 = vst.msk [vmem:[%s320 + $0xc0] sm:$0xff] %vm3973, %v3965
      %3999 = vst.msk [vmem:[%s320 + $0xc8] sm:$0xff] %vm3973, %v3966
      %4000 = vst.msk [vmem:[%s320 + $0xd0] sm:$0xff] %vm3973, %v3967
      %4001 = vst.msk [vmem:[%s320 + $0xd8] sm:$0xff] %vm3973, %v3968
      %4002 = vst.msk [vmem:[%s320 + $0xe0] sm:$0xff] %vm3973, %v3969
      %4003 = vst.msk [vmem:[%s320 + $0xe8] sm:$0xff] %vm3973, %v3970
      %4004 = vst.msk [vmem:[%s320 + $0xf0] sm:$0xff] %vm3973, %v3971
      %4005 = vst.msk [vmem:[%s320 + $0xf8] sm:$0xff] %vm3973, %v3972
      %s4006 = smul.u32 32, %s20
      %p4007 = scmp.lt.s32.totalorder %s4006, 63
      %s4008 = scalar_select %p4007, %s4006, 63
      %s4009 = smul.addr %s4008, 8
      %s4010 = scalar_lea.vmem %s5, %s4009
      // Predicated region
      $region45: #{tpu_custom_call.1} parent=39 // pred_check
        %p4011 = pneg %p176
      $region46: #{tpu_custom_call.1} parent=39 // pred_check_branch
        %4013 = sbr.rel (%p4011) target = $region48
      $region47: #{tpu_custom_call.1} parent=39 // pred_region
        %s4014 = smul.u32 32, %s20
      $region48: #{tpu_custom_call.1} parent=39 // pred_fallthru
        _
    $region40: #{tpu_custom_call.1} parent=5 // pred_fallthru
      _
    %p4015 = scmp.le.s32.totalorder 2, %s11
    // Predicated region
    $region49: #{tpu_custom_call.1} parent=5 // pred_check
      %p4016 = pneg %p4015
    $region50: #{tpu_custom_call.1} parent=5 // pred_check_branch
      %4018 = sbr.rel (%p4016) target = $region52
    $region51: #{tpu_custom_call.1} parent=5 // pred_region
      %s4019 = ssub.s32 %s11, 2
      // Predicated region
      $region53: #{tpu_custom_call.1} parent=51 // pred_check
        %p4020 = pneg %p182
      $region54: #{tpu_custom_call.1} parent=51 // pred_check_branch
        %4022 = sbr.rel (%p4020) target = $region56
      $region55: #{tpu_custom_call.1} parent=51 // pred_region
        %s4023 = smul.u32 32, %s22
        %p4024 = scmp.lt.s32.totalorder %s4023, 63
        %s4025 = scalar_select %p4024, %s4023, 63
        %s4026 = smul.addr %s4025, 8
        %s4027 = scalar_lea.vmem %s5, %s4026
      $region56: #{tpu_custom_call.1} parent=51 // pred_fallthru
        _
    $region52: #{tpu_custom_call.1} parent=5 // pred_fallthru
      _
  $region6: #{tpu_custom_call.1} parent=0 // loop_footer
    %s15 = sadd.s32 1, %s11
  $region7: #{tpu_custom_call.1} parent=0 // loop_footer_branch
    %10 = sbr.rel target = $region3
  $region8: #{tpu_custom_call.1} parent=0 // loop_exit
    _

</llo_original>
